<compile_context>
chip_gen: v7x
topology: tpu7x:2x2x1
jax: 0.10.0
libtpu: 0.0.40
codegen_flags: <defaults>
</compile_context>

<pallas_src>
import functools
import math

import jax
import jax.numpy as jnp
import numpy as np
from jax.experimental import pallas as pl
from jax.experimental.pallas import tpu as pltpu


def _soft_hist_kernel(x_ref, sc_ref, o_ref, acc_ref, *, sigma, sum_ab, diff_ab, t_clip):
    i = pl.program_id(1)

    @pl.when(i == 0)
    def _():
        acc_ref[...] = jnp.zeros_like(acc_ref)

    sx = x_ref[...] * sigma                # (1, chunk)      sigma * x   (O(chunk) work)
    t = sc_ref[...] - sx                   # (bins, chunk)   sigma*(c - x) = -sigma*diff
    t = jnp.minimum(t, t_clip)             # keep e and e^2 finite; true w there is ~0
    e = jnp.exp(t)                         # the single EUP transcendental per element
    denom = (e + sum_ab) * e + 1.0         # (1+e*B)(1+e*A) = 1 + (A+B)*e + e^2
    r = pl.reciprocal(denom, approx=True)
    r = r * (2.0 - denom * r)              # one Newton step -> ~full f32 accuracy
    acc_ref[...] += (diff_ab * e) * r      # per-lane partial histogram (VPU add)

    @pl.when(i == pl.num_programs(1) - 1)
    def _():
        # Deferred cross-lane reduction: (bins, chunk) -> (bins, 1), once.
        o_ref[...] = jnp.sum(acc_ref[...], axis=-1, keepdims=True).astype(o_ref.dtype)


def soft_histogram(x, *, bins, vmin, vmax, sigma, chunk=1024, n_splits=2):
    """Soft histogram of a flattened tensor. Returns float32 of shape (bins,)."""
    x = x.reshape(-1).astype(jnp.float32)
    n = x.shape[0]
    sigma = float(sigma)
    delta = float(vmax - vmin) / float(bins)

    # Lane-friendly chunk (multiple of 128).
    chunk = max(128, (int(chunk) // 128) * 128)

    h = 0.5 * sigma * delta
    a = math.exp(h)
    b = math.exp(-h)
    sum_ab = float(a + b)
    diff_ab = float(a - b)

    centers = float(vmin) + delta * (jnp.arange(bins, dtype=jnp.float32) + 0.5)
    scaled_centers = (sigma * centers).reshape(bins, 1)   # sigma hoisted host-side

    # Sentinel padding: sigma*(c - sentinel) <= -300, so exp underflows to 0.0
    # and padded entries contribute exactly zero (no in-kernel mask needed).
    sentinel = float(vmax) + abs(float(vmax) - float(vmin)) + 300.0 / sigma
    block = n_splits * chunk
    n_pad = ((n + block - 1) // block) * block
    cps = n_pad // block                                  # chunks per split
    num_chunks = n_splits * cps
    x_padded = jnp.pad(x, (0, n_pad - n), constant_values=sentinel)
    x_padded = x_padded.reshape(num_chunks, 1, chunk)

    kernel = functools.partial(
        _soft_hist_kernel,
        sigma=sigma,
        sum_ab=sum_ab,
        diff_ab=diff_ab,
        t_clip=40.0,
    )

    out = pl.pallas_call(
        kernel,
        out_shape=jax.ShapeDtypeStruct((n_splits, bins, 1), jnp.float32),
        grid_spec=pltpu.PrefetchScalarGridSpec(
            num_scalar_prefetch=0,
            grid=(n_splits, cps),
            in_specs=[
                pl.BlockSpec((None, 1, chunk), lambda s, i: (s * cps + i, 0, 0)),
                pl.BlockSpec((bins, 1), lambda s, i: (0, 0)),
            ],
            out_specs=pl.BlockSpec((None, bins, 1), lambda s, i: (s, 0, 0)),
            scratch_shapes=[pltpu.VMEM((bins, chunk), jnp.float32)],
        ),
        compiler_params=pltpu.CompilerParams(
            dimension_semantics=("parallel", "arbitrary"),
        ),
    )(x_padded, scaled_centers)

    return out.reshape(n_splits, bins).sum(axis=0)


def soft_histogram_ref(x, *, bins, vmin, vmax, sigma):
    x = x.reshape(-1).astype(jnp.float32)
    delta = float(vmax - vmin) / float(bins)
    centers = float(vmin) + delta * (jnp.arange(bins, dtype=jnp.float32) + 0.5)
    d = x[None, :] - centers[:, None]
    w = jax.nn.sigmoid(sigma * (d + delta / 2)) - jax.nn.sigmoid(
        sigma * (d - delta / 2)
    )
    return w.sum(axis=1)


if __name__ == "__main__":
    # Module config (deterministic, synthetic).
    BINS, VMIN, VMAX, SIGMA = 256, 0.0, 1.0, 75.0

    key = jax.random.PRNGKey(0)
    k1, k2 = jax.random.split(key)

    # Typical usage: histogram of a flattened image tensor (NCHW -> 1-D).
    img = jax.random.uniform(k1, (2, 4, 16, 16), dtype=jnp.float32)
    x1 = img.reshape(-1)  # N = 2048
    out1 = jax.block_until_ready(
        soft_histogram(x1, bins=BINS, vmin=VMIN, vmax=VMAX, sigma=SIGMA)
    )
    ref1 = soft_histogram_ref(x1, bins=BINS, vmin=VMIN, vmax=VMAX, sigma=SIGMA)
    np.testing.assert_allclose(np.asarray(out1), np.asarray(ref1), rtol=1e-4, atol=1e-4)

    # Ragged length: exercises sentinel padding + multi-step accumulation.
    x2 = jax.random.uniform(k2, (3000,), dtype=jnp.float32)
    out2 = jax.block_until_ready(
        soft_histogram(x2, bins=BINS, vmin=VMIN, vmax=VMAX, sigma=SIGMA)
    )
    ref2 = soft_histogram_ref(x2, bins=BINS, vmin=VMIN, vmax=VMAX, sigma=SIGMA)
    np.testing.assert_allclose(np.asarray(out2), np.asarray(ref2), rtol=1e-4, atol=1e-4)

    print("KERNEL_OK")
</pallas_src>

<mosaic_0001>
module attributes {stable_mosaic.version = 11 : i64} {
  func.func @_soft_hist_kernel(%arg0: i32, %arg1: i32, %arg2: memref<1x1x1024xf32, #tpu.memory_space<vmem>>, %arg3: memref<256x1xf32, #tpu.memory_space<vmem>>, %arg4: memref<1x256x1xf32, #tpu.memory_space<vmem>>, %arg5: memref<256x1024xf32, #tpu.memory_space<vmem>>) attributes {dimension_semantics = [#tpu.dimension_semantics<parallel>, #tpu.dimension_semantics<arbitrary>], iteration_bounds = array<i64: 2, 1>, scalar_prefetch = 0 : i64, scratch_operands = 1 : i64, tpu.core_type = #tpu.core_type<tc>, window_params = [{transform_indices = @transform_0, window_bounds = array<i64: 1, 1, 1024>}, {pipeline_mode = #tpu.pipeline_mode<synchronous>, transform_indices = @transform_1, window_bounds = array<i64: 256, 1>}, {transform_indices = @transform_2, window_bounds = array<i64: 1, 256, 1>}]} {
    %c0_i32 = arith.constant 0 : i32
    %0 = arith.cmpi eq, %arg1, %c0_i32 : i32
    %1 = arith.extui %0 : i1 to i32
    %c0_i32_0 = arith.constant 0 : i32
    %2 = arith.cmpi ne, %1, %c0_i32_0 : i32
    scf.if %2 {
      %cst_16 = arith.constant 0.000000e+00 : f32
      %33 = vector.broadcast %cst_16 : f32 to vector<256x1024xf32>
      %c0_17 = arith.constant 0 : index
      %c0_18 = arith.constant 0 : index
      %34 = vector.load %arg5[%c0_17, %c0_18] : memref<256x1024xf32, #tpu.memory_space<vmem>>, vector<256x1024xf32>
      tpu.vector_store %arg5[%c0_17, %c0_18], %33 {strides = array<i32>} : memref<256x1024xf32, #tpu.memory_space<vmem>>, vector<256x1024xf32>,
    } else {
    }
    %c0 = arith.constant 0 : index
    %c0_1 = arith.constant 0 : index
    %c0_2 = arith.constant 0 : index
    %3 = vector.load %arg2[%c0, %c0_1, %c0_2] : memref<1x1x1024xf32, #tpu.memory_space<vmem>>, vector<1x1x1024xf32>
    %4 = vector.shape_cast %3 : vector<1x1x1024xf32> to vector<1x1024xf32>
    %cst = arith.constant 7.500000e+01 : f32
    %5 = vector.broadcast %cst : f32 to vector<1x1024xf32>
    %6 = arith.mulf %4, %5 : vector<1x1024xf32>
    %c0_3 = arith.constant 0 : index
    %c0_4 = arith.constant 0 : index
    %7 = vector.load %arg3[%c0_3, %c0_4] : memref<256x1xf32, #tpu.memory_space<vmem>>, vector<256x1xf32>
    %8 = vector.broadcast %7 : vector<256x1xf32> to vector<256x1024xf32>
    %9 = vector.broadcast %6 : vector<1x1024xf32> to vector<256x1024xf32>
    %10 = arith.subf %8, %9 : vector<256x1024xf32>
    %cst_5 = arith.constant 4.000000e+01 : f32
    %11 = vector.broadcast %cst_5 : f32 to vector<256x1024xf32>
    %12 = arith.minimumf %10, %11 : vector<256x1024xf32>
    %13 = math.exp %12 : vector<256x1024xf32>
    %cst_6 = arith.constant 2.02149606 : f32
    %14 = vector.broadcast %cst_6 : f32 to vector<256x1024xf32>
    %15 = arith.addf %13, %14 : vector<256x1024xf32>
    %16 = arith.mulf %15, %13 : vector<256x1024xf32>
    %cst_7 = arith.constant 1.000000e+00 : f32
    %17 = vector.broadcast %cst_7 : f32 to vector<256x1024xf32>
    %18 = arith.addf %16, %17 : vector<256x1024xf32>
    %19 = tpu.reciprocal %18 {approx = true} : vector<256x1024xf32> -> vector<256x1024xf32>
    %20 = arith.mulf %18, %19 : vector<256x1024xf32>
    %cst_8 = arith.constant 2.000000e+00 : f32
    %21 = vector.broadcast %cst_8 : f32 to vector<256x1024xf32>
    %22 = arith.subf %21, %20 : vector<256x1024xf32>
    %23 = arith.mulf %19, %22 : vector<256x1024xf32>
    %c0_9 = arith.constant 0 : index
    %c0_10 = arith.constant 0 : index
    %24 = vector.load %arg5[%c0_9, %c0_10] : memref<256x1024xf32, #tpu.memory_space<vmem>>, vector<256x1024xf32>
    %cst_11 = arith.constant 0.294017613 : f32
    %25 = vector.broadcast %cst_11 : f32 to vector<256x1024xf32>
    %26 = arith.mulf %25, %13 : vector<256x1024xf32>
    %27 = arith.mulf %26, %23 : vector<256x1024xf32>
    %28 = arith.addf %24, %27 : vector<256x1024xf32>
    %c0_12 = arith.constant 0 : index
    %c0_13 = arith.constant 0 : index
    %29 = vector.load %arg5[%c0_12, %c0_13] : memref<256x1024xf32, #tpu.memory_space<vmem>>, vector<256x1024xf32>
    tpu.vector_store %arg5[%c0_12, %c0_13], %28 {strides = array<i32>} : memref<256x1024xf32, #tpu.memory_space<vmem>>, vector<256x1024xf32>,
    %c0_i32_14 = arith.constant 0 : i32
    %30 = arith.cmpi eq, %arg1, %c0_i32_14 : i32
    %31 = arith.extui %30 : i1 to i32
    %c0_i32_15 = arith.constant 0 : i32
    %32 = arith.cmpi ne, %31, %c0_i32_15 : i32
    scf.if %32 {
      %c0_16 = arith.constant 0 : index
      %c0_17 = arith.constant 0 : index
      %33 = vector.load %arg5[%c0_16, %c0_17] : memref<256x1024xf32, #tpu.memory_space<vmem>>, vector<256x1024xf32>
      %cst_18 = arith.constant dense<0.000000e+00> : vector<256xf32>
      %34 = vector.multi_reduction <add>, %33, %cst_18 [1] : vector<256x1024xf32> to vector<256xf32>
      %35 = vector.shape_cast %34 : vector<256xf32> to vector<256x1xf32>
      %c0_19 = arith.constant 0 : index
      %c0_20 = arith.constant 0 : index
      %c0_21 = arith.constant 0 : index
      %36 = vector.load %arg4[%c0_19, %c0_20, %c0_21] : memref<1x256x1xf32, #tpu.memory_space<vmem>>, vector<1x256x1xf32>
      %37 = vector.shape_cast %36 : vector<1x256x1xf32> to vector<256x1xf32>
      %38 = vector.shape_cast %35 : vector<256x1xf32> to vector<1x256x1xf32>
      tpu.vector_store %arg4[%c0_19, %c0_20, %c0_21], %38 {strides = array<i32>} : memref<1x256x1xf32, #tpu.memory_space<vmem>>, vector<1x256x1xf32>,
    } else {
    }
    return
  }
  func.func @transform_0(%arg0: i32, %arg1: i32) -> (i32, i32, i32) {
    %c1_i32 = arith.constant 1 : i32
    %0 = arith.muli %arg0, %c1_i32 : i32
    %1 = arith.addi %0, %arg1 : i32
    %c0_i32 = arith.constant 0 : i32
    %c0_i32_0 = arith.constant 0 : i32
    %c0_i32_1 = arith.constant 0 : i32
    return %1, %c0_i32, %c0_i32_0 : i32, i32, i32
  }
  func.func @transform_1(%arg0: i32, %arg1: i32) -> (i32, i32) {
    %c0_i32 = arith.constant 0 : i32
    %c0_i32_0 = arith.constant 0 : i32
    %c0_i32_1 = arith.constant 0 : i32
    return %c0_i32, %c0_i32_0 : i32, i32
  }
  func.func @transform_2(%arg0: i32, %arg1: i32) -> (i32, i32, i32) {
    %c0_i32 = arith.constant 0 : i32
    %c0_i32_0 = arith.constant 0 : i32
    %c0_i32_1 = arith.constant 0 : i32
    return %arg0, %c0_i32, %c0_i32_0 : i32, i32, i32
  }
}

</mosaic_0001>

<llo_original>
// kernel: tpu_custom_call.1
$region0: #{tpu_custom_call.1}
  #allocation0 [shape = 'u32[]', space=smem, size = 0x4, offset = 0x4, fixed_abs, tag = 'smem constant byte address 0x4 - core index']
  #allocation1 [shape = 'u32[144,128]{1,0:T(1,128)}', space=vmem, size = 0x12000, scoped, tag = 'internal scratch']
  #allocation2 [shape = 'f32[256,1024]{1,0:T(8,128)}', space=vmem, size = 0x100000, scoped, tag = 'scratch operand']
  %s0 = inlined_call_operand.vmem [shape: f32[2,1,1024], index: 0, kind: input, shape index: {}]
  %s1 = inlined_call_operand.vmem [shape: f32[256,1], index: 1, kind: input, shape index: {}]
  %s2 = inlined_call_operand.vmem [shape: f32[2,256,1], index: 2, kind: output, shape index: {}]
  %s3 = sld [smem:[#allocation0]]
  $region49: #{tpu_custom_call.1} parent=0
    _
  %s5 = ssub.s32 1, %s3
  %s6 = scalar_select 0, %s5, %s3
  loop: start=0, step=1, limit=4
  $region2: #{tpu_custom_call.1} parent=0 // loop_pre_header
    _
  $region3: #{tpu_custom_call.1} parent=0 // loop_header
    %s8 = sphi 0, %s12
    %p9 = scmp.ge.s32.totalorder %s8, 4
    %s15 = sphi 0, %s27
    %s16 = sphi 0, %s23
    %s17 = sphi 0, %s15
    %s18 = sphi 0, %s16
    %s19 = sphi 0, %s17
    %s20 = sphi 0, %s18
    %s32 = sphi 0, %s34
    %s35 = sphi 0, %s32
    %s36 = sphi 0, %s35
    %s52 = sphi 0, %s36
    %s56 = sphi 0, %s56
    %s58 = sphi 0, %s56
    %s59 = sphi 0, %s58
    %s73 = sphi 0, %s59
    %s79 = sphi 0, %s81
    %s82 = sphi 0, %s79
    %s83 = sphi 0, %s82
    %s99 = sphi 0, %s83
  $region4: #{tpu_custom_call.1} parent=0 // loop_header_branch
    %11 = sbr.rel (%p9) target = $region8
  $region5: #{tpu_custom_call.1} parent=0 // loop_body
    %s13 = ssub.s32 %s8, 1
    %s14 = ssub.s32 %s8, 2
    %s21 = sadd.s32 1, %s16
    %p22 = scmp.ge.s32.totalorder %s21, 1
    %s23 = scalar_select %p22, 0, %s21
    %s24 = sadd.s32 1, %s15
    %s25 = scalar_select %p22, %s24, %s15
    %p26 = scmp.ge.s32.totalorder %s25, 2
    %s27 = scalar_select %p26, 0, %s25
    %s28 = sadd.s32 %s15, %s16
    %s29 = sadd.s32 %s27, %s23
    %s30 = ssub.s32 %s28, %s29
    %p31 = scmp.eq.s32.totalorder %s30, 0
    %s33 = sadd.s32 %s32, 1
    %s34 = scalar_select %p31, %s32, %s33
    %p37 = pneg %p31
    %p38 = scmp.eq.s32.totalorder %s8, 1
    %p39 = por %p37, %p38
    %p40 = scmp.ne.s32.totalorder %s32, %s35
    %p41 = scmp.eq.s32.totalorder %s8, 0
    %p42 = por %p40, %p41
    %p43 = scmp.ne.s32.totalorder %s32, %s35
    %p44 = scmp.eq.s32.totalorder %s13, 1
    %p45 = por %p43, %p44
    %p46 = scmp.ne.s32.totalorder %s35, %s36
    %p47 = scmp.eq.s32.totalorder %s13, 0
    %p48 = por %p46, %p47
    %p49 = scmp.ne.s32.totalorder %s35, %s36
    %p50 = scmp.eq.s32.totalorder %s14, 1
    %p51 = por %p49, %p50
    %p53 = scmp.ne.s32.totalorder %s36, %s52
    %p54 = scmp.eq.s32.totalorder %s14, 0
    %p55 = por %p53, %p54
    %s57 = sadd.s32 %s56, 1
    %p60 = scmp.eq.s32.totalorder %s8, 1
    %p61 = scmp.ne.s32.totalorder %s56, %s58
    %p62 = scmp.eq.s32.totalorder %s8, 0
    %p63 = por %p61, %p62
    %p64 = scmp.ne.s32.totalorder %s56, %s58
    %p65 = scmp.eq.s32.totalorder %s13, 1
    %p66 = por %p64, %p65
    %p67 = scmp.ne.s32.totalorder %s58, %s59
    %p68 = scmp.eq.s32.totalorder %s13, 0
    %p69 = por %p67, %p68
    %p70 = scmp.ne.s32.totalorder %s58, %s59
    %p71 = scmp.eq.s32.totalorder %s14, 1
    %p72 = por %p70, %p71
    %p74 = scmp.ne.s32.totalorder %s59, %s73
    %p75 = scmp.eq.s32.totalorder %s14, 0
    %p76 = por %p74, %p75
    %s77 = ssub.s32 %s15, %s27
    %p78 = scmp.eq.s32.totalorder %s77, 0
    %s80 = sadd.s32 %s79, 1
    %s81 = scalar_select %p78, %s79, %s80
    %p84 = pneg %p78
    %p85 = scmp.eq.s32.totalorder %s8, 1
    %p86 = por %p84, %p85
    %p87 = scmp.ne.s32.totalorder %s79, %s82
    %p88 = scmp.eq.s32.totalorder %s8, 0
    %p89 = por %p87, %p88
    %p90 = scmp.ne.s32.totalorder %s79, %s82
    %p91 = scmp.eq.s32.totalorder %s13, 1
    %p92 = por %p90, %p91
    %p93 = scmp.ne.s32.totalorder %s82, %s83
    %p94 = scmp.eq.s32.totalorder %s13, 0
    %p95 = por %p93, %p94
    %p96 = scmp.ne.s32.totalorder %s82, %s83
    %p97 = scmp.eq.s32.totalorder %s14, 1
    %p98 = por %p96, %p97
    %p100 = scmp.ne.s32.totalorder %s83, %s99
    %p101 = scmp.eq.s32.totalorder %s14, 0
    %p102 = por %p100, %p101
    %p103 = scmp.le.s32.totalorder 1, %s8
    %p104 = scmp.lt.s32.totalorder %s8, 3
    %p105 = pnand %p103, %p104
    %p106 = pneg %p105
    // Predicated region
    $region9: #{tpu_custom_call.1} parent=5 // pred_check
      _
    $region10: #{tpu_custom_call.1} parent=5 // pred_check_branch
      %108 = sbr.rel (%p105) target = $region12
    $region11: #{tpu_custom_call.1} parent=5 // pred_region
      %s109 = ssub.s32 %s8, 1
      // Predicated region
      $region13: #{tpu_custom_call.1} parent=11 // pred_check
        %p110 = pneg %p69
      $region14: #{tpu_custom_call.1} parent=11 // pred_check_branch
        %112 = sbr.rel (%p110) target = $region16
      $region15: #{tpu_custom_call.1} parent=11 // pred_region
        _
      $region16: #{tpu_custom_call.1} parent=11 // pred_fallthru
        _
    $region12: #{tpu_custom_call.1} parent=5 // pred_fallthru
      _
    %p113 = scmp.lt.s32.totalorder %s8, 2
    // Predicated region
    $region17: #{tpu_custom_call.1} parent=5 // pred_check
      %p114 = pneg %p113
    $region18: #{tpu_custom_call.1} parent=5 // pred_check_branch
      %116 = sbr.rel (%p114) target = $region20
    $region19: #{tpu_custom_call.1} parent=5 // pred_region
      // Predicated region
      $region21: #{tpu_custom_call.1} parent=19 // pred_check
        %p117 = pneg %p42
      $region22: #{tpu_custom_call.1} parent=19 // pred_check_branch
        %119 = sbr.rel (%p117) target = $region24
      $region23: #{tpu_custom_call.1} parent=19 // pred_region
        %s120 = sadd.s32 %s15, %s16
        %p121 = scmp.lt.s32.totalorder %s120, 1
        %s122 = scalar_select %p121, %s120, 1
        %s123 = smul.addr %s122, 8
        %s124 = scalar_lea.vmem %s0, %s123
        %s125 = sadd.s32 %s15, %s16
      $region24: #{tpu_custom_call.1} parent=19 // pred_fallthru
        _
    $region20: #{tpu_custom_call.1} parent=5 // pred_fallthru
      _
    %p126 = scmp.le.s32.totalorder 1, %s8
    %p127 = scmp.lt.s32.totalorder %s8, 3
    %p128 = pnand %p126, %p127
    %p129 = pneg %p128
    // Predicated region
    $region25: #{tpu_custom_call.1} parent=5 // pred_check
      _
    $region26: #{tpu_custom_call.1} parent=5 // pred_check_branch
      %131 = sbr.rel (%p128) target = $region28
    $region27: #{tpu_custom_call.1} parent=5 // pred_region
      %s132 = ssub.s32 %s8, 1
      %s133 = sadd.s32 %s17, %s18
      %p134 = scmp.lt.s32.totalorder %s133, 1
      %s135 = scalar_select %p134, %s133, 1
      %s136 = smul.addr %s135, 8
      %s137 = scalar_lea.vmem %s0, %s136
      %p138 = pneg %p48
      %p139 = pneg %p45
      %p140 = pneg %p69
      %p141 = pneg %p66
      %p142 = pneg %p95
      %p143 = pneg %p92
      %p144 = scmp.lt.s32.totalorder %s17, 1
      %s145 = scalar_select %p144, %s17, 1
      %s146 = smul.addr %s145, 32
      %s147 = smul.addr %s146, 8
      %s148 = scalar_lea.vmem %s2, %s147
      %s149 = sadd.s32 %s17, %s18
      %p150 = scmp.lt.s32.totalorder %s149, 1
      %s151 = scalar_select %p150, %s149, 1
      %s152 = smul.addr %s151, 8
      %s153 = scalar_lea.vmem %s0, %s152
      %s154 = sadd.s32 %s17, %s18
      %p155 = scmp.lt.s32.totalorder %s17, 1
      %s156 = scalar_select %p155, %s17, 1
      %s157 = smul.addr %s156, 32
      %s158 = smul.addr %s157, 8
      %s159 = scalar_lea.vmem %s2, %s158
      %p160 = scmp.eq.s32.totalorder %s18, 0
      // Predicated region
      $region29: #{tpu_custom_call.1} parent=27 // pred_check
        %p161 = pneg %p160
      $region30: #{tpu_custom_call.1} parent=27 // pred_check_branch
        %163 = sbr.rel (%p161) target = $region32
      $region31: #{tpu_custom_call.1} parent=27 // pred_region
        %164 = vst [vmem:[#allocation2] sm:$0xff] 0.0
        %165 = vst [vmem:[#allocation2 + $0x8] sm:$0xff] 0.0
        %166 = vst [vmem:[#allocation2 + $0x10] sm:$0xff] 0.0
        %167 = vst [vmem:[#allocation2 + $0x18] sm:$0xff] 0.0
        %168 = vst [vmem:[#allocation2 + $0x20] sm:$0xff] 0.0
        %169 = vst [vmem:[#allocation2 + $0x28] sm:$0xff] 0.0
        %170 = vst [vmem:[#allocation2 + $0x30] sm:$0xff] 0.0
        %171 = vst [vmem:[#allocation2 + $0x38] sm:$0xff] 0.0
        %172 = vst [vmem:[#allocation2 + $0x40] sm:$0xff] 0.0
        %173 = vst [vmem:[#allocation2 + $0x48] sm:$0xff] 0.0
        %174 = vst [vmem:[#allocation2 + $0x50] sm:$0xff] 0.0
        %175 = vst [vmem:[#allocation2 + $0x58] sm:$0xff] 0.0
        %176 = vst [vmem:[#allocation2 + $0x60] sm:$0xff] 0.0
        %177 = vst [vmem:[#allocation2 + $0x68] sm:$0xff] 0.0
        %178 = vst [vmem:[#allocation2 + $0x70] sm:$0xff] 0.0
        %179 = vst [vmem:[#allocation2 + $0x78] sm:$0xff] 0.0
        %180 = vst [vmem:[#allocation2 + $0x80] sm:$0xff] 0.0
        %181 = vst [vmem:[#allocation2 + $0x88] sm:$0xff] 0.0
        %182 = vst [vmem:[#allocation2 + $0x90] sm:$0xff] 0.0
        %183 = vst [vmem:[#allocation2 + $0x98] sm:$0xff] 0.0
        %184 = vst [vmem:[#allocation2 + $0xa0] sm:$0xff] 0.0
        %185 = vst [vmem:[#allocation2 + $0xa8] sm:$0xff] 0.0
        %186 = vst [vmem:[#allocation2 + $0xb0] sm:$0xff] 0.0
        %187 = vst [vmem:[#allocation2 + $0xb8] sm:$0xff] 0.0
        %188 = vst [vmem:[#allocation2 + $0xc0] sm:$0xff] 0.0
        %189 = vst [vmem:[#allocation2 + $0xc8] sm:$0xff] 0.0
        %190 = vst [vmem:[#allocation2 + $0xd0] sm:$0xff] 0.0
        %191 = vst [vmem:[#allocation2 + $0xd8] sm:$0xff] 0.0
        %192 = vst [vmem:[#allocation2 + $0xe0] sm:$0xff] 0.0
        %193 = vst [vmem:[#allocation2 + $0xe8] sm:$0xff] 0.0
        %194 = vst [vmem:[#allocation2 + $0xf0] sm:$0xff] 0.0
        %195 = vst [vmem:[#allocation2 + $0xf8] sm:$0xff] 0.0
        %196 = vst [vmem:[#allocation2 + $0x100] sm:$0xff] 0.0
        %197 = vst [vmem:[#allocation2 + $0x108] sm:$0xff] 0.0
        %198 = vst [vmem:[#allocation2 + $0x110] sm:$0xff] 0.0
        %199 = vst [vmem:[#allocation2 + $0x118] sm:$0xff] 0.0
        %200 = vst [vmem:[#allocation2 + $0x120] sm:$0xff] 0.0
        %201 = vst [vmem:[#allocation2 + $0x128] sm:$0xff] 0.0
        %202 = vst [vmem:[#allocation2 + $0x130] sm:$0xff] 0.0
        %203 = vst [vmem:[#allocation2 + $0x138] sm:$0xff] 0.0
        %204 = vst [vmem:[#allocation2 + $0x140] sm:$0xff] 0.0
        %205 = vst [vmem:[#allocation2 + $0x148] sm:$0xff] 0.0
        %206 = vst [vmem:[#allocation2 + $0x150] sm:$0xff] 0.0
        %207 = vst [vmem:[#allocation2 + $0x158] sm:$0xff] 0.0
        %208 = vst [vmem:[#allocation2 + $0x160] sm:$0xff] 0.0
        %209 = vst [vmem:[#allocation2 + $0x168] sm:$0xff] 0.0
        %210 = vst [vmem:[#allocation2 + $0x170] sm:$0xff] 0.0
        %211 = vst [vmem:[#allocation2 + $0x178] sm:$0xff] 0.0
        %212 = vst [vmem:[#allocation2 + $0x180] sm:$0xff] 0.0
        %213 = vst [vmem:[#allocation2 + $0x188] sm:$0xff] 0.0
        %214 = vst [vmem:[#allocation2 + $0x190] sm:$0xff] 0.0
        %215 = vst [vmem:[#allocation2 + $0x198] sm:$0xff] 0.0
        %216 = vst [vmem:[#allocation2 + $0x1a0] sm:$0xff] 0.0
        %217 = vst [vmem:[#allocation2 + $0x1a8] sm:$0xff] 0.0
        %218 = vst [vmem:[#allocation2 + $0x1b0] sm:$0xff] 0.0
        %219 = vst [vmem:[#allocation2 + $0x1b8] sm:$0xff] 0.0
        %220 = vst [vmem:[#allocation2 + $0x1c0] sm:$0xff] 0.0
        %221 = vst [vmem:[#allocation2 + $0x1c8] sm:$0xff] 0.0
        %222 = vst [vmem:[#allocation2 + $0x1d0] sm:$0xff] 0.0
        %223 = vst [vmem:[#allocation2 + $0x1d8] sm:$0xff] 0.0
        %224 = vst [vmem:[#allocation2 + $0x1e0] sm:$0xff] 0.0
        %225 = vst [vmem:[#allocation2 + $0x1e8] sm:$0xff] 0.0
        %226 = vst [vmem:[#allocation2 + $0x1f0] sm:$0xff] 0.0
        %227 = vst [vmem:[#allocation2 + $0x1f8] sm:$0xff] 0.0
        %228 = vst [vmem:[#allocation2 + $0x200] sm:$0xff] 0.0
        %229 = vst [vmem:[#allocation2 + $0x208] sm:$0xff] 0.0
        %230 = vst [vmem:[#allocation2 + $0x210] sm:$0xff] 0.0
        %231 = vst [vmem:[#allocation2 + $0x218] sm:$0xff] 0.0
        %232 = vst [vmem:[#allocation2 + $0x220] sm:$0xff] 0.0
        %233 = vst [vmem:[#allocation2 + $0x228] sm:$0xff] 0.0
        %234 = vst [vmem:[#allocation2 + $0x230] sm:$0xff] 0.0
        %235 = vst [vmem:[#allocation2 + $0x238] sm:$0xff] 0.0
        %236 = vst [vmem:[#allocation2 + $0x240] sm:$0xff] 0.0
        %237 = vst [vmem:[#allocation2 + $0x248] sm:$0xff] 0.0
        %238 = vst [vmem:[#allocation2 + $0x250] sm:$0xff] 0.0
        %239 = vst [vmem:[#allocation2 + $0x258] sm:$0xff] 0.0
        %240 = vst [vmem:[#allocation2 + $0x260] sm:$0xff] 0.0
        %241 = vst [vmem:[#allocation2 + $0x268] sm:$0xff] 0.0
        %242 = vst [vmem:[#allocation2 + $0x270] sm:$0xff] 0.0
        %243 = vst [vmem:[#allocation2 + $0x278] sm:$0xff] 0.0
        %244 = vst [vmem:[#allocation2 + $0x280] sm:$0xff] 0.0
        %245 = vst [vmem:[#allocation2 + $0x288] sm:$0xff] 0.0
        %246 = vst [vmem:[#allocation2 + $0x290] sm:$0xff] 0.0
        %247 = vst [vmem:[#allocation2 + $0x298] sm:$0xff] 0.0
        %248 = vst [vmem:[#allocation2 + $0x2a0] sm:$0xff] 0.0
        %249 = vst [vmem:[#allocation2 + $0x2a8] sm:$0xff] 0.0
        %250 = vst [vmem:[#allocation2 + $0x2b0] sm:$0xff] 0.0
        %251 = vst [vmem:[#allocation2 + $0x2b8] sm:$0xff] 0.0
        %252 = vst [vmem:[#allocation2 + $0x2c0] sm:$0xff] 0.0
        %253 = vst [vmem:[#allocation2 + $0x2c8] sm:$0xff] 0.0
        %254 = vst [vmem:[#allocation2 + $0x2d0] sm:$0xff] 0.0
        %255 = vst [vmem:[#allocation2 + $0x2d8] sm:$0xff] 0.0
        %256 = vst [vmem:[#allocation2 + $0x2e0] sm:$0xff] 0.0
        %257 = vst [vmem:[#allocation2 + $0x2e8] sm:$0xff] 0.0
        %258 = vst [vmem:[#allocation2 + $0x2f0] sm:$0xff] 0.0
        %259 = vst [vmem:[#allocation2 + $0x2f8] sm:$0xff] 0.0
        %260 = vst [vmem:[#allocation2 + $0x300] sm:$0xff] 0.0
        %261 = vst [vmem:[#allocation2 + $0x308] sm:$0xff] 0.0
        %262 = vst [vmem:[#allocation2 + $0x310] sm:$0xff] 0.0
        %263 = vst [vmem:[#allocation2 + $0x318] sm:$0xff] 0.0
        %264 = vst [vmem:[#allocation2 + $0x320] sm:$0xff] 0.0
        %265 = vst [vmem:[#allocation2 + $0x328] sm:$0xff] 0.0
        %266 = vst [vmem:[#allocation2 + $0x330] sm:$0xff] 0.0
        %267 = vst [vmem:[#allocation2 + $0x338] sm:$0xff] 0.0
        %268 = vst [vmem:[#allocation2 + $0x340] sm:$0xff] 0.0
        %269 = vst [vmem:[#allocation2 + $0x348] sm:$0xff] 0.0
        %270 = vst [vmem:[#allocation2 + $0x350] sm:$0xff] 0.0
        %271 = vst [vmem:[#allocation2 + $0x358] sm:$0xff] 0.0
        %272 = vst [vmem:[#allocation2 + $0x360] sm:$0xff] 0.0
        %273 = vst [vmem:[#allocation2 + $0x368] sm:$0xff] 0.0
        %274 = vst [vmem:[#allocation2 + $0x370] sm:$0xff] 0.0
        %275 = vst [vmem:[#allocation2 + $0x378] sm:$0xff] 0.0
        %276 = vst [vmem:[#allocation2 + $0x380] sm:$0xff] 0.0
        %277 = vst [vmem:[#allocation2 + $0x388] sm:$0xff] 0.0
        %278 = vst [vmem:[#allocation2 + $0x390] sm:$0xff] 0.0
        %279 = vst [vmem:[#allocation2 + $0x398] sm:$0xff] 0.0
        %280 = vst [vmem:[#allocation2 + $0x3a0] sm:$0xff] 0.0
        %281 = vst [vmem:[#allocation2 + $0x3a8] sm:$0xff] 0.0
        %282 = vst [vmem:[#allocation2 + $0x3b0] sm:$0xff] 0.0
        %283 = vst [vmem:[#allocation2 + $0x3b8] sm:$0xff] 0.0
        %284 = vst [vmem:[#allocation2 + $0x3c0] sm:$0xff] 0.0
        %285 = vst [vmem:[#allocation2 + $0x3c8] sm:$0xff] 0.0
        %286 = vst [vmem:[#allocation2 + $0x3d0] sm:$0xff] 0.0
        %287 = vst [vmem:[#allocation2 + $0x3d8] sm:$0xff] 0.0
        %288 = vst [vmem:[#allocation2 + $0x3e0] sm:$0xff] 0.0
        %289 = vst [vmem:[#allocation2 + $0x3e8] sm:$0xff] 0.0
        %290 = vst [vmem:[#allocation2 + $0x3f0] sm:$0xff] 0.0
        %291 = vst [vmem:[#allocation2 + $0x3f8] sm:$0xff] 0.0
        %292 = vst [vmem:[#allocation2 + $0x400] sm:$0xff] 0.0
        %293 = vst [vmem:[#allocation2 + $0x408] sm:$0xff] 0.0
        %294 = vst [vmem:[#allocation2 + $0x410] sm:$0xff] 0.0
        %295 = vst [vmem:[#allocation2 + $0x418] sm:$0xff] 0.0
        %296 = vst [vmem:[#allocation2 + $0x420] sm:$0xff] 0.0
        %297 = vst [vmem:[#allocation2 + $0x428] sm:$0xff] 0.0
        %298 = vst [vmem:[#allocation2 + $0x430] sm:$0xff] 0.0
        %299 = vst [vmem:[#allocation2 + $0x438] sm:$0xff] 0.0
        %300 = vst [vmem:[#allocation2 + $0x440] sm:$0xff] 0.0
        %301 = vst [vmem:[#allocation2 + $0x448] sm:$0xff] 0.0
        %302 = vst [vmem:[#allocation2 + $0x450] sm:$0xff] 0.0
        %303 = vst [vmem:[#allocation2 + $0x458] sm:$0xff] 0.0
        %304 = vst [vmem:[#allocation2 + $0x460] sm:$0xff] 0.0
        %305 = vst [vmem:[#allocation2 + $0x468] sm:$0xff] 0.0
        %306 = vst [vmem:[#allocation2 + $0x470] sm:$0xff] 0.0
        %307 = vst [vmem:[#allocation2 + $0x478] sm:$0xff] 0.0
        %308 = vst [vmem:[#allocation2 + $0x480] sm:$0xff] 0.0
        %309 = vst [vmem:[#allocation2 + $0x488] sm:$0xff] 0.0
        %310 = vst [vmem:[#allocation2 + $0x490] sm:$0xff] 0.0
        %311 = vst [vmem:[#allocation2 + $0x498] sm:$0xff] 0.0
        %312 = vst [vmem:[#allocation2 + $0x4a0] sm:$0xff] 0.0
        %313 = vst [vmem:[#allocation2 + $0x4a8] sm:$0xff] 0.0
        %314 = vst [vmem:[#allocation2 + $0x4b0] sm:$0xff] 0.0
        %315 = vst [vmem:[#allocation2 + $0x4b8] sm:$0xff] 0.0
        %316 = vst [vmem:[#allocation2 + $0x4c0] sm:$0xff] 0.0
        %317 = vst [vmem:[#allocation2 + $0x4c8] sm:$0xff] 0.0
        %318 = vst [vmem:[#allocation2 + $0x4d0] sm:$0xff] 0.0
        %319 = vst [vmem:[#allocation2 + $0x4d8] sm:$0xff] 0.0
        %320 = vst [vmem:[#allocation2 + $0x4e0] sm:$0xff] 0.0
        %321 = vst [vmem:[#allocation2 + $0x4e8] sm:$0xff] 0.0
        %322 = vst [vmem:[#allocation2 + $0x4f0] sm:$0xff] 0.0
        %323 = vst [vmem:[#allocation2 + $0x4f8] sm:$0xff] 0.0
        %324 = vst [vmem:[#allocation2 + $0x500] sm:$0xff] 0.0
        %325 = vst [vmem:[#allocation2 + $0x508] sm:$0xff] 0.0
        %326 = vst [vmem:[#allocation2 + $0x510] sm:$0xff] 0.0
        %327 = vst [vmem:[#allocation2 + $0x518] sm:$0xff] 0.0
        %328 = vst [vmem:[#allocation2 + $0x520] sm:$0xff] 0.0
        %329 = vst [vmem:[#allocation2 + $0x528] sm:$0xff] 0.0
        %330 = vst [vmem:[#allocation2 + $0x530] sm:$0xff] 0.0
        %331 = vst [vmem:[#allocation2 + $0x538] sm:$0xff] 0.0
        %332 = vst [vmem:[#allocation2 + $0x540] sm:$0xff] 0.0
        %333 = vst [vmem:[#allocation2 + $0x548] sm:$0xff] 0.0
        %334 = vst [vmem:[#allocation2 + $0x550] sm:$0xff] 0.0
        %335 = vst [vmem:[#allocation2 + $0x558] sm:$0xff] 0.0
        %336 = vst [vmem:[#allocation2 + $0x560] sm:$0xff] 0.0
        %337 = vst [vmem:[#allocation2 + $0x568] sm:$0xff] 0.0
        %338 = vst [vmem:[#allocation2 + $0x570] sm:$0xff] 0.0
        %339 = vst [vmem:[#allocation2 + $0x578] sm:$0xff] 0.0
        %340 = vst [vmem:[#allocation2 + $0x580] sm:$0xff] 0.0
        %341 = vst [vmem:[#allocation2 + $0x588] sm:$0xff] 0.0
        %342 = vst [vmem:[#allocation2 + $0x590] sm:$0xff] 0.0
        %343 = vst [vmem:[#allocation2 + $0x598] sm:$0xff] 0.0
        %344 = vst [vmem:[#allocation2 + $0x5a0] sm:$0xff] 0.0
        %345 = vst [vmem:[#allocation2 + $0x5a8] sm:$0xff] 0.0
        %346 = vst [vmem:[#allocation2 + $0x5b0] sm:$0xff] 0.0
        %347 = vst [vmem:[#allocation2 + $0x5b8] sm:$0xff] 0.0
        %348 = vst [vmem:[#allocation2 + $0x5c0] sm:$0xff] 0.0
        %349 = vst [vmem:[#allocation2 + $0x5c8] sm:$0xff] 0.0
        %350 = vst [vmem:[#allocation2 + $0x5d0] sm:$0xff] 0.0
        %351 = vst [vmem:[#allocation2 + $0x5d8] sm:$0xff] 0.0
        %352 = vst [vmem:[#allocation2 + $0x5e0] sm:$0xff] 0.0
        %353 = vst [vmem:[#allocation2 + $0x5e8] sm:$0xff] 0.0
        %354 = vst [vmem:[#allocation2 + $0x5f0] sm:$0xff] 0.0
        %355 = vst [vmem:[#allocation2 + $0x5f8] sm:$0xff] 0.0
        %356 = vst [vmem:[#allocation2 + $0x600] sm:$0xff] 0.0
        %357 = vst [vmem:[#allocation2 + $0x608] sm:$0xff] 0.0
        %358 = vst [vmem:[#allocation2 + $0x610] sm:$0xff] 0.0
        %359 = vst [vmem:[#allocation2 + $0x618] sm:$0xff] 0.0
        %360 = vst [vmem:[#allocation2 + $0x620] sm:$0xff] 0.0
        %361 = vst [vmem:[#allocation2 + $0x628] sm:$0xff] 0.0
        %362 = vst [vmem:[#allocation2 + $0x630] sm:$0xff] 0.0
        %363 = vst [vmem:[#allocation2 + $0x638] sm:$0xff] 0.0
        %364 = vst [vmem:[#allocation2 + $0x640] sm:$0xff] 0.0
        %365 = vst [vmem:[#allocation2 + $0x648] sm:$0xff] 0.0
        %366 = vst [vmem:[#allocation2 + $0x650] sm:$0xff] 0.0
        %367 = vst [vmem:[#allocation2 + $0x658] sm:$0xff] 0.0
        %368 = vst [vmem:[#allocation2 + $0x660] sm:$0xff] 0.0
        %369 = vst [vmem:[#allocation2 + $0x668] sm:$0xff] 0.0
        %370 = vst [vmem:[#allocation2 + $0x670] sm:$0xff] 0.0
        %371 = vst [vmem:[#allocation2 + $0x678] sm:$0xff] 0.0
        %372 = vst [vmem:[#allocation2 + $0x680] sm:$0xff] 0.0
        %373 = vst [vmem:[#allocation2 + $0x688] sm:$0xff] 0.0
        %374 = vst [vmem:[#allocation2 + $0x690] sm:$0xff] 0.0
        %375 = vst [vmem:[#allocation2 + $0x698] sm:$0xff] 0.0
        %376 = vst [vmem:[#allocation2 + $0x6a0] sm:$0xff] 0.0
        %377 = vst [vmem:[#allocation2 + $0x6a8] sm:$0xff] 0.0
        %378 = vst [vmem:[#allocation2 + $0x6b0] sm:$0xff] 0.0
        %379 = vst [vmem:[#allocation2 + $0x6b8] sm:$0xff] 0.0
        %380 = vst [vmem:[#allocation2 + $0x6c0] sm:$0xff] 0.0
        %381 = vst [vmem:[#allocation2 + $0x6c8] sm:$0xff] 0.0
        %382 = vst [vmem:[#allocation2 + $0x6d0] sm:$0xff] 0.0
        %383 = vst [vmem:[#allocation2 + $0x6d8] sm:$0xff] 0.0
        %384 = vst [vmem:[#allocation2 + $0x6e0] sm:$0xff] 0.0
        %385 = vst [vmem:[#allocation2 + $0x6e8] sm:$0xff] 0.0
        %386 = vst [vmem:[#allocation2 + $0x6f0] sm:$0xff] 0.0
        %387 = vst [vmem:[#allocation2 + $0x6f8] sm:$0xff] 0.0
        %388 = vst [vmem:[#allocation2 + $0x700] sm:$0xff] 0.0
        %389 = vst [vmem:[#allocation2 + $0x708] sm:$0xff] 0.0
        %390 = vst [vmem:[#allocation2 + $0x710] sm:$0xff] 0.0
        %391 = vst [vmem:[#allocation2 + $0x718] sm:$0xff] 0.0
        %392 = vst [vmem:[#allocation2 + $0x720] sm:$0xff] 0.0
        %393 = vst [vmem:[#allocation2 + $0x728] sm:$0xff] 0.0
        %394 = vst [vmem:[#allocation2 + $0x730] sm:$0xff] 0.0
        %395 = vst [vmem:[#allocation2 + $0x738] sm:$0xff] 0.0
        %396 = vst [vmem:[#allocation2 + $0x740] sm:$0xff] 0.0
        %397 = vst [vmem:[#allocation2 + $0x748] sm:$0xff] 0.0
        %398 = vst [vmem:[#allocation2 + $0x750] sm:$0xff] 0.0
        %399 = vst [vmem:[#allocation2 + $0x758] sm:$0xff] 0.0
        %400 = vst [vmem:[#allocation2 + $0x760] sm:$0xff] 0.0
        %401 = vst [vmem:[#allocation2 + $0x768] sm:$0xff] 0.0
        %402 = vst [vmem:[#allocation2 + $0x770] sm:$0xff] 0.0
        %403 = vst [vmem:[#allocation2 + $0x778] sm:$0xff] 0.0
        %404 = vst [vmem:[#allocation2 + $0x780] sm:$0xff] 0.0
        %405 = vst [vmem:[#allocation2 + $0x788] sm:$0xff] 0.0
        %406 = vst [vmem:[#allocation2 + $0x790] sm:$0xff] 0.0
        %407 = vst [vmem:[#allocation2 + $0x798] sm:$0xff] 0.0
        %408 = vst [vmem:[#allocation2 + $0x7a0] sm:$0xff] 0.0
        %409 = vst [vmem:[#allocation2 + $0x7a8] sm:$0xff] 0.0
        %410 = vst [vmem:[#allocation2 + $0x7b0] sm:$0xff] 0.0
        %411 = vst [vmem:[#allocation2 + $0x7b8] sm:$0xff] 0.0
        %412 = vst [vmem:[#allocation2 + $0x7c0] sm:$0xff] 0.0
        %413 = vst [vmem:[#allocation2 + $0x7c8] sm:$0xff] 0.0
        %414 = vst [vmem:[#allocation2 + $0x7d0] sm:$0xff] 0.0
        %415 = vst [vmem:[#allocation2 + $0x7d8] sm:$0xff] 0.0
        %416 = vst [vmem:[#allocation2 + $0x7e0] sm:$0xff] 0.0
        %417 = vst [vmem:[#allocation2 + $0x7e8] sm:$0xff] 0.0
        %418 = vst [vmem:[#allocation2 + $0x7f0] sm:$0xff] 0.0
        %419 = vst [vmem:[#allocation2 + $0x7f8] sm:$0xff] 0.0
      $region32: #{tpu_custom_call.1} parent=27 // pred_fallthru
        _
      %v420 = vld [vmem:[%s153] sm:$0xff]
      %v421 = vmul.f32 %v420, 75.0
      %v422 = vld [vmem:[%s1] sm:$0xff]
      %v423 = vld [vmem:[%s1 + $0x8] sm:$0xff]
      %v424 = vld [vmem:[%s1 + $0x10] sm:$0xff]
      %v425 = vld [vmem:[%s1 + $0x18] sm:$0xff]
      %v426 = vld [vmem:[%s1 + $0x20] sm:$0xff]
      %v427 = vld [vmem:[%s1 + $0x28] sm:$0xff]
      %v428 = vld [vmem:[%s1 + $0x30] sm:$0xff]
      %v429 = vld [vmem:[%s1 + $0x38] sm:$0xff]
      %v430 = vld [vmem:[%s1 + $0x40] sm:$0xff]
      %v431 = vld [vmem:[%s1 + $0x48] sm:$0xff]
      %v432 = vld [vmem:[%s1 + $0x50] sm:$0xff]
      %v433 = vld [vmem:[%s1 + $0x58] sm:$0xff]
      %v434 = vld [vmem:[%s1 + $0x60] sm:$0xff]
      %v435 = vld [vmem:[%s1 + $0x68] sm:$0xff]
      %v436 = vld [vmem:[%s1 + $0x70] sm:$0xff]
      %v437 = vld [vmem:[%s1 + $0x78] sm:$0xff]
      %v438 = vld [vmem:[%s1 + $0x80] sm:$0xff]
      %v439 = vld [vmem:[%s1 + $0x88] sm:$0xff]
      %v440 = vld [vmem:[%s1 + $0x90] sm:$0xff]
      %v441 = vld [vmem:[%s1 + $0x98] sm:$0xff]
      %v442 = vld [vmem:[%s1 + $0xa0] sm:$0xff]
      %v443 = vld [vmem:[%s1 + $0xa8] sm:$0xff]
      %v444 = vld [vmem:[%s1 + $0xb0] sm:$0xff]
      %v445 = vld [vmem:[%s1 + $0xb8] sm:$0xff]
      %v446 = vld [vmem:[%s1 + $0xc0] sm:$0xff]
      %v447 = vld [vmem:[%s1 + $0xc8] sm:$0xff]
      %v448 = vld [vmem:[%s1 + $0xd0] sm:$0xff]
      %v449 = vld [vmem:[%s1 + $0xd8] sm:$0xff]
      %v450 = vld [vmem:[%s1 + $0xe0] sm:$0xff]
      %v451 = vld [vmem:[%s1 + $0xe8] sm:$0xff]
      %v452 = vld [vmem:[%s1 + $0xf0] sm:$0xff]
      %v453 = vld [vmem:[%s1 + $0xf8] sm:$0xff]
      %455 = vset.pattern.permute.xlu0 0
      %456 = vperm.xlu0 %455, %v422
      %v457 = vpop.permute.xlu0 %456
      %460 = vset.pattern.permute.xlu0 0
      %461 = vperm.xlu0 %460, %v423
      %v462 = vpop.permute.xlu0 %461
      %465 = vset.pattern.permute.xlu0 0
      %466 = vperm.xlu0 %465, %v424
      %v467 = vpop.permute.xlu0 %466
      %470 = vset.pattern.permute.xlu0 0
      %471 = vperm.xlu0 %470, %v425
      %v472 = vpop.permute.xlu0 %471
      %475 = vset.pattern.permute.xlu0 0
      %476 = vperm.xlu0 %475, %v426
      %v477 = vpop.permute.xlu0 %476
      %480 = vset.pattern.permute.xlu0 0
      %481 = vperm.xlu0 %480, %v427
      %v482 = vpop.permute.xlu0 %481
      %485 = vset.pattern.permute.xlu0 0
      %486 = vperm.xlu0 %485, %v428
      %v487 = vpop.permute.xlu0 %486
      %490 = vset.pattern.permute.xlu0 0
      %491 = vperm.xlu0 %490, %v429
      %v492 = vpop.permute.xlu0 %491
      %495 = vset.pattern.permute.xlu0 0
      %496 = vperm.xlu0 %495, %v430
      %v497 = vpop.permute.xlu0 %496
      %500 = vset.pattern.permute.xlu0 0
      %501 = vperm.xlu0 %500, %v431
      %v502 = vpop.permute.xlu0 %501
      %505 = vset.pattern.permute.xlu0 0
      %506 = vperm.xlu0 %505, %v432
      %v507 = vpop.permute.xlu0 %506
      %510 = vset.pattern.permute.xlu0 0
      %511 = vperm.xlu0 %510, %v433
      %v512 = vpop.permute.xlu0 %511
      %515 = vset.pattern.permute.xlu0 0
      %516 = vperm.xlu0 %515, %v434
      %v517 = vpop.permute.xlu0 %516
      %520 = vset.pattern.permute.xlu0 0
      %521 = vperm.xlu0 %520, %v435
      %v522 = vpop.permute.xlu0 %521
      %525 = vset.pattern.permute.xlu0 0
      %526 = vperm.xlu0 %525, %v436
      %v527 = vpop.permute.xlu0 %526
      %530 = vset.pattern.permute.xlu0 0
      %531 = vperm.xlu0 %530, %v437
      %v532 = vpop.permute.xlu0 %531
      %535 = vset.pattern.permute.xlu0 0
      %536 = vperm.xlu0 %535, %v438
      %v537 = vpop.permute.xlu0 %536
      %540 = vset.pattern.permute.xlu0 0
      %541 = vperm.xlu0 %540, %v439
      %v542 = vpop.permute.xlu0 %541
      %545 = vset.pattern.permute.xlu0 0
      %546 = vperm.xlu0 %545, %v440
      %v547 = vpop.permute.xlu0 %546
      %550 = vset.pattern.permute.xlu0 0
      %551 = vperm.xlu0 %550, %v441
      %v552 = vpop.permute.xlu0 %551
      %555 = vset.pattern.permute.xlu0 0
      %556 = vperm.xlu0 %555, %v442
      %v557 = vpop.permute.xlu0 %556
      %560 = vset.pattern.permute.xlu0 0
      %561 = vperm.xlu0 %560, %v443
      %v562 = vpop.permute.xlu0 %561
      %565 = vset.pattern.permute.xlu0 0
      %566 = vperm.xlu0 %565, %v444
      %v567 = vpop.permute.xlu0 %566
      %570 = vset.pattern.permute.xlu0 0
      %571 = vperm.xlu0 %570, %v445
      %v572 = vpop.permute.xlu0 %571
      %575 = vset.pattern.permute.xlu0 0
      %576 = vperm.xlu0 %575, %v446
      %v577 = vpop.permute.xlu0 %576
      %580 = vset.pattern.permute.xlu0 0
      %581 = vperm.xlu0 %580, %v447
      %v582 = vpop.permute.xlu0 %581
      %585 = vset.pattern.permute.xlu0 0
      %586 = vperm.xlu0 %585, %v448
      %v587 = vpop.permute.xlu0 %586
      %590 = vset.pattern.permute.xlu0 0
      %591 = vperm.xlu0 %590, %v449
      %v592 = vpop.permute.xlu0 %591
      %595 = vset.pattern.permute.xlu0 0
      %596 = vperm.xlu0 %595, %v450
      %v597 = vpop.permute.xlu0 %596
      %600 = vset.pattern.permute.xlu0 0
      %601 = vperm.xlu0 %600, %v451
      %v602 = vpop.permute.xlu0 %601
      %605 = vset.pattern.permute.xlu0 0
      %606 = vperm.xlu0 %605, %v452
      %v607 = vpop.permute.xlu0 %606
      %610 = vset.pattern.permute.xlu0 0
      %611 = vperm.xlu0 %610, %v453
      %v612 = vpop.permute.xlu0 %611
      %v615 = vlaneseq
      %v616 = vshrl.u32 %v615, 7
      %v617 = vsub.s32 0, %v616
      %v618 = vrot.slane %v421, %v617
      %v619 = vlaneseq
      %v620 = vshrl.u32 %v619, 7
      %v621 = vsub.s32 1, %v620
      %v622 = vrot.slane %v421, %v621
      %v623 = vlaneseq
      %v624 = vshrl.u32 %v623, 7
      %v625 = vsub.s32 2, %v624
      %v626 = vrot.slane %v421, %v625
      %v627 = vlaneseq
      %v628 = vshrl.u32 %v627, 7
      %v629 = vsub.s32 3, %v628
      %v630 = vrot.slane %v421, %v629
      %v631 = vlaneseq
      %v632 = vshrl.u32 %v631, 7
      %v633 = vsub.s32 4, %v632
      %v634 = vrot.slane %v421, %v633
      %v635 = vlaneseq
      %v636 = vshrl.u32 %v635, 7
      %v637 = vsub.s32 5, %v636
      %v638 = vrot.slane %v421, %v637
      %v639 = vlaneseq
      %v640 = vshrl.u32 %v639, 7
      %v641 = vsub.s32 6, %v640
      %v642 = vrot.slane %v421, %v641
      %v643 = vlaneseq
      %v644 = vshrl.u32 %v643, 7
      %v645 = vsub.s32 7, %v644
      %v646 = vrot.slane %v421, %v645
      %v655 = vsub.f32 %v457, %v618
      %v656 = vsub.f32 %v457, %v622
      %v657 = vsub.f32 %v457, %v626
      %v658 = vsub.f32 %v457, %v630
      %v659 = vsub.f32 %v457, %v634
      %v660 = vsub.f32 %v457, %v638
      %v661 = vsub.f32 %v457, %v642
      %v662 = vsub.f32 %v457, %v646
      %v663 = vsub.f32 %v462, %v618
      %v664 = vsub.f32 %v462, %v622
      %v665 = vsub.f32 %v462, %v626
      %v666 = vsub.f32 %v462, %v630
      %v667 = vsub.f32 %v462, %v634
      %v668 = vsub.f32 %v462, %v638
      %v669 = vsub.f32 %v462, %v642
      %v670 = vsub.f32 %v462, %v646
      %v671 = vsub.f32 %v467, %v618
      %v672 = vsub.f32 %v467, %v622
      %v673 = vsub.f32 %v467, %v626
      %v674 = vsub.f32 %v467, %v630
      %v675 = vsub.f32 %v467, %v634
      %v676 = vsub.f32 %v467, %v638
      %v677 = vsub.f32 %v467, %v642
      %v678 = vsub.f32 %v467, %v646
      %v679 = vsub.f32 %v472, %v618
      %v680 = vsub.f32 %v472, %v622
      %v681 = vsub.f32 %v472, %v626
      %v682 = vsub.f32 %v472, %v630
      %v683 = vsub.f32 %v472, %v634
      %v684 = vsub.f32 %v472, %v638
      %v685 = vsub.f32 %v472, %v642
      %v686 = vsub.f32 %v472, %v646
      %v687 = vsub.f32 %v477, %v618
      %v688 = vsub.f32 %v477, %v622
      %v689 = vsub.f32 %v477, %v626
      %v690 = vsub.f32 %v477, %v630
      %v691 = vsub.f32 %v477, %v634
      %v692 = vsub.f32 %v477, %v638
      %v693 = vsub.f32 %v477, %v642
      %v694 = vsub.f32 %v477, %v646
      %v695 = vsub.f32 %v482, %v618
      %v696 = vsub.f32 %v482, %v622
      %v697 = vsub.f32 %v482, %v626
      %v698 = vsub.f32 %v482, %v630
      %v699 = vsub.f32 %v482, %v634
      %v700 = vsub.f32 %v482, %v638
      %v701 = vsub.f32 %v482, %v642
      %v702 = vsub.f32 %v482, %v646
      %v703 = vsub.f32 %v487, %v618
      %v704 = vsub.f32 %v487, %v622
      %v705 = vsub.f32 %v487, %v626
      %v706 = vsub.f32 %v487, %v630
      %v707 = vsub.f32 %v487, %v634
      %v708 = vsub.f32 %v487, %v638
      %v709 = vsub.f32 %v487, %v642
      %v710 = vsub.f32 %v487, %v646
      %v711 = vsub.f32 %v492, %v618
      %v712 = vsub.f32 %v492, %v622
      %v713 = vsub.f32 %v492, %v626
      %v714 = vsub.f32 %v492, %v630
      %v715 = vsub.f32 %v492, %v634
      %v716 = vsub.f32 %v492, %v638
      %v717 = vsub.f32 %v492, %v642
      %v718 = vsub.f32 %v492, %v646
      %v719 = vsub.f32 %v497, %v618
      %v720 = vsub.f32 %v497, %v622
      %v721 = vsub.f32 %v497, %v626
      %v722 = vsub.f32 %v497, %v630
      %v723 = vsub.f32 %v497, %v634
      %v724 = vsub.f32 %v497, %v638
      %v725 = vsub.f32 %v497, %v642
      %v726 = vsub.f32 %v497, %v646
      %v727 = vsub.f32 %v502, %v618
      %v728 = vsub.f32 %v502, %v622
      %v729 = vsub.f32 %v502, %v626
      %v730 = vsub.f32 %v502, %v630
      %v731 = vsub.f32 %v502, %v634
      %v732 = vsub.f32 %v502, %v638
      %v733 = vsub.f32 %v502, %v642
      %v734 = vsub.f32 %v502, %v646
      %v735 = vsub.f32 %v507, %v618
      %v736 = vsub.f32 %v507, %v622
      %v737 = vsub.f32 %v507, %v626
      %v738 = vsub.f32 %v507, %v630
      %v739 = vsub.f32 %v507, %v634
      %v740 = vsub.f32 %v507, %v638
      %v741 = vsub.f32 %v507, %v642
      %v742 = vsub.f32 %v507, %v646
      %v743 = vsub.f32 %v512, %v618
      %v744 = vsub.f32 %v512, %v622
      %v745 = vsub.f32 %v512, %v626
      %v746 = vsub.f32 %v512, %v630
      %v747 = vsub.f32 %v512, %v634
      %v748 = vsub.f32 %v512, %v638
      %v749 = vsub.f32 %v512, %v642
      %v750 = vsub.f32 %v512, %v646
      %v751 = vsub.f32 %v517, %v618
      %v752 = vsub.f32 %v517, %v622
      %v753 = vsub.f32 %v517, %v626
      %v754 = vsub.f32 %v517, %v630
      %v755 = vsub.f32 %v517, %v634
      %v756 = vsub.f32 %v517, %v638
      %v757 = vsub.f32 %v517, %v642
      %v758 = vsub.f32 %v517, %v646
      %v759 = vsub.f32 %v522, %v618
      %v760 = vsub.f32 %v522, %v622
      %v761 = vsub.f32 %v522, %v626
      %v762 = vsub.f32 %v522, %v630
      %v763 = vsub.f32 %v522, %v634
      %v764 = vsub.f32 %v522, %v638
      %v765 = vsub.f32 %v522, %v642
      %v766 = vsub.f32 %v522, %v646
      %v767 = vsub.f32 %v527, %v618
      %v768 = vsub.f32 %v527, %v622
      %v769 = vsub.f32 %v527, %v626
      %v770 = vsub.f32 %v527, %v630
      %v771 = vsub.f32 %v527, %v634
      %v772 = vsub.f32 %v527, %v638
      %v773 = vsub.f32 %v527, %v642
      %v774 = vsub.f32 %v527, %v646
      %v775 = vsub.f32 %v532, %v618
      %v776 = vsub.f32 %v532, %v622
      %v777 = vsub.f32 %v532, %v626
      %v778 = vsub.f32 %v532, %v630
      %v779 = vsub.f32 %v532, %v634
      %v780 = vsub.f32 %v532, %v638
      %v781 = vsub.f32 %v532, %v642
      %v782 = vsub.f32 %v532, %v646
      %v783 = vsub.f32 %v537, %v618
      %v784 = vsub.f32 %v537, %v622
      %v785 = vsub.f32 %v537, %v626
      %v786 = vsub.f32 %v537, %v630
      %v787 = vsub.f32 %v537, %v634
      %v788 = vsub.f32 %v537, %v638
      %v789 = vsub.f32 %v537, %v642
      %v790 = vsub.f32 %v537, %v646
      %v791 = vsub.f32 %v542, %v618
      %v792 = vsub.f32 %v542, %v622
      %v793 = vsub.f32 %v542, %v626
      %v794 = vsub.f32 %v542, %v630
      %v795 = vsub.f32 %v542, %v634
      %v796 = vsub.f32 %v542, %v638
      %v797 = vsub.f32 %v542, %v642
      %v798 = vsub.f32 %v542, %v646
      %v799 = vsub.f32 %v547, %v618
      %v800 = vsub.f32 %v547, %v622
      %v801 = vsub.f32 %v547, %v626
      %v802 = vsub.f32 %v547, %v630
      %v803 = vsub.f32 %v547, %v634
      %v804 = vsub.f32 %v547, %v638
      %v805 = vsub.f32 %v547, %v642
      %v806 = vsub.f32 %v547, %v646
      %v807 = vsub.f32 %v552, %v618
      %v808 = vsub.f32 %v552, %v622
      %v809 = vsub.f32 %v552, %v626
      %v810 = vsub.f32 %v552, %v630
      %v811 = vsub.f32 %v552, %v634
      %v812 = vsub.f32 %v552, %v638
      %v813 = vsub.f32 %v552, %v642
      %v814 = vsub.f32 %v552, %v646
      %v815 = vsub.f32 %v557, %v618
      %v816 = vsub.f32 %v557, %v622
      %v817 = vsub.f32 %v557, %v626
      %v818 = vsub.f32 %v557, %v630
      %v819 = vsub.f32 %v557, %v634
      %v820 = vsub.f32 %v557, %v638
      %v821 = vsub.f32 %v557, %v642
      %v822 = vsub.f32 %v557, %v646
      %v823 = vsub.f32 %v562, %v618
      %v824 = vsub.f32 %v562, %v622
      %v825 = vsub.f32 %v562, %v626
      %v826 = vsub.f32 %v562, %v630
      %v827 = vsub.f32 %v562, %v634
      %v828 = vsub.f32 %v562, %v638
      %v829 = vsub.f32 %v562, %v642
      %v830 = vsub.f32 %v562, %v646
      %v831 = vsub.f32 %v567, %v618
      %v832 = vsub.f32 %v567, %v622
      %v833 = vsub.f32 %v567, %v626
      %v834 = vsub.f32 %v567, %v630
      %v835 = vsub.f32 %v567, %v634
      %v836 = vsub.f32 %v567, %v638
      %v837 = vsub.f32 %v567, %v642
      %v838 = vsub.f32 %v567, %v646
      %v839 = vsub.f32 %v572, %v618
      %v840 = vsub.f32 %v572, %v622
      %v841 = vsub.f32 %v572, %v626
      %v842 = vsub.f32 %v572, %v630
      %v843 = vsub.f32 %v572, %v634
      %v844 = vsub.f32 %v572, %v638
      %v845 = vsub.f32 %v572, %v642
      %v846 = vsub.f32 %v572, %v646
      %v847 = vsub.f32 %v577, %v618
      %v848 = vsub.f32 %v577, %v622
      %v849 = vsub.f32 %v577, %v626
      %v850 = vsub.f32 %v577, %v630
      %v851 = vsub.f32 %v577, %v634
      %v852 = vsub.f32 %v577, %v638
      %v853 = vsub.f32 %v577, %v642
      %v854 = vsub.f32 %v577, %v646
      %v855 = vsub.f32 %v582, %v618
      %v856 = vsub.f32 %v582, %v622
      %v857 = vsub.f32 %v582, %v626
      %v858 = vsub.f32 %v582, %v630
      %v859 = vsub.f32 %v582, %v634
      %v860 = vsub.f32 %v582, %v638
      %v861 = vsub.f32 %v582, %v642
      %v862 = vsub.f32 %v582, %v646
      %v863 = vsub.f32 %v587, %v618
      %v864 = vsub.f32 %v587, %v622
      %v865 = vsub.f32 %v587, %v626
      %v866 = vsub.f32 %v587, %v630
      %v867 = vsub.f32 %v587, %v634
      %v868 = vsub.f32 %v587, %v638
      %v869 = vsub.f32 %v587, %v642
      %v870 = vsub.f32 %v587, %v646
      %v871 = vsub.f32 %v592, %v618
      %v872 = vsub.f32 %v592, %v622
      %v873 = vsub.f32 %v592, %v626
      %v874 = vsub.f32 %v592, %v630
      %v875 = vsub.f32 %v592, %v634
      %v876 = vsub.f32 %v592, %v638
      %v877 = vsub.f32 %v592, %v642
      %v878 = vsub.f32 %v592, %v646
      %v879 = vsub.f32 %v597, %v618
      %v880 = vsub.f32 %v597, %v622
      %v881 = vsub.f32 %v597, %v626
      %v882 = vsub.f32 %v597, %v630
      %v883 = vsub.f32 %v597, %v634
      %v884 = vsub.f32 %v597, %v638
      %v885 = vsub.f32 %v597, %v642
      %v886 = vsub.f32 %v597, %v646
      %v887 = vsub.f32 %v602, %v618
      %v888 = vsub.f32 %v602, %v622
      %v889 = vsub.f32 %v602, %v626
      %v890 = vsub.f32 %v602, %v630
      %v891 = vsub.f32 %v602, %v634
      %v892 = vsub.f32 %v602, %v638
      %v893 = vsub.f32 %v602, %v642
      %v894 = vsub.f32 %v602, %v646
      %v895 = vsub.f32 %v607, %v618
      %v896 = vsub.f32 %v607, %v622
      %v897 = vsub.f32 %v607, %v626
      %v898 = vsub.f32 %v607, %v630
      %v899 = vsub.f32 %v607, %v634
      %v900 = vsub.f32 %v607, %v638
      %v901 = vsub.f32 %v607, %v642
      %v902 = vsub.f32 %v607, %v646
      %v903 = vsub.f32 %v612, %v618
      %v904 = vsub.f32 %v612, %v622
      %v905 = vsub.f32 %v612, %v626
      %v906 = vsub.f32 %v612, %v630
      %v907 = vsub.f32 %v612, %v634
      %v908 = vsub.f32 %v612, %v638
      %v909 = vsub.f32 %v612, %v642
      %v910 = vsub.f32 %v612, %v646
      %v911 = vmin.f32 %v655, 40.0
      %v912 = vmin.f32 %v656, 40.0
      %v913 = vmin.f32 %v657, 40.0
      %v914 = vmin.f32 %v658, 40.0
      %v915 = vmin.f32 %v659, 40.0
      %v916 = vmin.f32 %v660, 40.0
      %v917 = vmin.f32 %v661, 40.0
      %v918 = vmin.f32 %v662, 40.0
      %v919 = vmin.f32 %v663, 40.0
      %v920 = vmin.f32 %v664, 40.0
      %v921 = vmin.f32 %v665, 40.0
      %v922 = vmin.f32 %v666, 40.0
      %v923 = vmin.f32 %v667, 40.0
      %v924 = vmin.f32 %v668, 40.0
      %v925 = vmin.f32 %v669, 40.0
      %v926 = vmin.f32 %v670, 40.0
      %v927 = vmin.f32 %v671, 40.0
      %v928 = vmin.f32 %v672, 40.0
      %v929 = vmin.f32 %v673, 40.0
      %v930 = vmin.f32 %v674, 40.0
      %v931 = vmin.f32 %v675, 40.0
      %v932 = vmin.f32 %v676, 40.0
      %v933 = vmin.f32 %v677, 40.0
      %v934 = vmin.f32 %v678, 40.0
      %v935 = vmin.f32 %v679, 40.0
      %v936 = vmin.f32 %v680, 40.0
      %v937 = vmin.f32 %v681, 40.0
      %v938 = vmin.f32 %v682, 40.0
      %v939 = vmin.f32 %v683, 40.0
      %v940 = vmin.f32 %v684, 40.0
      %v941 = vmin.f32 %v685, 40.0
      %v942 = vmin.f32 %v686, 40.0
      %v943 = vmin.f32 %v687, 40.0
      %v944 = vmin.f32 %v688, 40.0
      %v945 = vmin.f32 %v689, 40.0
      %v946 = vmin.f32 %v690, 40.0
      %v947 = vmin.f32 %v691, 40.0
      %v948 = vmin.f32 %v692, 40.0
      %v949 = vmin.f32 %v693, 40.0
      %v950 = vmin.f32 %v694, 40.0
      %v951 = vmin.f32 %v695, 40.0
      %v952 = vmin.f32 %v696, 40.0
      %v953 = vmin.f32 %v697, 40.0
      %v954 = vmin.f32 %v698, 40.0
      %v955 = vmin.f32 %v699, 40.0
      %v956 = vmin.f32 %v700, 40.0
      %v957 = vmin.f32 %v701, 40.0
      %v958 = vmin.f32 %v702, 40.0
      %v959 = vmin.f32 %v703, 40.0
      %v960 = vmin.f32 %v704, 40.0
      %v961 = vmin.f32 %v705, 40.0
      %v962 = vmin.f32 %v706, 40.0
      %v963 = vmin.f32 %v707, 40.0
      %v964 = vmin.f32 %v708, 40.0
      %v965 = vmin.f32 %v709, 40.0
      %v966 = vmin.f32 %v710, 40.0
      %v967 = vmin.f32 %v711, 40.0
      %v968 = vmin.f32 %v712, 40.0
      %v969 = vmin.f32 %v713, 40.0
      %v970 = vmin.f32 %v714, 40.0
      %v971 = vmin.f32 %v715, 40.0
      %v972 = vmin.f32 %v716, 40.0
      %v973 = vmin.f32 %v717, 40.0
      %v974 = vmin.f32 %v718, 40.0
      %v975 = vmin.f32 %v719, 40.0
      %v976 = vmin.f32 %v720, 40.0
      %v977 = vmin.f32 %v721, 40.0
      %v978 = vmin.f32 %v722, 40.0
      %v979 = vmin.f32 %v723, 40.0
      %v980 = vmin.f32 %v724, 40.0
      %v981 = vmin.f32 %v725, 40.0
      %v982 = vmin.f32 %v726, 40.0
      %v983 = vmin.f32 %v727, 40.0
      %v984 = vmin.f32 %v728, 40.0
      %v985 = vmin.f32 %v729, 40.0
      %v986 = vmin.f32 %v730, 40.0
      %v987 = vmin.f32 %v731, 40.0
      %v988 = vmin.f32 %v732, 40.0
      %v989 = vmin.f32 %v733, 40.0
      %v990 = vmin.f32 %v734, 40.0
      %v991 = vmin.f32 %v735, 40.0
      %v992 = vmin.f32 %v736, 40.0
      %v993 = vmin.f32 %v737, 40.0
      %v994 = vmin.f32 %v738, 40.0
      %v995 = vmin.f32 %v739, 40.0
      %v996 = vmin.f32 %v740, 40.0
      %v997 = vmin.f32 %v741, 40.0
      %v998 = vmin.f32 %v742, 40.0
      %v999 = vmin.f32 %v743, 40.0
      %v1000 = vmin.f32 %v744, 40.0
      %v1001 = vmin.f32 %v745, 40.0
      %v1002 = vmin.f32 %v746, 40.0
      %v1003 = vmin.f32 %v747, 40.0
      %v1004 = vmin.f32 %v748, 40.0
      %v1005 = vmin.f32 %v749, 40.0
      %v1006 = vmin.f32 %v750, 40.0
      %v1007 = vmin.f32 %v751, 40.0
      %v1008 = vmin.f32 %v752, 40.0
      %v1009 = vmin.f32 %v753, 40.0
      %v1010 = vmin.f32 %v754, 40.0
      %v1011 = vmin.f32 %v755, 40.0
      %v1012 = vmin.f32 %v756, 40.0
      %v1013 = vmin.f32 %v757, 40.0
      %v1014 = vmin.f32 %v758, 40.0
      %v1015 = vmin.f32 %v759, 40.0
      %v1016 = vmin.f32 %v760, 40.0
      %v1017 = vmin.f32 %v761, 40.0
      %v1018 = vmin.f32 %v762, 40.0
      %v1019 = vmin.f32 %v763, 40.0
      %v1020 = vmin.f32 %v764, 40.0
      %v1021 = vmin.f32 %v765, 40.0
      %v1022 = vmin.f32 %v766, 40.0
      %v1023 = vmin.f32 %v767, 40.0
      %v1024 = vmin.f32 %v768, 40.0
      %v1025 = vmin.f32 %v769, 40.0
      %v1026 = vmin.f32 %v770, 40.0
      %v1027 = vmin.f32 %v771, 40.0
      %v1028 = vmin.f32 %v772, 40.0
      %v1029 = vmin.f32 %v773, 40.0
      %v1030 = vmin.f32 %v774, 40.0
      %v1031 = vmin.f32 %v775, 40.0
      %v1032 = vmin.f32 %v776, 40.0
      %v1033 = vmin.f32 %v777, 40.0
      %v1034 = vmin.f32 %v778, 40.0
      %v1035 = vmin.f32 %v779, 40.0
      %v1036 = vmin.f32 %v780, 40.0
      %v1037 = vmin.f32 %v781, 40.0
      %v1038 = vmin.f32 %v782, 40.0
      %v1039 = vmin.f32 %v783, 40.0
      %v1040 = vmin.f32 %v784, 40.0
      %v1041 = vmin.f32 %v785, 40.0
      %v1042 = vmin.f32 %v786, 40.0
      %v1043 = vmin.f32 %v787, 40.0
      %v1044 = vmin.f32 %v788, 40.0
      %v1045 = vmin.f32 %v789, 40.0
      %v1046 = vmin.f32 %v790, 40.0
      %v1047 = vmin.f32 %v791, 40.0
      %v1048 = vmin.f32 %v792, 40.0
      %v1049 = vmin.f32 %v793, 40.0
      %v1050 = vmin.f32 %v794, 40.0
      %v1051 = vmin.f32 %v795, 40.0
      %v1052 = vmin.f32 %v796, 40.0
      %v1053 = vmin.f32 %v797, 40.0
      %v1054 = vmin.f32 %v798, 40.0
      %v1055 = vmin.f32 %v799, 40.0
      %v1056 = vmin.f32 %v800, 40.0
      %v1057 = vmin.f32 %v801, 40.0
      %v1058 = vmin.f32 %v802, 40.0
      %v1059 = vmin.f32 %v803, 40.0
      %v1060 = vmin.f32 %v804, 40.0
      %v1061 = vmin.f32 %v805, 40.0
      %v1062 = vmin.f32 %v806, 40.0
      %v1063 = vmin.f32 %v807, 40.0
      %v1064 = vmin.f32 %v808, 40.0
      %v1065 = vmin.f32 %v809, 40.0
      %v1066 = vmin.f32 %v810, 40.0
      %v1067 = vmin.f32 %v811, 40.0
      %v1068 = vmin.f32 %v812, 40.0
      %v1069 = vmin.f32 %v813, 40.0
      %v1070 = vmin.f32 %v814, 40.0
      %v1071 = vmin.f32 %v815, 40.0
      %v1072 = vmin.f32 %v816, 40.0
      %v1073 = vmin.f32 %v817, 40.0
      %v1074 = vmin.f32 %v818, 40.0
      %v1075 = vmin.f32 %v819, 40.0
      %v1076 = vmin.f32 %v820, 40.0
      %v1077 = vmin.f32 %v821, 40.0
      %v1078 = vmin.f32 %v822, 40.0
      %v1079 = vmin.f32 %v823, 40.0
      %v1080 = vmin.f32 %v824, 40.0
      %v1081 = vmin.f32 %v825, 40.0
      %v1082 = vmin.f32 %v826, 40.0
      %v1083 = vmin.f32 %v827, 40.0
      %v1084 = vmin.f32 %v828, 40.0
      %v1085 = vmin.f32 %v829, 40.0
      %v1086 = vmin.f32 %v830, 40.0
      %v1087 = vmin.f32 %v831, 40.0
      %v1088 = vmin.f32 %v832, 40.0
      %v1089 = vmin.f32 %v833, 40.0
      %v1090 = vmin.f32 %v834, 40.0
      %v1091 = vmin.f32 %v835, 40.0
      %v1092 = vmin.f32 %v836, 40.0
      %v1093 = vmin.f32 %v837, 40.0
      %v1094 = vmin.f32 %v838, 40.0
      %v1095 = vmin.f32 %v839, 40.0
      %v1096 = vmin.f32 %v840, 40.0
      %v1097 = vmin.f32 %v841, 40.0
      %v1098 = vmin.f32 %v842, 40.0
      %v1099 = vmin.f32 %v843, 40.0
      %v1100 = vmin.f32 %v844, 40.0
      %v1101 = vmin.f32 %v845, 40.0
      %v1102 = vmin.f32 %v846, 40.0
      %v1103 = vmin.f32 %v847, 40.0
      %v1104 = vmin.f32 %v848, 40.0
      %v1105 = vmin.f32 %v849, 40.0
      %v1106 = vmin.f32 %v850, 40.0
      %v1107 = vmin.f32 %v851, 40.0
      %v1108 = vmin.f32 %v852, 40.0
      %v1109 = vmin.f32 %v853, 40.0
      %v1110 = vmin.f32 %v854, 40.0
      %v1111 = vmin.f32 %v855, 40.0
      %v1112 = vmin.f32 %v856, 40.0
      %v1113 = vmin.f32 %v857, 40.0
      %v1114 = vmin.f32 %v858, 40.0
      %v1115 = vmin.f32 %v859, 40.0
      %v1116 = vmin.f32 %v860, 40.0
      %v1117 = vmin.f32 %v861, 40.0
      %v1118 = vmin.f32 %v862, 40.0
      %v1119 = vmin.f32 %v863, 40.0
      %v1120 = vmin.f32 %v864, 40.0
      %v1121 = vmin.f32 %v865, 40.0
      %v1122 = vmin.f32 %v866, 40.0
      %v1123 = vmin.f32 %v867, 40.0
      %v1124 = vmin.f32 %v868, 40.0
      %v1125 = vmin.f32 %v869, 40.0
      %v1126 = vmin.f32 %v870, 40.0
      %v1127 = vmin.f32 %v871, 40.0
      %v1128 = vmin.f32 %v872, 40.0
      %v1129 = vmin.f32 %v873, 40.0
      %v1130 = vmin.f32 %v874, 40.0
      %v1131 = vmin.f32 %v875, 40.0
      %v1132 = vmin.f32 %v876, 40.0
      %v1133 = vmin.f32 %v877, 40.0
      %v1134 = vmin.f32 %v878, 40.0
      %v1135 = vmin.f32 %v879, 40.0
      %v1136 = vmin.f32 %v880, 40.0
      %v1137 = vmin.f32 %v881, 40.0
      %v1138 = vmin.f32 %v882, 40.0
      %v1139 = vmin.f32 %v883, 40.0
      %v1140 = vmin.f32 %v884, 40.0
      %v1141 = vmin.f32 %v885, 40.0
      %v1142 = vmin.f32 %v886, 40.0
      %v1143 = vmin.f32 %v887, 40.0
      %v1144 = vmin.f32 %v888, 40.0
      %v1145 = vmin.f32 %v889, 40.0
      %v1146 = vmin.f32 %v890, 40.0
      %v1147 = vmin.f32 %v891, 40.0
      %v1148 = vmin.f32 %v892, 40.0
      %v1149 = vmin.f32 %v893, 40.0
      %v1150 = vmin.f32 %v894, 40.0
      %v1151 = vmin.f32 %v895, 40.0
      %v1152 = vmin.f32 %v896, 40.0
      %v1153 = vmin.f32 %v897, 40.0
      %v1154 = vmin.f32 %v898, 40.0
      %v1155 = vmin.f32 %v899, 40.0
      %v1156 = vmin.f32 %v900, 40.0
      %v1157 = vmin.f32 %v901, 40.0
      %v1158 = vmin.f32 %v902, 40.0
      %v1159 = vmin.f32 %v903, 40.0
      %v1160 = vmin.f32 %v904, 40.0
      %v1161 = vmin.f32 %v905, 40.0
      %v1162 = vmin.f32 %v906, 40.0
      %v1163 = vmin.f32 %v907, 40.0
      %v1164 = vmin.f32 %v908, 40.0
      %v1165 = vmin.f32 %v909, 40.0
      %v1166 = vmin.f32 %v910, 40.0
      %v1167 = vmul.f32 %v911, 1.442695
      %v1168 = vpow.pop %v1167
      %v1169 = vmul.f32 %v912, 1.442695
      %v1170 = vpow.pop %v1169
      %v1171 = vmul.f32 %v913, 1.442695
      %v1172 = vpow.pop %v1171
      %v1173 = vmul.f32 %v914, 1.442695
      %v1174 = vpow.pop %v1173
      %v1175 = vmul.f32 %v915, 1.442695
      %v1176 = vpow.pop %v1175
      %v1177 = vmul.f32 %v916, 1.442695
      %v1178 = vpow.pop %v1177
      %v1179 = vmul.f32 %v917, 1.442695
      %v1180 = vpow.pop %v1179
      %v1181 = vmul.f32 %v918, 1.442695
      %v1182 = vpow.pop %v1181
      %v1183 = vmul.f32 %v919, 1.442695
      %v1184 = vpow.pop %v1183
      %v1185 = vmul.f32 %v920, 1.442695
      %v1186 = vpow.pop %v1185
      %v1187 = vmul.f32 %v921, 1.442695
      %v1188 = vpow.pop %v1187
      %v1189 = vmul.f32 %v922, 1.442695
      %v1190 = vpow.pop %v1189
      %v1191 = vmul.f32 %v923, 1.442695
      %v1192 = vpow.pop %v1191
      %v1193 = vmul.f32 %v924, 1.442695
      %v1194 = vpow.pop %v1193
      %v1195 = vmul.f32 %v925, 1.442695
      %v1196 = vpow.pop %v1195
      %v1197 = vmul.f32 %v926, 1.442695
      %v1198 = vpow.pop %v1197
      %v1199 = vmul.f32 %v927, 1.442695
      %v1200 = vpow.pop %v1199
      %v1201 = vmul.f32 %v928, 1.442695
      %v1202 = vpow.pop %v1201
      %v1203 = vmul.f32 %v929, 1.442695
      %v1204 = vpow.pop %v1203
      %v1205 = vmul.f32 %v930, 1.442695
      %v1206 = vpow.pop %v1205
      %v1207 = vmul.f32 %v931, 1.442695
      %v1208 = vpow.pop %v1207
      %v1209 = vmul.f32 %v932, 1.442695
      %v1210 = vpow.pop %v1209
      %v1211 = vmul.f32 %v933, 1.442695
      %v1212 = vpow.pop %v1211
      %v1213 = vmul.f32 %v934, 1.442695
      %v1214 = vpow.pop %v1213
      %v1215 = vmul.f32 %v935, 1.442695
      %v1216 = vpow.pop %v1215
      %v1217 = vmul.f32 %v936, 1.442695
      %v1218 = vpow.pop %v1217
      %v1219 = vmul.f32 %v937, 1.442695
      %v1220 = vpow.pop %v1219
      %v1221 = vmul.f32 %v938, 1.442695
      %v1222 = vpow.pop %v1221
      %v1223 = vmul.f32 %v939, 1.442695
      %v1224 = vpow.pop %v1223
      %v1225 = vmul.f32 %v940, 1.442695
      %v1226 = vpow.pop %v1225
      %v1227 = vmul.f32 %v941, 1.442695
      %v1228 = vpow.pop %v1227
      %v1229 = vmul.f32 %v942, 1.442695
      %v1230 = vpow.pop %v1229
      %v1231 = vmul.f32 %v943, 1.442695
      %v1232 = vpow.pop %v1231
      %v1233 = vmul.f32 %v944, 1.442695
      %v1234 = vpow.pop %v1233
      %v1235 = vmul.f32 %v945, 1.442695
      %v1236 = vpow.pop %v1235
      %v1237 = vmul.f32 %v946, 1.442695
      %v1238 = vpow.pop %v1237
      %v1239 = vmul.f32 %v947, 1.442695
      %v1240 = vpow.pop %v1239
      %v1241 = vmul.f32 %v948, 1.442695
      %v1242 = vpow.pop %v1241
      %v1243 = vmul.f32 %v949, 1.442695
      %v1244 = vpow.pop %v1243
      %v1245 = vmul.f32 %v950, 1.442695
      %v1246 = vpow.pop %v1245
      %v1247 = vmul.f32 %v951, 1.442695
      %v1248 = vpow.pop %v1247
      %v1249 = vmul.f32 %v952, 1.442695
      %v1250 = vpow.pop %v1249
      %v1251 = vmul.f32 %v953, 1.442695
      %v1252 = vpow.pop %v1251
      %v1253 = vmul.f32 %v954, 1.442695
      %v1254 = vpow.pop %v1253
      %v1255 = vmul.f32 %v955, 1.442695
      %v1256 = vpow.pop %v1255
      %v1257 = vmul.f32 %v956, 1.442695
      %v1258 = vpow.pop %v1257
      %v1259 = vmul.f32 %v957, 1.442695
      %v1260 = vpow.pop %v1259
      %v1261 = vmul.f32 %v958, 1.442695
      %v1262 = vpow.pop %v1261
      %v1263 = vmul.f32 %v959, 1.442695
      %v1264 = vpow.pop %v1263
      %v1265 = vmul.f32 %v960, 1.442695
      %v1266 = vpow.pop %v1265
      %v1267 = vmul.f32 %v961, 1.442695
      %v1268 = vpow.pop %v1267
      %v1269 = vmul.f32 %v962, 1.442695
      %v1270 = vpow.pop %v1269
      %v1271 = vmul.f32 %v963, 1.442695
      %v1272 = vpow.pop %v1271
      %v1273 = vmul.f32 %v964, 1.442695
      %v1274 = vpow.pop %v1273
      %v1275 = vmul.f32 %v965, 1.442695
      %v1276 = vpow.pop %v1275
      %v1277 = vmul.f32 %v966, 1.442695
      %v1278 = vpow.pop %v1277
      %v1279 = vmul.f32 %v967, 1.442695
      %v1280 = vpow.pop %v1279
      %v1281 = vmul.f32 %v968, 1.442695
      %v1282 = vpow.pop %v1281
      %v1283 = vmul.f32 %v969, 1.442695
      %v1284 = vpow.pop %v1283
      %v1285 = vmul.f32 %v970, 1.442695
      %v1286 = vpow.pop %v1285
      %v1287 = vmul.f32 %v971, 1.442695
      %v1288 = vpow.pop %v1287
      %v1289 = vmul.f32 %v972, 1.442695
      %v1290 = vpow.pop %v1289
      %v1291 = vmul.f32 %v973, 1.442695
      %v1292 = vpow.pop %v1291
      %v1293 = vmul.f32 %v974, 1.442695
      %v1294 = vpow.pop %v1293
      %v1295 = vmul.f32 %v975, 1.442695
      %v1296 = vpow.pop %v1295
      %v1297 = vmul.f32 %v976, 1.442695
      %v1298 = vpow.pop %v1297
      %v1299 = vmul.f32 %v977, 1.442695
      %v1300 = vpow.pop %v1299
      %v1301 = vmul.f32 %v978, 1.442695
      %v1302 = vpow.pop %v1301
      %v1303 = vmul.f32 %v979, 1.442695
      %v1304 = vpow.pop %v1303
      %v1305 = vmul.f32 %v980, 1.442695
      %v1306 = vpow.pop %v1305
      %v1307 = vmul.f32 %v981, 1.442695
      %v1308 = vpow.pop %v1307
      %v1309 = vmul.f32 %v982, 1.442695
      %v1310 = vpow.pop %v1309
      %v1311 = vmul.f32 %v983, 1.442695
      %v1312 = vpow.pop %v1311
      %v1313 = vmul.f32 %v984, 1.442695
      %v1314 = vpow.pop %v1313
      %v1315 = vmul.f32 %v985, 1.442695
      %v1316 = vpow.pop %v1315
      %v1317 = vmul.f32 %v986, 1.442695
      %v1318 = vpow.pop %v1317
      %v1319 = vmul.f32 %v987, 1.442695
      %v1320 = vpow.pop %v1319
      %v1321 = vmul.f32 %v988, 1.442695
      %v1322 = vpow.pop %v1321
      %v1323 = vmul.f32 %v989, 1.442695
      %v1324 = vpow.pop %v1323
      %v1325 = vmul.f32 %v990, 1.442695
      %v1326 = vpow.pop %v1325
      %v1327 = vmul.f32 %v991, 1.442695
      %v1328 = vpow.pop %v1327
      %v1329 = vmul.f32 %v992, 1.442695
      %v1330 = vpow.pop %v1329
      %v1331 = vmul.f32 %v993, 1.442695
      %v1332 = vpow.pop %v1331
      %v1333 = vmul.f32 %v994, 1.442695
      %v1334 = vpow.pop %v1333
      %v1335 = vmul.f32 %v995, 1.442695
      %v1336 = vpow.pop %v1335
      %v1337 = vmul.f32 %v996, 1.442695
      %v1338 = vpow.pop %v1337
      %v1339 = vmul.f32 %v997, 1.442695
      %v1340 = vpow.pop %v1339
      %v1341 = vmul.f32 %v998, 1.442695
      %v1342 = vpow.pop %v1341
      %v1343 = vmul.f32 %v999, 1.442695
      %v1344 = vpow.pop %v1343
      %v1345 = vmul.f32 %v1000, 1.442695
      %v1346 = vpow.pop %v1345
      %v1347 = vmul.f32 %v1001, 1.442695
      %v1348 = vpow.pop %v1347
      %v1349 = vmul.f32 %v1002, 1.442695
      %v1350 = vpow.pop %v1349
      %v1351 = vmul.f32 %v1003, 1.442695
      %v1352 = vpow.pop %v1351
      %v1353 = vmul.f32 %v1004, 1.442695
      %v1354 = vpow.pop %v1353
      %v1355 = vmul.f32 %v1005, 1.442695
      %v1356 = vpow.pop %v1355
      %v1357 = vmul.f32 %v1006, 1.442695
      %v1358 = vpow.pop %v1357
      %v1359 = vmul.f32 %v1007, 1.442695
      %v1360 = vpow.pop %v1359
      %v1361 = vmul.f32 %v1008, 1.442695
      %v1362 = vpow.pop %v1361
      %v1363 = vmul.f32 %v1009, 1.442695
      %v1364 = vpow.pop %v1363
      %v1365 = vmul.f32 %v1010, 1.442695
      %v1366 = vpow.pop %v1365
      %v1367 = vmul.f32 %v1011, 1.442695
      %v1368 = vpow.pop %v1367
      %v1369 = vmul.f32 %v1012, 1.442695
      %v1370 = vpow.pop %v1369
      %v1371 = vmul.f32 %v1013, 1.442695
      %v1372 = vpow.pop %v1371
      %v1373 = vmul.f32 %v1014, 1.442695
      %v1374 = vpow.pop %v1373
      %v1375 = vmul.f32 %v1015, 1.442695
      %v1376 = vpow.pop %v1375
      %v1377 = vmul.f32 %v1016, 1.442695
      %v1378 = vpow.pop %v1377
      %v1379 = vmul.f32 %v1017, 1.442695
      %v1380 = vpow.pop %v1379
      %v1381 = vmul.f32 %v1018, 1.442695
      %v1382 = vpow.pop %v1381
      %v1383 = vmul.f32 %v1019, 1.442695
      %v1384 = vpow.pop %v1383
      %v1385 = vmul.f32 %v1020, 1.442695
      %v1386 = vpow.pop %v1385
      %v1387 = vmul.f32 %v1021, 1.442695
      %v1388 = vpow.pop %v1387
      %v1389 = vmul.f32 %v1022, 1.442695
      %v1390 = vpow.pop %v1389
      %v1391 = vmul.f32 %v1023, 1.442695
      %v1392 = vpow.pop %v1391
      %v1393 = vmul.f32 %v1024, 1.442695
      %v1394 = vpow.pop %v1393
      %v1395 = vmul.f32 %v1025, 1.442695
      %v1396 = vpow.pop %v1395
      %v1397 = vmul.f32 %v1026, 1.442695
      %v1398 = vpow.pop %v1397
      %v1399 = vmul.f32 %v1027, 1.442695
      %v1400 = vpow.pop %v1399
      %v1401 = vmul.f32 %v1028, 1.442695
      %v1402 = vpow.pop %v1401
      %v1403 = vmul.f32 %v1029, 1.442695
      %v1404 = vpow.pop %v1403
      %v1405 = vmul.f32 %v1030, 1.442695
      %v1406 = vpow.pop %v1405
      %v1407 = vmul.f32 %v1031, 1.442695
      %v1408 = vpow.pop %v1407
      %v1409 = vmul.f32 %v1032, 1.442695
      %v1410 = vpow.pop %v1409
      %v1411 = vmul.f32 %v1033, 1.442695
      %v1412 = vpow.pop %v1411
      %v1413 = vmul.f32 %v1034, 1.442695
      %v1414 = vpow.pop %v1413
      %v1415 = vmul.f32 %v1035, 1.442695
      %v1416 = vpow.pop %v1415
      %v1417 = vmul.f32 %v1036, 1.442695
      %v1418 = vpow.pop %v1417
      %v1419 = vmul.f32 %v1037, 1.442695
      %v1420 = vpow.pop %v1419
      %v1421 = vmul.f32 %v1038, 1.442695
      %v1422 = vpow.pop %v1421
      %v1423 = vmul.f32 %v1039, 1.442695
      %v1424 = vpow.pop %v1423
      %v1425 = vmul.f32 %v1040, 1.442695
      %v1426 = vpow.pop %v1425
      %v1427 = vmul.f32 %v1041, 1.442695
      %v1428 = vpow.pop %v1427
      %v1429 = vmul.f32 %v1042, 1.442695
      %v1430 = vpow.pop %v1429
      %v1431 = vmul.f32 %v1043, 1.442695
      %v1432 = vpow.pop %v1431
      %v1433 = vmul.f32 %v1044, 1.442695
      %v1434 = vpow.pop %v1433
      %v1435 = vmul.f32 %v1045, 1.442695
      %v1436 = vpow.pop %v1435
      %v1437 = vmul.f32 %v1046, 1.442695
      %v1438 = vpow.pop %v1437
      %v1439 = vmul.f32 %v1047, 1.442695
      %v1440 = vpow.pop %v1439
      %v1441 = vmul.f32 %v1048, 1.442695
      %v1442 = vpow.pop %v1441
      %v1443 = vmul.f32 %v1049, 1.442695
      %v1444 = vpow.pop %v1443
      %v1445 = vmul.f32 %v1050, 1.442695
      %v1446 = vpow.pop %v1445
      %v1447 = vmul.f32 %v1051, 1.442695
      %v1448 = vpow.pop %v1447
      %v1449 = vmul.f32 %v1052, 1.442695
      %v1450 = vpow.pop %v1449
      %v1451 = vmul.f32 %v1053, 1.442695
      %v1452 = vpow.pop %v1451
      %v1453 = vmul.f32 %v1054, 1.442695
      %v1454 = vpow.pop %v1453
      %v1455 = vmul.f32 %v1055, 1.442695
      %v1456 = vpow.pop %v1455
      %v1457 = vmul.f32 %v1056, 1.442695
      %v1458 = vpow.pop %v1457
      %v1459 = vmul.f32 %v1057, 1.442695
      %v1460 = vpow.pop %v1459
      %v1461 = vmul.f32 %v1058, 1.442695
      %v1462 = vpow.pop %v1461
      %v1463 = vmul.f32 %v1059, 1.442695
      %v1464 = vpow.pop %v1463
      %v1465 = vmul.f32 %v1060, 1.442695
      %v1466 = vpow.pop %v1465
      %v1467 = vmul.f32 %v1061, 1.442695
      %v1468 = vpow.pop %v1467
      %v1469 = vmul.f32 %v1062, 1.442695
      %v1470 = vpow.pop %v1469
      %v1471 = vmul.f32 %v1063, 1.442695
      %v1472 = vpow.pop %v1471
      %v1473 = vmul.f32 %v1064, 1.442695
      %v1474 = vpow.pop %v1473
      %v1475 = vmul.f32 %v1065, 1.442695
      %v1476 = vpow.pop %v1475
      %v1477 = vmul.f32 %v1066, 1.442695
      %v1478 = vpow.pop %v1477
      %v1479 = vmul.f32 %v1067, 1.442695
      %v1480 = vpow.pop %v1479
      %v1481 = vmul.f32 %v1068, 1.442695
      %v1482 = vpow.pop %v1481
      %v1483 = vmul.f32 %v1069, 1.442695
      %v1484 = vpow.pop %v1483
      %v1485 = vmul.f32 %v1070, 1.442695
      %v1486 = vpow.pop %v1485
      %v1487 = vmul.f32 %v1071, 1.442695
      %v1488 = vpow.pop %v1487
      %v1489 = vmul.f32 %v1072, 1.442695
      %v1490 = vpow.pop %v1489
      %v1491 = vmul.f32 %v1073, 1.442695
      %v1492 = vpow.pop %v1491
      %v1493 = vmul.f32 %v1074, 1.442695
      %v1494 = vpow.pop %v1493
      %v1495 = vmul.f32 %v1075, 1.442695
      %v1496 = vpow.pop %v1495
      %v1497 = vmul.f32 %v1076, 1.442695
      %v1498 = vpow.pop %v1497
      %v1499 = vmul.f32 %v1077, 1.442695
      %v1500 = vpow.pop %v1499
      %v1501 = vmul.f32 %v1078, 1.442695
      %v1502 = vpow.pop %v1501
      %v1503 = vmul.f32 %v1079, 1.442695
      %v1504 = vpow.pop %v1503
      %v1505 = vmul.f32 %v1080, 1.442695
      %v1506 = vpow.pop %v1505
      %v1507 = vmul.f32 %v1081, 1.442695
      %v1508 = vpow.pop %v1507
      %v1509 = vmul.f32 %v1082, 1.442695
      %v1510 = vpow.pop %v1509
      %v1511 = vmul.f32 %v1083, 1.442695
      %v1512 = vpow.pop %v1511
      %v1513 = vmul.f32 %v1084, 1.442695
      %v1514 = vpow.pop %v1513
      %v1515 = vmul.f32 %v1085, 1.442695
      %v1516 = vpow.pop %v1515
      %v1517 = vmul.f32 %v1086, 1.442695
      %v1518 = vpow.pop %v1517
      %v1519 = vmul.f32 %v1087, 1.442695
      %v1520 = vpow.pop %v1519
      %v1521 = vmul.f32 %v1088, 1.442695
      %v1522 = vpow.pop %v1521
      %v1523 = vmul.f32 %v1089, 1.442695
      %v1524 = vpow.pop %v1523
      %v1525 = vmul.f32 %v1090, 1.442695
      %v1526 = vpow.pop %v1525
      %v1527 = vmul.f32 %v1091, 1.442695
      %v1528 = vpow.pop %v1527
      %v1529 = vmul.f32 %v1092, 1.442695
      %v1530 = vpow.pop %v1529
      %v1531 = vmul.f32 %v1093, 1.442695
      %v1532 = vpow.pop %v1531
      %v1533 = vmul.f32 %v1094, 1.442695
      %v1534 = vpow.pop %v1533
      %v1535 = vmul.f32 %v1095, 1.442695
      %v1536 = vpow.pop %v1535
      %v1537 = vmul.f32 %v1096, 1.442695
      %v1538 = vpow.pop %v1537
      %v1539 = vmul.f32 %v1097, 1.442695
      %v1540 = vpow.pop %v1539
      %v1541 = vmul.f32 %v1098, 1.442695
      %v1542 = vpow.pop %v1541
      %v1543 = vmul.f32 %v1099, 1.442695
      %v1544 = vpow.pop %v1543
      %v1545 = vmul.f32 %v1100, 1.442695
      %v1546 = vpow.pop %v1545
      %v1547 = vmul.f32 %v1101, 1.442695
      %v1548 = vpow.pop %v1547
      %v1549 = vmul.f32 %v1102, 1.442695
      %v1550 = vpow.pop %v1549
      %v1551 = vmul.f32 %v1103, 1.442695
      %v1552 = vpow.pop %v1551
      %v1553 = vmul.f32 %v1104, 1.442695
      %v1554 = vpow.pop %v1553
      %v1555 = vmul.f32 %v1105, 1.442695
      %v1556 = vpow.pop %v1555
      %v1557 = vmul.f32 %v1106, 1.442695
      %v1558 = vpow.pop %v1557
      %v1559 = vmul.f32 %v1107, 1.442695
      %v1560 = vpow.pop %v1559
      %v1561 = vmul.f32 %v1108, 1.442695
      %v1562 = vpow.pop %v1561
      %v1563 = vmul.f32 %v1109, 1.442695
      %v1564 = vpow.pop %v1563
      %v1565 = vmul.f32 %v1110, 1.442695
      %v1566 = vpow.pop %v1565
      %v1567 = vmul.f32 %v1111, 1.442695
      %v1568 = vpow.pop %v1567
      %v1569 = vmul.f32 %v1112, 1.442695
      %v1570 = vpow.pop %v1569
      %v1571 = vmul.f32 %v1113, 1.442695
      %v1572 = vpow.pop %v1571
      %v1573 = vmul.f32 %v1114, 1.442695
      %v1574 = vpow.pop %v1573
      %v1575 = vmul.f32 %v1115, 1.442695
      %v1576 = vpow.pop %v1575
      %v1577 = vmul.f32 %v1116, 1.442695
      %v1578 = vpow.pop %v1577
      %v1579 = vmul.f32 %v1117, 1.442695
      %v1580 = vpow.pop %v1579
      %v1581 = vmul.f32 %v1118, 1.442695
      %v1582 = vpow.pop %v1581
      %v1583 = vmul.f32 %v1119, 1.442695
      %v1584 = vpow.pop %v1583
      %v1585 = vmul.f32 %v1120, 1.442695
      %v1586 = vpow.pop %v1585
      %v1587 = vmul.f32 %v1121, 1.442695
      %v1588 = vpow.pop %v1587
      %v1589 = vmul.f32 %v1122, 1.442695
      %v1590 = vpow.pop %v1589
      %v1591 = vmul.f32 %v1123, 1.442695
      %v1592 = vpow.pop %v1591
      %v1593 = vmul.f32 %v1124, 1.442695
      %v1594 = vpow.pop %v1593
      %v1595 = vmul.f32 %v1125, 1.442695
      %v1596 = vpow.pop %v1595
      %v1597 = vmul.f32 %v1126, 1.442695
      %v1598 = vpow.pop %v1597
      %v1599 = vmul.f32 %v1127, 1.442695
      %v1600 = vpow.pop %v1599
      %v1601 = vmul.f32 %v1128, 1.442695
      %v1602 = vpow.pop %v1601
      %v1603 = vmul.f32 %v1129, 1.442695
      %v1604 = vpow.pop %v1603
      %v1605 = vmul.f32 %v1130, 1.442695
      %v1606 = vpow.pop %v1605
      %v1607 = vmul.f32 %v1131, 1.442695
      %v1608 = vpow.pop %v1607
      %v1609 = vmul.f32 %v1132, 1.442695
      %v1610 = vpow.pop %v1609
      %v1611 = vmul.f32 %v1133, 1.442695
      %v1612 = vpow.pop %v1611
      %v1613 = vmul.f32 %v1134, 1.442695
      %v1614 = vpow.pop %v1613
      %v1615 = vmul.f32 %v1135, 1.442695
      %v1616 = vpow.pop %v1615
      %v1617 = vmul.f32 %v1136, 1.442695
      %v1618 = vpow.pop %v1617
      %v1619 = vmul.f32 %v1137, 1.442695
      %v1620 = vpow.pop %v1619
      %v1621 = vmul.f32 %v1138, 1.442695
      %v1622 = vpow.pop %v1621
      %v1623 = vmul.f32 %v1139, 1.442695
      %v1624 = vpow.pop %v1623
      %v1625 = vmul.f32 %v1140, 1.442695
      %v1626 = vpow.pop %v1625
      %v1627 = vmul.f32 %v1141, 1.442695
      %v1628 = vpow.pop %v1627
      %v1629 = vmul.f32 %v1142, 1.442695
      %v1630 = vpow.pop %v1629
      %v1631 = vmul.f32 %v1143, 1.442695
      %v1632 = vpow.pop %v1631
      %v1633 = vmul.f32 %v1144, 1.442695
      %v1634 = vpow.pop %v1633
      %v1635 = vmul.f32 %v1145, 1.442695
      %v1636 = vpow.pop %v1635
      %v1637 = vmul.f32 %v1146, 1.442695
      %v1638 = vpow.pop %v1637
      %v1639 = vmul.f32 %v1147, 1.442695
      %v1640 = vpow.pop %v1639
      %v1641 = vmul.f32 %v1148, 1.442695
      %v1642 = vpow.pop %v1641
      %v1643 = vmul.f32 %v1149, 1.442695
      %v1644 = vpow.pop %v1643
      %v1645 = vmul.f32 %v1150, 1.442695
      %v1646 = vpow.pop %v1645
      %v1647 = vmul.f32 %v1151, 1.442695
      %v1648 = vpow.pop %v1647
      %v1649 = vmul.f32 %v1152, 1.442695
      %v1650 = vpow.pop %v1649
      %v1651 = vmul.f32 %v1153, 1.442695
      %v1652 = vpow.pop %v1651
      %v1653 = vmul.f32 %v1154, 1.442695
      %v1654 = vpow.pop %v1653
      %v1655 = vmul.f32 %v1155, 1.442695
      %v1656 = vpow.pop %v1655
      %v1657 = vmul.f32 %v1156, 1.442695
      %v1658 = vpow.pop %v1657
      %v1659 = vmul.f32 %v1157, 1.442695
      %v1660 = vpow.pop %v1659
      %v1661 = vmul.f32 %v1158, 1.442695
      %v1662 = vpow.pop %v1661
      %v1663 = vmul.f32 %v1159, 1.442695
      %v1664 = vpow.pop %v1663
      %v1665 = vmul.f32 %v1160, 1.442695
      %v1666 = vpow.pop %v1665
      %v1667 = vmul.f32 %v1161, 1.442695
      %v1668 = vpow.pop %v1667
      %v1669 = vmul.f32 %v1162, 1.442695
      %v1670 = vpow.pop %v1669
      %v1671 = vmul.f32 %v1163, 1.442695
      %v1672 = vpow.pop %v1671
      %v1673 = vmul.f32 %v1164, 1.442695
      %v1674 = vpow.pop %v1673
      %v1675 = vmul.f32 %v1165, 1.442695
      %v1676 = vpow.pop %v1675
      %v1677 = vmul.f32 %v1166, 1.442695
      %v1678 = vpow.pop %v1677
      %v1679 = vadd.f32 %v1168, 2.021496
      %v1680 = vadd.f32 %v1170, 2.021496
      %v1681 = vadd.f32 %v1172, 2.021496
      %v1682 = vadd.f32 %v1174, 2.021496
      %v1683 = vadd.f32 %v1176, 2.021496
      %v1684 = vadd.f32 %v1178, 2.021496
      %v1685 = vadd.f32 %v1180, 2.021496
      %v1686 = vadd.f32 %v1182, 2.021496
      %v1687 = vadd.f32 %v1184, 2.021496
      %v1688 = vadd.f32 %v1186, 2.021496
      %v1689 = vadd.f32 %v1188, 2.021496
      %v1690 = vadd.f32 %v1190, 2.021496
      %v1691 = vadd.f32 %v1192, 2.021496
      %v1692 = vadd.f32 %v1194, 2.021496
      %v1693 = vadd.f32 %v1196, 2.021496
      %v1694 = vadd.f32 %v1198, 2.021496
      %v1695 = vadd.f32 %v1200, 2.021496
      %v1696 = vadd.f32 %v1202, 2.021496
      %v1697 = vadd.f32 %v1204, 2.021496
      %v1698 = vadd.f32 %v1206, 2.021496
      %v1699 = vadd.f32 %v1208, 2.021496
      %v1700 = vadd.f32 %v1210, 2.021496
      %v1701 = vadd.f32 %v1212, 2.021496
      %v1702 = vadd.f32 %v1214, 2.021496
      %v1703 = vadd.f32 %v1216, 2.021496
      %v1704 = vadd.f32 %v1218, 2.021496
      %v1705 = vadd.f32 %v1220, 2.021496
      %v1706 = vadd.f32 %v1222, 2.021496
      %v1707 = vadd.f32 %v1224, 2.021496
      %v1708 = vadd.f32 %v1226, 2.021496
      %v1709 = vadd.f32 %v1228, 2.021496
      %v1710 = vadd.f32 %v1230, 2.021496
      %v1711 = vadd.f32 %v1232, 2.021496
      %v1712 = vadd.f32 %v1234, 2.021496
      %v1713 = vadd.f32 %v1236, 2.021496
      %v1714 = vadd.f32 %v1238, 2.021496
      %v1715 = vadd.f32 %v1240, 2.021496
      %v1716 = vadd.f32 %v1242, 2.021496
      %v1717 = vadd.f32 %v1244, 2.021496
      %v1718 = vadd.f32 %v1246, 2.021496
      %v1719 = vadd.f32 %v1248, 2.021496
      %v1720 = vadd.f32 %v1250, 2.021496
      %v1721 = vadd.f32 %v1252, 2.021496
      %v1722 = vadd.f32 %v1254, 2.021496
      %v1723 = vadd.f32 %v1256, 2.021496
      %v1724 = vadd.f32 %v1258, 2.021496
      %v1725 = vadd.f32 %v1260, 2.021496
      %v1726 = vadd.f32 %v1262, 2.021496
      %v1727 = vadd.f32 %v1264, 2.021496
      %v1728 = vadd.f32 %v1266, 2.021496
      %v1729 = vadd.f32 %v1268, 2.021496
      %v1730 = vadd.f32 %v1270, 2.021496
      %v1731 = vadd.f32 %v1272, 2.021496
      %v1732 = vadd.f32 %v1274, 2.021496
      %v1733 = vadd.f32 %v1276, 2.021496
      %v1734 = vadd.f32 %v1278, 2.021496
      %v1735 = vadd.f32 %v1280, 2.021496
      %v1736 = vadd.f32 %v1282, 2.021496
      %v1737 = vadd.f32 %v1284, 2.021496
      %v1738 = vadd.f32 %v1286, 2.021496
      %v1739 = vadd.f32 %v1288, 2.021496
      %v1740 = vadd.f32 %v1290, 2.021496
      %v1741 = vadd.f32 %v1292, 2.021496
      %v1742 = vadd.f32 %v1294, 2.021496
      %v1743 = vadd.f32 %v1296, 2.021496
      %v1744 = vadd.f32 %v1298, 2.021496
      %v1745 = vadd.f32 %v1300, 2.021496
      %v1746 = vadd.f32 %v1302, 2.021496
      %v1747 = vadd.f32 %v1304, 2.021496
      %v1748 = vadd.f32 %v1306, 2.021496
      %v1749 = vadd.f32 %v1308, 2.021496
      %v1750 = vadd.f32 %v1310, 2.021496
      %v1751 = vadd.f32 %v1312, 2.021496
      %v1752 = vadd.f32 %v1314, 2.021496
      %v1753 = vadd.f32 %v1316, 2.021496
      %v1754 = vadd.f32 %v1318, 2.021496
      %v1755 = vadd.f32 %v1320, 2.021496
      %v1756 = vadd.f32 %v1322, 2.021496
      %v1757 = vadd.f32 %v1324, 2.021496
      %v1758 = vadd.f32 %v1326, 2.021496
      %v1759 = vadd.f32 %v1328, 2.021496
      %v1760 = vadd.f32 %v1330, 2.021496
      %v1761 = vadd.f32 %v1332, 2.021496
      %v1762 = vadd.f32 %v1334, 2.021496
      %v1763 = vadd.f32 %v1336, 2.021496
      %v1764 = vadd.f32 %v1338, 2.021496
      %v1765 = vadd.f32 %v1340, 2.021496
      %v1766 = vadd.f32 %v1342, 2.021496
      %v1767 = vadd.f32 %v1344, 2.021496
      %v1768 = vadd.f32 %v1346, 2.021496
      %v1769 = vadd.f32 %v1348, 2.021496
      %v1770 = vadd.f32 %v1350, 2.021496
      %v1771 = vadd.f32 %v1352, 2.021496
      %v1772 = vadd.f32 %v1354, 2.021496
      %v1773 = vadd.f32 %v1356, 2.021496
      %v1774 = vadd.f32 %v1358, 2.021496
      %v1775 = vadd.f32 %v1360, 2.021496
      %v1776 = vadd.f32 %v1362, 2.021496
      %v1777 = vadd.f32 %v1364, 2.021496
      %v1778 = vadd.f32 %v1366, 2.021496
      %v1779 = vadd.f32 %v1368, 2.021496
      %v1780 = vadd.f32 %v1370, 2.021496
      %v1781 = vadd.f32 %v1372, 2.021496
      %v1782 = vadd.f32 %v1374, 2.021496
      %v1783 = vadd.f32 %v1376, 2.021496
      %v1784 = vadd.f32 %v1378, 2.021496
      %v1785 = vadd.f32 %v1380, 2.021496
      %v1786 = vadd.f32 %v1382, 2.021496
      %v1787 = vadd.f32 %v1384, 2.021496
      %v1788 = vadd.f32 %v1386, 2.021496
      %v1789 = vadd.f32 %v1388, 2.021496
      %v1790 = vadd.f32 %v1390, 2.021496
      %v1791 = vadd.f32 %v1392, 2.021496
      %v1792 = vadd.f32 %v1394, 2.021496
      %v1793 = vadd.f32 %v1396, 2.021496
      %v1794 = vadd.f32 %v1398, 2.021496
      %v1795 = vadd.f32 %v1400, 2.021496
      %v1796 = vadd.f32 %v1402, 2.021496
      %v1797 = vadd.f32 %v1404, 2.021496
      %v1798 = vadd.f32 %v1406, 2.021496
      %v1799 = vadd.f32 %v1408, 2.021496
      %v1800 = vadd.f32 %v1410, 2.021496
      %v1801 = vadd.f32 %v1412, 2.021496
      %v1802 = vadd.f32 %v1414, 2.021496
      %v1803 = vadd.f32 %v1416, 2.021496
      %v1804 = vadd.f32 %v1418, 2.021496
      %v1805 = vadd.f32 %v1420, 2.021496
      %v1806 = vadd.f32 %v1422, 2.021496
      %v1807 = vadd.f32 %v1424, 2.021496
      %v1808 = vadd.f32 %v1426, 2.021496
      %v1809 = vadd.f32 %v1428, 2.021496
      %v1810 = vadd.f32 %v1430, 2.021496
      %v1811 = vadd.f32 %v1432, 2.021496
      %v1812 = vadd.f32 %v1434, 2.021496
      %v1813 = vadd.f32 %v1436, 2.021496
      %v1814 = vadd.f32 %v1438, 2.021496
      %v1815 = vadd.f32 %v1440, 2.021496
      %v1816 = vadd.f32 %v1442, 2.021496
      %v1817 = vadd.f32 %v1444, 2.021496
      %v1818 = vadd.f32 %v1446, 2.021496
      %v1819 = vadd.f32 %v1448, 2.021496
      %v1820 = vadd.f32 %v1450, 2.021496
      %v1821 = vadd.f32 %v1452, 2.021496
      %v1822 = vadd.f32 %v1454, 2.021496
      %v1823 = vadd.f32 %v1456, 2.021496
      %v1824 = vadd.f32 %v1458, 2.021496
      %v1825 = vadd.f32 %v1460, 2.021496
      %v1826 = vadd.f32 %v1462, 2.021496
      %v1827 = vadd.f32 %v1464, 2.021496
      %v1828 = vadd.f32 %v1466, 2.021496
      %v1829 = vadd.f32 %v1468, 2.021496
      %v1830 = vadd.f32 %v1470, 2.021496
      %v1831 = vadd.f32 %v1472, 2.021496
      %v1832 = vadd.f32 %v1474, 2.021496
      %v1833 = vadd.f32 %v1476, 2.021496
      %v1834 = vadd.f32 %v1478, 2.021496
      %v1835 = vadd.f32 %v1480, 2.021496
      %v1836 = vadd.f32 %v1482, 2.021496
      %v1837 = vadd.f32 %v1484, 2.021496
      %v1838 = vadd.f32 %v1486, 2.021496
      %v1839 = vadd.f32 %v1488, 2.021496
      %v1840 = vadd.f32 %v1490, 2.021496
      %v1841 = vadd.f32 %v1492, 2.021496
      %v1842 = vadd.f32 %v1494, 2.021496
      %v1843 = vadd.f32 %v1496, 2.021496
      %v1844 = vadd.f32 %v1498, 2.021496
      %v1845 = vadd.f32 %v1500, 2.021496
      %v1846 = vadd.f32 %v1502, 2.021496
      %v1847 = vadd.f32 %v1504, 2.021496
      %v1848 = vadd.f32 %v1506, 2.021496
      %v1849 = vadd.f32 %v1508, 2.021496
      %v1850 = vadd.f32 %v1510, 2.021496
      %v1851 = vadd.f32 %v1512, 2.021496
      %v1852 = vadd.f32 %v1514, 2.021496
      %v1853 = vadd.f32 %v1516, 2.021496
      %v1854 = vadd.f32 %v1518, 2.021496
      %v1855 = vadd.f32 %v1520, 2.021496
      %v1856 = vadd.f32 %v1522, 2.021496
      %v1857 = vadd.f32 %v1524, 2.021496
      %v1858 = vadd.f32 %v1526, 2.021496
      %v1859 = vadd.f32 %v1528, 2.021496
      %v1860 = vadd.f32 %v1530, 2.021496
      %v1861 = vadd.f32 %v1532, 2.021496
      %v1862 = vadd.f32 %v1534, 2.021496
      %v1863 = vadd.f32 %v1536, 2.021496
      %v1864 = vadd.f32 %v1538, 2.021496
      %v1865 = vadd.f32 %v1540, 2.021496
      %v1866 = vadd.f32 %v1542, 2.021496
      %v1867 = vadd.f32 %v1544, 2.021496
      %v1868 = vadd.f32 %v1546, 2.021496
      %v1869 = vadd.f32 %v1548, 2.021496
      %v1870 = vadd.f32 %v1550, 2.021496
      %v1871 = vadd.f32 %v1552, 2.021496
      %v1872 = vadd.f32 %v1554, 2.021496
      %v1873 = vadd.f32 %v1556, 2.021496
      %v1874 = vadd.f32 %v1558, 2.021496
      %v1875 = vadd.f32 %v1560, 2.021496
      %v1876 = vadd.f32 %v1562, 2.021496
      %v1877 = vadd.f32 %v1564, 2.021496
      %v1878 = vadd.f32 %v1566, 2.021496
      %v1879 = vadd.f32 %v1568, 2.021496
      %v1880 = vadd.f32 %v1570, 2.021496
      %v1881 = vadd.f32 %v1572, 2.021496
      %v1882 = vadd.f32 %v1574, 2.021496
      %v1883 = vadd.f32 %v1576, 2.021496
      %v1884 = vadd.f32 %v1578, 2.021496
      %v1885 = vadd.f32 %v1580, 2.021496
      %v1886 = vadd.f32 %v1582, 2.021496
      %v1887 = vadd.f32 %v1584, 2.021496
      %v1888 = vadd.f32 %v1586, 2.021496
      %v1889 = vadd.f32 %v1588, 2.021496
      %v1890 = vadd.f32 %v1590, 2.021496
      %v1891 = vadd.f32 %v1592, 2.021496
      %v1892 = vadd.f32 %v1594, 2.021496
      %v1893 = vadd.f32 %v1596, 2.021496
      %v1894 = vadd.f32 %v1598, 2.021496
      %v1895 = vadd.f32 %v1600, 2.021496
      %v1896 = vadd.f32 %v1602, 2.021496
      %v1897 = vadd.f32 %v1604, 2.021496
      %v1898 = vadd.f32 %v1606, 2.021496
      %v1899 = vadd.f32 %v1608, 2.021496
      %v1900 = vadd.f32 %v1610, 2.021496
      %v1901 = vadd.f32 %v1612, 2.021496
      %v1902 = vadd.f32 %v1614, 2.021496
      %v1903 = vadd.f32 %v1616, 2.021496
      %v1904 = vadd.f32 %v1618, 2.021496
      %v1905 = vadd.f32 %v1620, 2.021496
      %v1906 = vadd.f32 %v1622, 2.021496
      %v1907 = vadd.f32 %v1624, 2.021496
      %v1908 = vadd.f32 %v1626, 2.021496
      %v1909 = vadd.f32 %v1628, 2.021496
      %v1910 = vadd.f32 %v1630, 2.021496
      %v1911 = vadd.f32 %v1632, 2.021496
      %v1912 = vadd.f32 %v1634, 2.021496
      %v1913 = vadd.f32 %v1636, 2.021496
      %v1914 = vadd.f32 %v1638, 2.021496
      %v1915 = vadd.f32 %v1640, 2.021496
      %v1916 = vadd.f32 %v1642, 2.021496
      %v1917 = vadd.f32 %v1644, 2.021496
      %v1918 = vadd.f32 %v1646, 2.021496
      %v1919 = vadd.f32 %v1648, 2.021496
      %v1920 = vadd.f32 %v1650, 2.021496
      %v1921 = vadd.f32 %v1652, 2.021496
      %v1922 = vadd.f32 %v1654, 2.021496
      %v1923 = vadd.f32 %v1656, 2.021496
      %v1924 = vadd.f32 %v1658, 2.021496
      %v1925 = vadd.f32 %v1660, 2.021496
      %v1926 = vadd.f32 %v1662, 2.021496
      %v1927 = vadd.f32 %v1664, 2.021496
      %v1928 = vadd.f32 %v1666, 2.021496
      %v1929 = vadd.f32 %v1668, 2.021496
      %v1930 = vadd.f32 %v1670, 2.021496
      %v1931 = vadd.f32 %v1672, 2.021496
      %v1932 = vadd.f32 %v1674, 2.021496
      %v1933 = vadd.f32 %v1676, 2.021496
      %v1934 = vadd.f32 %v1678, 2.021496
      %v1935 = vmul.f32 %v1679, %v1168
      %v1936 = vmul.f32 %v1680, %v1170
      %v1937 = vmul.f32 %v1681, %v1172
      %v1938 = vmul.f32 %v1682, %v1174
      %v1939 = vmul.f32 %v1683, %v1176
      %v1940 = vmul.f32 %v1684, %v1178
      %v1941 = vmul.f32 %v1685, %v1180
      %v1942 = vmul.f32 %v1686, %v1182
      %v1943 = vmul.f32 %v1687, %v1184
      %v1944 = vmul.f32 %v1688, %v1186
      %v1945 = vmul.f32 %v1689, %v1188
      %v1946 = vmul.f32 %v1690, %v1190
      %v1947 = vmul.f32 %v1691, %v1192
      %v1948 = vmul.f32 %v1692, %v1194
      %v1949 = vmul.f32 %v1693, %v1196
      %v1950 = vmul.f32 %v1694, %v1198
      %v1951 = vmul.f32 %v1695, %v1200
      %v1952 = vmul.f32 %v1696, %v1202
      %v1953 = vmul.f32 %v1697, %v1204
      %v1954 = vmul.f32 %v1698, %v1206
      %v1955 = vmul.f32 %v1699, %v1208
      %v1956 = vmul.f32 %v1700, %v1210
      %v1957 = vmul.f32 %v1701, %v1212
      %v1958 = vmul.f32 %v1702, %v1214
      %v1959 = vmul.f32 %v1703, %v1216
      %v1960 = vmul.f32 %v1704, %v1218
      %v1961 = vmul.f32 %v1705, %v1220
      %v1962 = vmul.f32 %v1706, %v1222
      %v1963 = vmul.f32 %v1707, %v1224
      %v1964 = vmul.f32 %v1708, %v1226
      %v1965 = vmul.f32 %v1709, %v1228
      %v1966 = vmul.f32 %v1710, %v1230
      %v1967 = vmul.f32 %v1711, %v1232
      %v1968 = vmul.f32 %v1712, %v1234
      %v1969 = vmul.f32 %v1713, %v1236
      %v1970 = vmul.f32 %v1714, %v1238
      %v1971 = vmul.f32 %v1715, %v1240
      %v1972 = vmul.f32 %v1716, %v1242
      %v1973 = vmul.f32 %v1717, %v1244
      %v1974 = vmul.f32 %v1718, %v1246
      %v1975 = vmul.f32 %v1719, %v1248
      %v1976 = vmul.f32 %v1720, %v1250
      %v1977 = vmul.f32 %v1721, %v1252
      %v1978 = vmul.f32 %v1722, %v1254
      %v1979 = vmul.f32 %v1723, %v1256
      %v1980 = vmul.f32 %v1724, %v1258
      %v1981 = vmul.f32 %v1725, %v1260
      %v1982 = vmul.f32 %v1726, %v1262
      %v1983 = vmul.f32 %v1727, %v1264
      %v1984 = vmul.f32 %v1728, %v1266
      %v1985 = vmul.f32 %v1729, %v1268
      %v1986 = vmul.f32 %v1730, %v1270
      %v1987 = vmul.f32 %v1731, %v1272
      %v1988 = vmul.f32 %v1732, %v1274
      %v1989 = vmul.f32 %v1733, %v1276
      %v1990 = vmul.f32 %v1734, %v1278
      %v1991 = vmul.f32 %v1735, %v1280
      %v1992 = vmul.f32 %v1736, %v1282
      %v1993 = vmul.f32 %v1737, %v1284
      %v1994 = vmul.f32 %v1738, %v1286
      %v1995 = vmul.f32 %v1739, %v1288
      %v1996 = vmul.f32 %v1740, %v1290
      %v1997 = vmul.f32 %v1741, %v1292
      %v1998 = vmul.f32 %v1742, %v1294
      %v1999 = vmul.f32 %v1743, %v1296
      %v2000 = vmul.f32 %v1744, %v1298
      %v2001 = vmul.f32 %v1745, %v1300
      %v2002 = vmul.f32 %v1746, %v1302
      %v2003 = vmul.f32 %v1747, %v1304
      %v2004 = vmul.f32 %v1748, %v1306
      %v2005 = vmul.f32 %v1749, %v1308
      %v2006 = vmul.f32 %v1750, %v1310
      %v2007 = vmul.f32 %v1751, %v1312
      %v2008 = vmul.f32 %v1752, %v1314
      %v2009 = vmul.f32 %v1753, %v1316
      %v2010 = vmul.f32 %v1754, %v1318
      %v2011 = vmul.f32 %v1755, %v1320
      %v2012 = vmul.f32 %v1756, %v1322
      %v2013 = vmul.f32 %v1757, %v1324
      %v2014 = vmul.f32 %v1758, %v1326
      %v2015 = vmul.f32 %v1759, %v1328
      %v2016 = vmul.f32 %v1760, %v1330
      %v2017 = vmul.f32 %v1761, %v1332
      %v2018 = vmul.f32 %v1762, %v1334
      %v2019 = vmul.f32 %v1763, %v1336
      %v2020 = vmul.f32 %v1764, %v1338
      %v2021 = vmul.f32 %v1765, %v1340
      %v2022 = vmul.f32 %v1766, %v1342
      %v2023 = vmul.f32 %v1767, %v1344
      %v2024 = vmul.f32 %v1768, %v1346
      %v2025 = vmul.f32 %v1769, %v1348
      %v2026 = vmul.f32 %v1770, %v1350
      %v2027 = vmul.f32 %v1771, %v1352
      %v2028 = vmul.f32 %v1772, %v1354
      %v2029 = vmul.f32 %v1773, %v1356
      %v2030 = vmul.f32 %v1774, %v1358
      %v2031 = vmul.f32 %v1775, %v1360
      %v2032 = vmul.f32 %v1776, %v1362
      %v2033 = vmul.f32 %v1777, %v1364
      %v2034 = vmul.f32 %v1778, %v1366
      %v2035 = vmul.f32 %v1779, %v1368
      %v2036 = vmul.f32 %v1780, %v1370
      %v2037 = vmul.f32 %v1781, %v1372
      %v2038 = vmul.f32 %v1782, %v1374
      %v2039 = vmul.f32 %v1783, %v1376
      %v2040 = vmul.f32 %v1784, %v1378
      %v2041 = vmul.f32 %v1785, %v1380
      %v2042 = vmul.f32 %v1786, %v1382
      %v2043 = vmul.f32 %v1787, %v1384
      %v2044 = vmul.f32 %v1788, %v1386
      %v2045 = vmul.f32 %v1789, %v1388
      %v2046 = vmul.f32 %v1790, %v1390
      %v2047 = vmul.f32 %v1791, %v1392
      %v2048 = vmul.f32 %v1792, %v1394
      %v2049 = vmul.f32 %v1793, %v1396
      %v2050 = vmul.f32 %v1794, %v1398
      %v2051 = vmul.f32 %v1795, %v1400
      %v2052 = vmul.f32 %v1796, %v1402
      %v2053 = vmul.f32 %v1797, %v1404
      %v2054 = vmul.f32 %v1798, %v1406
      %v2055 = vmul.f32 %v1799, %v1408
      %v2056 = vmul.f32 %v1800, %v1410
      %v2057 = vmul.f32 %v1801, %v1412
      %v2058 = vmul.f32 %v1802, %v1414
      %v2059 = vmul.f32 %v1803, %v1416
      %v2060 = vmul.f32 %v1804, %v1418
      %v2061 = vmul.f32 %v1805, %v1420
      %v2062 = vmul.f32 %v1806, %v1422
      %v2063 = vmul.f32 %v1807, %v1424
      %v2064 = vmul.f32 %v1808, %v1426
      %v2065 = vmul.f32 %v1809, %v1428
      %v2066 = vmul.f32 %v1810, %v1430
      %v2067 = vmul.f32 %v1811, %v1432
      %v2068 = vmul.f32 %v1812, %v1434
      %v2069 = vmul.f32 %v1813, %v1436
      %v2070 = vmul.f32 %v1814, %v1438
      %v2071 = vmul.f32 %v1815, %v1440
      %v2072 = vmul.f32 %v1816, %v1442
      %v2073 = vmul.f32 %v1817, %v1444
      %v2074 = vmul.f32 %v1818, %v1446
      %v2075 = vmul.f32 %v1819, %v1448
      %v2076 = vmul.f32 %v1820, %v1450
      %v2077 = vmul.f32 %v1821, %v1452
      %v2078 = vmul.f32 %v1822, %v1454
      %v2079 = vmul.f32 %v1823, %v1456
      %v2080 = vmul.f32 %v1824, %v1458
      %v2081 = vmul.f32 %v1825, %v1460
      %v2082 = vmul.f32 %v1826, %v1462
      %v2083 = vmul.f32 %v1827, %v1464
      %v2084 = vmul.f32 %v1828, %v1466
      %v2085 = vmul.f32 %v1829, %v1468
      %v2086 = vmul.f32 %v1830, %v1470
      %v2087 = vmul.f32 %v1831, %v1472
      %v2088 = vmul.f32 %v1832, %v1474
      %v2089 = vmul.f32 %v1833, %v1476
      %v2090 = vmul.f32 %v1834, %v1478
      %v2091 = vmul.f32 %v1835, %v1480
      %v2092 = vmul.f32 %v1836, %v1482
      %v2093 = vmul.f32 %v1837, %v1484
      %v2094 = vmul.f32 %v1838, %v1486
      %v2095 = vmul.f32 %v1839, %v1488
      %v2096 = vmul.f32 %v1840, %v1490
      %v2097 = vmul.f32 %v1841, %v1492
      %v2098 = vmul.f32 %v1842, %v1494
      %v2099 = vmul.f32 %v1843, %v1496
      %v2100 = vmul.f32 %v1844, %v1498
      %v2101 = vmul.f32 %v1845, %v1500
      %v2102 = vmul.f32 %v1846, %v1502
      %v2103 = vmul.f32 %v1847, %v1504
      %v2104 = vmul.f32 %v1848, %v1506
      %v2105 = vmul.f32 %v1849, %v1508
      %v2106 = vmul.f32 %v1850, %v1510
      %v2107 = vmul.f32 %v1851, %v1512
      %v2108 = vmul.f32 %v1852, %v1514
      %v2109 = vmul.f32 %v1853, %v1516
      %v2110 = vmul.f32 %v1854, %v1518
      %v2111 = vmul.f32 %v1855, %v1520
      %v2112 = vmul.f32 %v1856, %v1522
      %v2113 = vmul.f32 %v1857, %v1524
      %v2114 = vmul.f32 %v1858, %v1526
      %v2115 = vmul.f32 %v1859, %v1528
      %v2116 = vmul.f32 %v1860, %v1530
      %v2117 = vmul.f32 %v1861, %v1532
      %v2118 = vmul.f32 %v1862, %v1534
      %v2119 = vmul.f32 %v1863, %v1536
      %v2120 = vmul.f32 %v1864, %v1538
      %v2121 = vmul.f32 %v1865, %v1540
      %v2122 = vmul.f32 %v1866, %v1542
      %v2123 = vmul.f32 %v1867, %v1544
      %v2124 = vmul.f32 %v1868, %v1546
      %v2125 = vmul.f32 %v1869, %v1548
      %v2126 = vmul.f32 %v1870, %v1550
      %v2127 = vmul.f32 %v1871, %v1552
      %v2128 = vmul.f32 %v1872, %v1554
      %v2129 = vmul.f32 %v1873, %v1556
      %v2130 = vmul.f32 %v1874, %v1558
      %v2131 = vmul.f32 %v1875, %v1560
      %v2132 = vmul.f32 %v1876, %v1562
      %v2133 = vmul.f32 %v1877, %v1564
      %v2134 = vmul.f32 %v1878, %v1566
      %v2135 = vmul.f32 %v1879, %v1568
      %v2136 = vmul.f32 %v1880, %v1570
      %v2137 = vmul.f32 %v1881, %v1572
      %v2138 = vmul.f32 %v1882, %v1574
      %v2139 = vmul.f32 %v1883, %v1576
      %v2140 = vmul.f32 %v1884, %v1578
      %v2141 = vmul.f32 %v1885, %v1580
      %v2142 = vmul.f32 %v1886, %v1582
      %v2143 = vmul.f32 %v1887, %v1584
      %v2144 = vmul.f32 %v1888, %v1586
      %v2145 = vmul.f32 %v1889, %v1588
      %v2146 = vmul.f32 %v1890, %v1590
      %v2147 = vmul.f32 %v1891, %v1592
      %v2148 = vmul.f32 %v1892, %v1594
      %v2149 = vmul.f32 %v1893, %v1596
      %v2150 = vmul.f32 %v1894, %v1598
      %v2151 = vmul.f32 %v1895, %v1600
      %v2152 = vmul.f32 %v1896, %v1602
      %v2153 = vmul.f32 %v1897, %v1604
      %v2154 = vmul.f32 %v1898, %v1606
      %v2155 = vmul.f32 %v1899, %v1608
      %v2156 = vmul.f32 %v1900, %v1610
      %v2157 = vmul.f32 %v1901, %v1612
      %v2158 = vmul.f32 %v1902, %v1614
      %v2159 = vmul.f32 %v1903, %v1616
      %v2160 = vmul.f32 %v1904, %v1618
      %v2161 = vmul.f32 %v1905, %v1620
      %v2162 = vmul.f32 %v1906, %v1622
      %v2163 = vmul.f32 %v1907, %v1624
      %v2164 = vmul.f32 %v1908, %v1626
      %v2165 = vmul.f32 %v1909, %v1628
      %v2166 = vmul.f32 %v1910, %v1630
      %v2167 = vmul.f32 %v1911, %v1632
      %v2168 = vmul.f32 %v1912, %v1634
      %v2169 = vmul.f32 %v1913, %v1636
      %v2170 = vmul.f32 %v1914, %v1638
      %v2171 = vmul.f32 %v1915, %v1640
      %v2172 = vmul.f32 %v1916, %v1642
      %v2173 = vmul.f32 %v1917, %v1644
      %v2174 = vmul.f32 %v1918, %v1646
      %v2175 = vmul.f32 %v1919, %v1648
      %v2176 = vmul.f32 %v1920, %v1650
      %v2177 = vmul.f32 %v1921, %v1652
      %v2178 = vmul.f32 %v1922, %v1654
      %v2179 = vmul.f32 %v1923, %v1656
      %v2180 = vmul.f32 %v1924, %v1658
      %v2181 = vmul.f32 %v1925, %v1660
      %v2182 = vmul.f32 %v1926, %v1662
      %v2183 = vmul.f32 %v1927, %v1664
      %v2184 = vmul.f32 %v1928, %v1666
      %v2185 = vmul.f32 %v1929, %v1668
      %v2186 = vmul.f32 %v1930, %v1670
      %v2187 = vmul.f32 %v1931, %v1672
      %v2188 = vmul.f32 %v1932, %v1674
      %v2189 = vmul.f32 %v1933, %v1676
      %v2190 = vmul.f32 %v1934, %v1678
      %v2191 = vadd.f32 %v1935, 1.0
      %v2192 = vadd.f32 %v1936, 1.0
      %v2193 = vadd.f32 %v1937, 1.0
      %v2194 = vadd.f32 %v1938, 1.0
      %v2195 = vadd.f32 %v1939, 1.0
      %v2196 = vadd.f32 %v1940, 1.0
      %v2197 = vadd.f32 %v1941, 1.0
      %v2198 = vadd.f32 %v1942, 1.0
      %v2199 = vadd.f32 %v1943, 1.0
      %v2200 = vadd.f32 %v1944, 1.0
      %v2201 = vadd.f32 %v1945, 1.0
      %v2202 = vadd.f32 %v1946, 1.0
      %v2203 = vadd.f32 %v1947, 1.0
      %v2204 = vadd.f32 %v1948, 1.0
      %v2205 = vadd.f32 %v1949, 1.0
      %v2206 = vadd.f32 %v1950, 1.0
      %v2207 = vadd.f32 %v1951, 1.0
      %v2208 = vadd.f32 %v1952, 1.0
      %v2209 = vadd.f32 %v1953, 1.0
      %v2210 = vadd.f32 %v1954, 1.0
      %v2211 = vadd.f32 %v1955, 1.0
      %v2212 = vadd.f32 %v1956, 1.0
      %v2213 = vadd.f32 %v1957, 1.0
      %v2214 = vadd.f32 %v1958, 1.0
      %v2215 = vadd.f32 %v1959, 1.0
      %v2216 = vadd.f32 %v1960, 1.0
      %v2217 = vadd.f32 %v1961, 1.0
      %v2218 = vadd.f32 %v1962, 1.0
      %v2219 = vadd.f32 %v1963, 1.0
      %v2220 = vadd.f32 %v1964, 1.0
      %v2221 = vadd.f32 %v1965, 1.0
      %v2222 = vadd.f32 %v1966, 1.0
      %v2223 = vadd.f32 %v1967, 1.0
      %v2224 = vadd.f32 %v1968, 1.0
      %v2225 = vadd.f32 %v1969, 1.0
      %v2226 = vadd.f32 %v1970, 1.0
      %v2227 = vadd.f32 %v1971, 1.0
      %v2228 = vadd.f32 %v1972, 1.0
      %v2229 = vadd.f32 %v1973, 1.0
      %v2230 = vadd.f32 %v1974, 1.0
      %v2231 = vadd.f32 %v1975, 1.0
      %v2232 = vadd.f32 %v1976, 1.0
      %v2233 = vadd.f32 %v1977, 1.0
      %v2234 = vadd.f32 %v1978, 1.0
      %v2235 = vadd.f32 %v1979, 1.0
      %v2236 = vadd.f32 %v1980, 1.0
      %v2237 = vadd.f32 %v1981, 1.0
      %v2238 = vadd.f32 %v1982, 1.0
      %v2239 = vadd.f32 %v1983, 1.0
      %v2240 = vadd.f32 %v1984, 1.0
      %v2241 = vadd.f32 %v1985, 1.0
      %v2242 = vadd.f32 %v1986, 1.0
      %v2243 = vadd.f32 %v1987, 1.0
      %v2244 = vadd.f32 %v1988, 1.0
      %v2245 = vadd.f32 %v1989, 1.0
      %v2246 = vadd.f32 %v1990, 1.0
      %v2247 = vadd.f32 %v1991, 1.0
      %v2248 = vadd.f32 %v1992, 1.0
      %v2249 = vadd.f32 %v1993, 1.0
      %v2250 = vadd.f32 %v1994, 1.0
      %v2251 = vadd.f32 %v1995, 1.0
      %v2252 = vadd.f32 %v1996, 1.0
      %v2253 = vadd.f32 %v1997, 1.0
      %v2254 = vadd.f32 %v1998, 1.0
      %v2255 = vadd.f32 %v1999, 1.0
      %v2256 = vadd.f32 %v2000, 1.0
      %v2257 = vadd.f32 %v2001, 1.0
      %v2258 = vadd.f32 %v2002, 1.0
      %v2259 = vadd.f32 %v2003, 1.0
      %v2260 = vadd.f32 %v2004, 1.0
      %v2261 = vadd.f32 %v2005, 1.0
      %v2262 = vadd.f32 %v2006, 1.0
      %v2263 = vadd.f32 %v2007, 1.0
      %v2264 = vadd.f32 %v2008, 1.0
      %v2265 = vadd.f32 %v2009, 1.0
      %v2266 = vadd.f32 %v2010, 1.0
      %v2267 = vadd.f32 %v2011, 1.0
      %v2268 = vadd.f32 %v2012, 1.0
      %v2269 = vadd.f32 %v2013, 1.0
      %v2270 = vadd.f32 %v2014, 1.0
      %v2271 = vadd.f32 %v2015, 1.0
      %v2272 = vadd.f32 %v2016, 1.0
      %v2273 = vadd.f32 %v2017, 1.0
      %v2274 = vadd.f32 %v2018, 1.0
      %v2275 = vadd.f32 %v2019, 1.0
      %v2276 = vadd.f32 %v2020, 1.0
      %v2277 = vadd.f32 %v2021, 1.0
      %v2278 = vadd.f32 %v2022, 1.0
      %v2279 = vadd.f32 %v2023, 1.0
      %v2280 = vadd.f32 %v2024, 1.0
      %v2281 = vadd.f32 %v2025, 1.0
      %v2282 = vadd.f32 %v2026, 1.0
      %v2283 = vadd.f32 %v2027, 1.0
      %v2284 = vadd.f32 %v2028, 1.0
      %v2285 = vadd.f32 %v2029, 1.0
      %v2286 = vadd.f32 %v2030, 1.0
      %v2287 = vadd.f32 %v2031, 1.0
      %v2288 = vadd.f32 %v2032, 1.0
      %v2289 = vadd.f32 %v2033, 1.0
      %v2290 = vadd.f32 %v2034, 1.0
      %v2291 = vadd.f32 %v2035, 1.0
      %v2292 = vadd.f32 %v2036, 1.0
      %v2293 = vadd.f32 %v2037, 1.0
      %v2294 = vadd.f32 %v2038, 1.0
      %v2295 = vadd.f32 %v2039, 1.0
      %v2296 = vadd.f32 %v2040, 1.0
      %v2297 = vadd.f32 %v2041, 1.0
      %v2298 = vadd.f32 %v2042, 1.0
      %v2299 = vadd.f32 %v2043, 1.0
      %v2300 = vadd.f32 %v2044, 1.0
      %v2301 = vadd.f32 %v2045, 1.0
      %v2302 = vadd.f32 %v2046, 1.0
      %v2303 = vadd.f32 %v2047, 1.0
      %v2304 = vadd.f32 %v2048, 1.0
      %v2305 = vadd.f32 %v2049, 1.0
      %v2306 = vadd.f32 %v2050, 1.0
      %v2307 = vadd.f32 %v2051, 1.0
      %v2308 = vadd.f32 %v2052, 1.0
      %v2309 = vadd.f32 %v2053, 1.0
      %v2310 = vadd.f32 %v2054, 1.0
      %v2311 = vadd.f32 %v2055, 1.0
      %v2312 = vadd.f32 %v2056, 1.0
      %v2313 = vadd.f32 %v2057, 1.0
      %v2314 = vadd.f32 %v2058, 1.0
      %v2315 = vadd.f32 %v2059, 1.0
      %v2316 = vadd.f32 %v2060, 1.0
      %v2317 = vadd.f32 %v2061, 1.0
      %v2318 = vadd.f32 %v2062, 1.0
      %v2319 = vadd.f32 %v2063, 1.0
      %v2320 = vadd.f32 %v2064, 1.0
      %v2321 = vadd.f32 %v2065, 1.0
      %v2322 = vadd.f32 %v2066, 1.0
      %v2323 = vadd.f32 %v2067, 1.0
      %v2324 = vadd.f32 %v2068, 1.0
      %v2325 = vadd.f32 %v2069, 1.0
      %v2326 = vadd.f32 %v2070, 1.0
      %v2327 = vadd.f32 %v2071, 1.0
      %v2328 = vadd.f32 %v2072, 1.0
      %v2329 = vadd.f32 %v2073, 1.0
      %v2330 = vadd.f32 %v2074, 1.0
      %v2331 = vadd.f32 %v2075, 1.0
      %v2332 = vadd.f32 %v2076, 1.0
      %v2333 = vadd.f32 %v2077, 1.0
      %v2334 = vadd.f32 %v2078, 1.0
      %v2335 = vadd.f32 %v2079, 1.0
      %v2336 = vadd.f32 %v2080, 1.0
      %v2337 = vadd.f32 %v2081, 1.0
      %v2338 = vadd.f32 %v2082, 1.0
      %v2339 = vadd.f32 %v2083, 1.0
      %v2340 = vadd.f32 %v2084, 1.0
      %v2341 = vadd.f32 %v2085, 1.0
      %v2342 = vadd.f32 %v2086, 1.0
      %v2343 = vadd.f32 %v2087, 1.0
      %v2344 = vadd.f32 %v2088, 1.0
      %v2345 = vadd.f32 %v2089, 1.0
      %v2346 = vadd.f32 %v2090, 1.0
      %v2347 = vadd.f32 %v2091, 1.0
      %v2348 = vadd.f32 %v2092, 1.0
      %v2349 = vadd.f32 %v2093, 1.0
      %v2350 = vadd.f32 %v2094, 1.0
      %v2351 = vadd.f32 %v2095, 1.0
      %v2352 = vadd.f32 %v2096, 1.0
      %v2353 = vadd.f32 %v2097, 1.0
      %v2354 = vadd.f32 %v2098, 1.0
      %v2355 = vadd.f32 %v2099, 1.0
      %v2356 = vadd.f32 %v2100, 1.0
      %v2357 = vadd.f32 %v2101, 1.0
      %v2358 = vadd.f32 %v2102, 1.0
      %v2359 = vadd.f32 %v2103, 1.0
      %v2360 = vadd.f32 %v2104, 1.0
      %v2361 = vadd.f32 %v2105, 1.0
      %v2362 = vadd.f32 %v2106, 1.0
      %v2363 = vadd.f32 %v2107, 1.0
      %v2364 = vadd.f32 %v2108, 1.0
      %v2365 = vadd.f32 %v2109, 1.0
      %v2366 = vadd.f32 %v2110, 1.0
      %v2367 = vadd.f32 %v2111, 1.0
      %v2368 = vadd.f32 %v2112, 1.0
      %v2369 = vadd.f32 %v2113, 1.0
      %v2370 = vadd.f32 %v2114, 1.0
      %v2371 = vadd.f32 %v2115, 1.0
      %v2372 = vadd.f32 %v2116, 1.0
      %v2373 = vadd.f32 %v2117, 1.0
      %v2374 = vadd.f32 %v2118, 1.0
      %v2375 = vadd.f32 %v2119, 1.0
      %v2376 = vadd.f32 %v2120, 1.0
      %v2377 = vadd.f32 %v2121, 1.0
      %v2378 = vadd.f32 %v2122, 1.0
      %v2379 = vadd.f32 %v2123, 1.0
      %v2380 = vadd.f32 %v2124, 1.0
      %v2381 = vadd.f32 %v2125, 1.0
      %v2382 = vadd.f32 %v2126, 1.0
      %v2383 = vadd.f32 %v2127, 1.0
      %v2384 = vadd.f32 %v2128, 1.0
      %v2385 = vadd.f32 %v2129, 1.0
      %v2386 = vadd.f32 %v2130, 1.0
      %v2387 = vadd.f32 %v2131, 1.0
      %v2388 = vadd.f32 %v2132, 1.0
      %v2389 = vadd.f32 %v2133, 1.0
      %v2390 = vadd.f32 %v2134, 1.0
      %v2391 = vadd.f32 %v2135, 1.0
      %v2392 = vadd.f32 %v2136, 1.0
      %v2393 = vadd.f32 %v2137, 1.0
      %v2394 = vadd.f32 %v2138, 1.0
      %v2395 = vadd.f32 %v2139, 1.0
      %v2396 = vadd.f32 %v2140, 1.0
      %v2397 = vadd.f32 %v2141, 1.0
      %v2398 = vadd.f32 %v2142, 1.0
      %v2399 = vadd.f32 %v2143, 1.0
      %v2400 = vadd.f32 %v2144, 1.0
      %v2401 = vadd.f32 %v2145, 1.0
      %v2402 = vadd.f32 %v2146, 1.0
      %v2403 = vadd.f32 %v2147, 1.0
      %v2404 = vadd.f32 %v2148, 1.0
      %v2405 = vadd.f32 %v2149, 1.0
      %v2406 = vadd.f32 %v2150, 1.0
      %v2407 = vadd.f32 %v2151, 1.0
      %v2408 = vadd.f32 %v2152, 1.0
      %v2409 = vadd.f32 %v2153, 1.0
      %v2410 = vadd.f32 %v2154, 1.0
      %v2411 = vadd.f32 %v2155, 1.0
      %v2412 = vadd.f32 %v2156, 1.0
      %v2413 = vadd.f32 %v2157, 1.0
      %v2414 = vadd.f32 %v2158, 1.0
      %v2415 = vadd.f32 %v2159, 1.0
      %v2416 = vadd.f32 %v2160, 1.0
      %v2417 = vadd.f32 %v2161, 1.0
      %v2418 = vadd.f32 %v2162, 1.0
      %v2419 = vadd.f32 %v2163, 1.0
      %v2420 = vadd.f32 %v2164, 1.0
      %v2421 = vadd.f32 %v2165, 1.0
      %v2422 = vadd.f32 %v2166, 1.0
      %v2423 = vadd.f32 %v2167, 1.0
      %v2424 = vadd.f32 %v2168, 1.0
      %v2425 = vadd.f32 %v2169, 1.0
      %v2426 = vadd.f32 %v2170, 1.0
      %v2427 = vadd.f32 %v2171, 1.0
      %v2428 = vadd.f32 %v2172, 1.0
      %v2429 = vadd.f32 %v2173, 1.0
      %v2430 = vadd.f32 %v2174, 1.0
      %v2431 = vadd.f32 %v2175, 1.0
      %v2432 = vadd.f32 %v2176, 1.0
      %v2433 = vadd.f32 %v2177, 1.0
      %v2434 = vadd.f32 %v2178, 1.0
      %v2435 = vadd.f32 %v2179, 1.0
      %v2436 = vadd.f32 %v2180, 1.0
      %v2437 = vadd.f32 %v2181, 1.0
      %v2438 = vadd.f32 %v2182, 1.0
      %v2439 = vadd.f32 %v2183, 1.0
      %v2440 = vadd.f32 %v2184, 1.0
      %v2441 = vadd.f32 %v2185, 1.0
      %v2442 = vadd.f32 %v2186, 1.0
      %v2443 = vadd.f32 %v2187, 1.0
      %v2444 = vadd.f32 %v2188, 1.0
      %v2445 = vadd.f32 %v2189, 1.0
      %v2446 = vadd.f32 %v2190, 1.0
      %v2447 = vrcp.pop %v2191
      %v2448 = vrcp.pop %v2192
      %v2449 = vrcp.pop %v2193
      %v2450 = vrcp.pop %v2194
      %v2451 = vrcp.pop %v2195
      %v2452 = vrcp.pop %v2196
      %v2453 = vrcp.pop %v2197
      %v2454 = vrcp.pop %v2198
      %v2455 = vrcp.pop %v2199
      %v2456 = vrcp.pop %v2200
      %v2457 = vrcp.pop %v2201
      %v2458 = vrcp.pop %v2202
      %v2459 = vrcp.pop %v2203
      %v2460 = vrcp.pop %v2204
      %v2461 = vrcp.pop %v2205
      %v2462 = vrcp.pop %v2206
      %v2463 = vrcp.pop %v2207
      %v2464 = vrcp.pop %v2208
      %v2465 = vrcp.pop %v2209
      %v2466 = vrcp.pop %v2210
      %v2467 = vrcp.pop %v2211
      %v2468 = vrcp.pop %v2212
      %v2469 = vrcp.pop %v2213
      %v2470 = vrcp.pop %v2214
      %v2471 = vrcp.pop %v2215
      %v2472 = vrcp.pop %v2216
      %v2473 = vrcp.pop %v2217
      %v2474 = vrcp.pop %v2218
      %v2475 = vrcp.pop %v2219
      %v2476 = vrcp.pop %v2220
      %v2477 = vrcp.pop %v2221
      %v2478 = vrcp.pop %v2222
      %v2479 = vrcp.pop %v2223
      %v2480 = vrcp.pop %v2224
      %v2481 = vrcp.pop %v2225
      %v2482 = vrcp.pop %v2226
      %v2483 = vrcp.pop %v2227
      %v2484 = vrcp.pop %v2228
      %v2485 = vrcp.pop %v2229
      %v2486 = vrcp.pop %v2230
      %v2487 = vrcp.pop %v2231
      %v2488 = vrcp.pop %v2232
      %v2489 = vrcp.pop %v2233
      %v2490 = vrcp.pop %v2234
      %v2491 = vrcp.pop %v2235
      %v2492 = vrcp.pop %v2236
      %v2493 = vrcp.pop %v2237
      %v2494 = vrcp.pop %v2238
      %v2495 = vrcp.pop %v2239
      %v2496 = vrcp.pop %v2240
      %v2497 = vrcp.pop %v2241
      %v2498 = vrcp.pop %v2242
      %v2499 = vrcp.pop %v2243
      %v2500 = vrcp.pop %v2244
      %v2501 = vrcp.pop %v2245
      %v2502 = vrcp.pop %v2246
      %v2503 = vrcp.pop %v2247
      %v2504 = vrcp.pop %v2248
      %v2505 = vrcp.pop %v2249
      %v2506 = vrcp.pop %v2250
      %v2507 = vrcp.pop %v2251
      %v2508 = vrcp.pop %v2252
      %v2509 = vrcp.pop %v2253
      %v2510 = vrcp.pop %v2254
      %v2511 = vrcp.pop %v2255
      %v2512 = vrcp.pop %v2256
      %v2513 = vrcp.pop %v2257
      %v2514 = vrcp.pop %v2258
      %v2515 = vrcp.pop %v2259
      %v2516 = vrcp.pop %v2260
      %v2517 = vrcp.pop %v2261
      %v2518 = vrcp.pop %v2262
      %v2519 = vrcp.pop %v2263
      %v2520 = vrcp.pop %v2264
      %v2521 = vrcp.pop %v2265
      %v2522 = vrcp.pop %v2266
      %v2523 = vrcp.pop %v2267
      %v2524 = vrcp.pop %v2268
      %v2525 = vrcp.pop %v2269
      %v2526 = vrcp.pop %v2270
      %v2527 = vrcp.pop %v2271
      %v2528 = vrcp.pop %v2272
      %v2529 = vrcp.pop %v2273
      %v2530 = vrcp.pop %v2274
      %v2531 = vrcp.pop %v2275
      %v2532 = vrcp.pop %v2276
      %v2533 = vrcp.pop %v2277
      %v2534 = vrcp.pop %v2278
      %v2535 = vrcp.pop %v2279
      %v2536 = vrcp.pop %v2280
      %v2537 = vrcp.pop %v2281
      %v2538 = vrcp.pop %v2282
      %v2539 = vrcp.pop %v2283
      %v2540 = vrcp.pop %v2284
      %v2541 = vrcp.pop %v2285
      %v2542 = vrcp.pop %v2286
      %v2543 = vrcp.pop %v2287
      %v2544 = vrcp.pop %v2288
      %v2545 = vrcp.pop %v2289
      %v2546 = vrcp.pop %v2290
      %v2547 = vrcp.pop %v2291
      %v2548 = vrcp.pop %v2292
      %v2549 = vrcp.pop %v2293
      %v2550 = vrcp.pop %v2294
      %v2551 = vrcp.pop %v2295
      %v2552 = vrcp.pop %v2296
      %v2553 = vrcp.pop %v2297
      %v2554 = vrcp.pop %v2298
      %v2555 = vrcp.pop %v2299
      %v2556 = vrcp.pop %v2300
      %v2557 = vrcp.pop %v2301
      %v2558 = vrcp.pop %v2302
      %v2559 = vrcp.pop %v2303
      %v2560 = vrcp.pop %v2304
      %v2561 = vrcp.pop %v2305
      %v2562 = vrcp.pop %v2306
      %v2563 = vrcp.pop %v2307
      %v2564 = vrcp.pop %v2308
      %v2565 = vrcp.pop %v2309
      %v2566 = vrcp.pop %v2310
      %v2567 = vrcp.pop %v2311
      %v2568 = vrcp.pop %v2312
      %v2569 = vrcp.pop %v2313
      %v2570 = vrcp.pop %v2314
      %v2571 = vrcp.pop %v2315
      %v2572 = vrcp.pop %v2316
      %v2573 = vrcp.pop %v2317
      %v2574 = vrcp.pop %v2318
      %v2575 = vrcp.pop %v2319
      %v2576 = vrcp.pop %v2320
      %v2577 = vrcp.pop %v2321
      %v2578 = vrcp.pop %v2322
      %v2579 = vrcp.pop %v2323
      %v2580 = vrcp.pop %v2324
      %v2581 = vrcp.pop %v2325
      %v2582 = vrcp.pop %v2326
      %v2583 = vrcp.pop %v2327
      %v2584 = vrcp.pop %v2328
      %v2585 = vrcp.pop %v2329
      %v2586 = vrcp.pop %v2330
      %v2587 = vrcp.pop %v2331
      %v2588 = vrcp.pop %v2332
      %v2589 = vrcp.pop %v2333
      %v2590 = vrcp.pop %v2334
      %v2591 = vrcp.pop %v2335
      %v2592 = vrcp.pop %v2336
      %v2593 = vrcp.pop %v2337
      %v2594 = vrcp.pop %v2338
      %v2595 = vrcp.pop %v2339
      %v2596 = vrcp.pop %v2340
      %v2597 = vrcp.pop %v2341
      %v2598 = vrcp.pop %v2342
      %v2599 = vrcp.pop %v2343
      %v2600 = vrcp.pop %v2344
      %v2601 = vrcp.pop %v2345
      %v2602 = vrcp.pop %v2346
      %v2603 = vrcp.pop %v2347
      %v2604 = vrcp.pop %v2348
      %v2605 = vrcp.pop %v2349
      %v2606 = vrcp.pop %v2350
      %v2607 = vrcp.pop %v2351
      %v2608 = vrcp.pop %v2352
      %v2609 = vrcp.pop %v2353
      %v2610 = vrcp.pop %v2354
      %v2611 = vrcp.pop %v2355
      %v2612 = vrcp.pop %v2356
      %v2613 = vrcp.pop %v2357
      %v2614 = vrcp.pop %v2358
      %v2615 = vrcp.pop %v2359
      %v2616 = vrcp.pop %v2360
      %v2617 = vrcp.pop %v2361
      %v2618 = vrcp.pop %v2362
      %v2619 = vrcp.pop %v2363
      %v2620 = vrcp.pop %v2364
      %v2621 = vrcp.pop %v2365
      %v2622 = vrcp.pop %v2366
      %v2623 = vrcp.pop %v2367
      %v2624 = vrcp.pop %v2368
      %v2625 = vrcp.pop %v2369
      %v2626 = vrcp.pop %v2370
      %v2627 = vrcp.pop %v2371
      %v2628 = vrcp.pop %v2372
      %v2629 = vrcp.pop %v2373
      %v2630 = vrcp.pop %v2374
      %v2631 = vrcp.pop %v2375
      %v2632 = vrcp.pop %v2376
      %v2633 = vrcp.pop %v2377
      %v2634 = vrcp.pop %v2378
      %v2635 = vrcp.pop %v2379
      %v2636 = vrcp.pop %v2380
      %v2637 = vrcp.pop %v2381
      %v2638 = vrcp.pop %v2382
      %v2639 = vrcp.pop %v2383
      %v2640 = vrcp.pop %v2384
      %v2641 = vrcp.pop %v2385
      %v2642 = vrcp.pop %v2386
      %v2643 = vrcp.pop %v2387
      %v2644 = vrcp.pop %v2388
      %v2645 = vrcp.pop %v2389
      %v2646 = vrcp.pop %v2390
      %v2647 = vrcp.pop %v2391
      %v2648 = vrcp.pop %v2392
      %v2649 = vrcp.pop %v2393
      %v2650 = vrcp.pop %v2394
      %v2651 = vrcp.pop %v2395
      %v2652 = vrcp.pop %v2396
      %v2653 = vrcp.pop %v2397
      %v2654 = vrcp.pop %v2398
      %v2655 = vrcp.pop %v2399
      %v2656 = vrcp.pop %v2400
      %v2657 = vrcp.pop %v2401
      %v2658 = vrcp.pop %v2402
      %v2659 = vrcp.pop %v2403
      %v2660 = vrcp.pop %v2404
      %v2661 = vrcp.pop %v2405
      %v2662 = vrcp.pop %v2406
      %v2663 = vrcp.pop %v2407
      %v2664 = vrcp.pop %v2408
      %v2665 = vrcp.pop %v2409
      %v2666 = vrcp.pop %v2410
      %v2667 = vrcp.pop %v2411
      %v2668 = vrcp.pop %v2412
      %v2669 = vrcp.pop %v2413
      %v2670 = vrcp.pop %v2414
      %v2671 = vrcp.pop %v2415
      %v2672 = vrcp.pop %v2416
      %v2673 = vrcp.pop %v2417
      %v2674 = vrcp.pop %v2418
      %v2675 = vrcp.pop %v2419
      %v2676 = vrcp.pop %v2420
      %v2677 = vrcp.pop %v2421
      %v2678 = vrcp.pop %v2422
      %v2679 = vrcp.pop %v2423
      %v2680 = vrcp.pop %v2424
      %v2681 = vrcp.pop %v2425
      %v2682 = vrcp.pop %v2426
      %v2683 = vrcp.pop %v2427
      %v2684 = vrcp.pop %v2428
      %v2685 = vrcp.pop %v2429
      %v2686 = vrcp.pop %v2430
      %v2687 = vrcp.pop %v2431
      %v2688 = vrcp.pop %v2432
      %v2689 = vrcp.pop %v2433
      %v2690 = vrcp.pop %v2434
      %v2691 = vrcp.pop %v2435
      %v2692 = vrcp.pop %v2436
      %v2693 = vrcp.pop %v2437
      %v2694 = vrcp.pop %v2438
      %v2695 = vrcp.pop %v2439
      %v2696 = vrcp.pop %v2440
      %v2697 = vrcp.pop %v2441
      %v2698 = vrcp.pop %v2442
      %v2699 = vrcp.pop %v2443
      %v2700 = vrcp.pop %v2444
      %v2701 = vrcp.pop %v2445
      %v2702 = vrcp.pop %v2446
      %v2703 = vmul.f32 %v2191, %v2447
      %v2704 = vmul.f32 %v2192, %v2448
      %v2705 = vmul.f32 %v2193, %v2449
      %v2706 = vmul.f32 %v2194, %v2450
      %v2707 = vmul.f32 %v2195, %v2451
      %v2708 = vmul.f32 %v2196, %v2452
      %v2709 = vmul.f32 %v2197, %v2453
      %v2710 = vmul.f32 %v2198, %v2454
      %v2711 = vmul.f32 %v2199, %v2455
      %v2712 = vmul.f32 %v2200, %v2456
      %v2713 = vmul.f32 %v2201, %v2457
      %v2714 = vmul.f32 %v2202, %v2458
      %v2715 = vmul.f32 %v2203, %v2459
      %v2716 = vmul.f32 %v2204, %v2460
      %v2717 = vmul.f32 %v2205, %v2461
      %v2718 = vmul.f32 %v2206, %v2462
      %v2719 = vmul.f32 %v2207, %v2463
      %v2720 = vmul.f32 %v2208, %v2464
      %v2721 = vmul.f32 %v2209, %v2465
      %v2722 = vmul.f32 %v2210, %v2466
      %v2723 = vmul.f32 %v2211, %v2467
      %v2724 = vmul.f32 %v2212, %v2468
      %v2725 = vmul.f32 %v2213, %v2469
      %v2726 = vmul.f32 %v2214, %v2470
      %v2727 = vmul.f32 %v2215, %v2471
      %v2728 = vmul.f32 %v2216, %v2472
      %v2729 = vmul.f32 %v2217, %v2473
      %v2730 = vmul.f32 %v2218, %v2474
      %v2731 = vmul.f32 %v2219, %v2475
      %v2732 = vmul.f32 %v2220, %v2476
      %v2733 = vmul.f32 %v2221, %v2477
      %v2734 = vmul.f32 %v2222, %v2478
      %v2735 = vmul.f32 %v2223, %v2479
      %v2736 = vmul.f32 %v2224, %v2480
      %v2737 = vmul.f32 %v2225, %v2481
      %v2738 = vmul.f32 %v2226, %v2482
      %v2739 = vmul.f32 %v2227, %v2483
      %v2740 = vmul.f32 %v2228, %v2484
      %v2741 = vmul.f32 %v2229, %v2485
      %v2742 = vmul.f32 %v2230, %v2486
      %v2743 = vmul.f32 %v2231, %v2487
      %v2744 = vmul.f32 %v2232, %v2488
      %v2745 = vmul.f32 %v2233, %v2489
      %v2746 = vmul.f32 %v2234, %v2490
      %v2747 = vmul.f32 %v2235, %v2491
      %v2748 = vmul.f32 %v2236, %v2492
      %v2749 = vmul.f32 %v2237, %v2493
      %v2750 = vmul.f32 %v2238, %v2494
      %v2751 = vmul.f32 %v2239, %v2495
      %v2752 = vmul.f32 %v2240, %v2496
      %v2753 = vmul.f32 %v2241, %v2497
      %v2754 = vmul.f32 %v2242, %v2498
      %v2755 = vmul.f32 %v2243, %v2499
      %v2756 = vmul.f32 %v2244, %v2500
      %v2757 = vmul.f32 %v2245, %v2501
      %v2758 = vmul.f32 %v2246, %v2502
      %v2759 = vmul.f32 %v2247, %v2503
      %v2760 = vmul.f32 %v2248, %v2504
      %v2761 = vmul.f32 %v2249, %v2505
      %v2762 = vmul.f32 %v2250, %v2506
      %v2763 = vmul.f32 %v2251, %v2507
      %v2764 = vmul.f32 %v2252, %v2508
      %v2765 = vmul.f32 %v2253, %v2509
      %v2766 = vmul.f32 %v2254, %v2510
      %v2767 = vmul.f32 %v2255, %v2511
      %v2768 = vmul.f32 %v2256, %v2512
      %v2769 = vmul.f32 %v2257, %v2513
      %v2770 = vmul.f32 %v2258, %v2514
      %v2771 = vmul.f32 %v2259, %v2515
      %v2772 = vmul.f32 %v2260, %v2516
      %v2773 = vmul.f32 %v2261, %v2517
      %v2774 = vmul.f32 %v2262, %v2518
      %v2775 = vmul.f32 %v2263, %v2519
      %v2776 = vmul.f32 %v2264, %v2520
      %v2777 = vmul.f32 %v2265, %v2521
      %v2778 = vmul.f32 %v2266, %v2522
      %v2779 = vmul.f32 %v2267, %v2523
      %v2780 = vmul.f32 %v2268, %v2524
      %v2781 = vmul.f32 %v2269, %v2525
      %v2782 = vmul.f32 %v2270, %v2526
      %v2783 = vmul.f32 %v2271, %v2527
      %v2784 = vmul.f32 %v2272, %v2528
      %v2785 = vmul.f32 %v2273, %v2529
      %v2786 = vmul.f32 %v2274, %v2530
      %v2787 = vmul.f32 %v2275, %v2531
      %v2788 = vmul.f32 %v2276, %v2532
      %v2789 = vmul.f32 %v2277, %v2533
      %v2790 = vmul.f32 %v2278, %v2534
      %v2791 = vmul.f32 %v2279, %v2535
      %v2792 = vmul.f32 %v2280, %v2536
      %v2793 = vmul.f32 %v2281, %v2537
      %v2794 = vmul.f32 %v2282, %v2538
      %v2795 = vmul.f32 %v2283, %v2539
      %v2796 = vmul.f32 %v2284, %v2540
      %v2797 = vmul.f32 %v2285, %v2541
      %v2798 = vmul.f32 %v2286, %v2542
      %v2799 = vmul.f32 %v2287, %v2543
      %v2800 = vmul.f32 %v2288, %v2544
      %v2801 = vmul.f32 %v2289, %v2545
      %v2802 = vmul.f32 %v2290, %v2546
      %v2803 = vmul.f32 %v2291, %v2547
      %v2804 = vmul.f32 %v2292, %v2548
      %v2805 = vmul.f32 %v2293, %v2549
      %v2806 = vmul.f32 %v2294, %v2550
      %v2807 = vmul.f32 %v2295, %v2551
      %v2808 = vmul.f32 %v2296, %v2552
      %v2809 = vmul.f32 %v2297, %v2553
      %v2810 = vmul.f32 %v2298, %v2554
      %v2811 = vmul.f32 %v2299, %v2555
      %v2812 = vmul.f32 %v2300, %v2556
      %v2813 = vmul.f32 %v2301, %v2557
      %v2814 = vmul.f32 %v2302, %v2558
      %v2815 = vmul.f32 %v2303, %v2559
      %v2816 = vmul.f32 %v2304, %v2560
      %v2817 = vmul.f32 %v2305, %v2561
      %v2818 = vmul.f32 %v2306, %v2562
      %v2819 = vmul.f32 %v2307, %v2563
      %v2820 = vmul.f32 %v2308, %v2564
      %v2821 = vmul.f32 %v2309, %v2565
      %v2822 = vmul.f32 %v2310, %v2566
      %v2823 = vmul.f32 %v2311, %v2567
      %v2824 = vmul.f32 %v2312, %v2568
      %v2825 = vmul.f32 %v2313, %v2569
      %v2826 = vmul.f32 %v2314, %v2570
      %v2827 = vmul.f32 %v2315, %v2571
      %v2828 = vmul.f32 %v2316, %v2572
      %v2829 = vmul.f32 %v2317, %v2573
      %v2830 = vmul.f32 %v2318, %v2574
      %v2831 = vmul.f32 %v2319, %v2575
      %v2832 = vmul.f32 %v2320, %v2576
      %v2833 = vmul.f32 %v2321, %v2577
      %v2834 = vmul.f32 %v2322, %v2578
      %v2835 = vmul.f32 %v2323, %v2579
      %v2836 = vmul.f32 %v2324, %v2580
      %v2837 = vmul.f32 %v2325, %v2581
      %v2838 = vmul.f32 %v2326, %v2582
      %v2839 = vmul.f32 %v2327, %v2583
      %v2840 = vmul.f32 %v2328, %v2584
      %v2841 = vmul.f32 %v2329, %v2585
      %v2842 = vmul.f32 %v2330, %v2586
      %v2843 = vmul.f32 %v2331, %v2587
      %v2844 = vmul.f32 %v2332, %v2588
      %v2845 = vmul.f32 %v2333, %v2589
      %v2846 = vmul.f32 %v2334, %v2590
      %v2847 = vmul.f32 %v2335, %v2591
      %v2848 = vmul.f32 %v2336, %v2592
      %v2849 = vmul.f32 %v2337, %v2593
      %v2850 = vmul.f32 %v2338, %v2594
      %v2851 = vmul.f32 %v2339, %v2595
      %v2852 = vmul.f32 %v2340, %v2596
      %v2853 = vmul.f32 %v2341, %v2597
      %v2854 = vmul.f32 %v2342, %v2598
      %v2855 = vmul.f32 %v2343, %v2599
      %v2856 = vmul.f32 %v2344, %v2600
      %v2857 = vmul.f32 %v2345, %v2601
      %v2858 = vmul.f32 %v2346, %v2602
      %v2859 = vmul.f32 %v2347, %v2603
      %v2860 = vmul.f32 %v2348, %v2604
      %v2861 = vmul.f32 %v2349, %v2605
      %v2862 = vmul.f32 %v2350, %v2606
      %v2863 = vmul.f32 %v2351, %v2607
      %v2864 = vmul.f32 %v2352, %v2608
      %v2865 = vmul.f32 %v2353, %v2609
      %v2866 = vmul.f32 %v2354, %v2610
      %v2867 = vmul.f32 %v2355, %v2611
      %v2868 = vmul.f32 %v2356, %v2612
      %v2869 = vmul.f32 %v2357, %v2613
      %v2870 = vmul.f32 %v2358, %v2614
      %v2871 = vmul.f32 %v2359, %v2615
      %v2872 = vmul.f32 %v2360, %v2616
      %v2873 = vmul.f32 %v2361, %v2617
      %v2874 = vmul.f32 %v2362, %v2618
      %v2875 = vmul.f32 %v2363, %v2619
      %v2876 = vmul.f32 %v2364, %v2620
      %v2877 = vmul.f32 %v2365, %v2621
      %v2878 = vmul.f32 %v2366, %v2622
      %v2879 = vmul.f32 %v2367, %v2623
      %v2880 = vmul.f32 %v2368, %v2624
      %v2881 = vmul.f32 %v2369, %v2625
      %v2882 = vmul.f32 %v2370, %v2626
      %v2883 = vmul.f32 %v2371, %v2627
      %v2884 = vmul.f32 %v2372, %v2628
      %v2885 = vmul.f32 %v2373, %v2629
      %v2886 = vmul.f32 %v2374, %v2630
      %v2887 = vmul.f32 %v2375, %v2631
      %v2888 = vmul.f32 %v2376, %v2632
      %v2889 = vmul.f32 %v2377, %v2633
      %v2890 = vmul.f32 %v2378, %v2634
      %v2891 = vmul.f32 %v2379, %v2635
      %v2892 = vmul.f32 %v2380, %v2636
      %v2893 = vmul.f32 %v2381, %v2637
      %v2894 = vmul.f32 %v2382, %v2638
      %v2895 = vmul.f32 %v2383, %v2639
      %v2896 = vmul.f32 %v2384, %v2640
      %v2897 = vmul.f32 %v2385, %v2641
      %v2898 = vmul.f32 %v2386, %v2642
      %v2899 = vmul.f32 %v2387, %v2643
      %v2900 = vmul.f32 %v2388, %v2644
      %v2901 = vmul.f32 %v2389, %v2645
      %v2902 = vmul.f32 %v2390, %v2646
      %v2903 = vmul.f32 %v2391, %v2647
      %v2904 = vmul.f32 %v2392, %v2648
      %v2905 = vmul.f32 %v2393, %v2649
      %v2906 = vmul.f32 %v2394, %v2650
      %v2907 = vmul.f32 %v2395, %v2651
      %v2908 = vmul.f32 %v2396, %v2652
      %v2909 = vmul.f32 %v2397, %v2653
      %v2910 = vmul.f32 %v2398, %v2654
      %v2911 = vmul.f32 %v2399, %v2655
      %v2912 = vmul.f32 %v2400, %v2656
      %v2913 = vmul.f32 %v2401, %v2657
      %v2914 = vmul.f32 %v2402, %v2658
      %v2915 = vmul.f32 %v2403, %v2659
      %v2916 = vmul.f32 %v2404, %v2660
      %v2917 = vmul.f32 %v2405, %v2661
      %v2918 = vmul.f32 %v2406, %v2662
      %v2919 = vmul.f32 %v2407, %v2663
      %v2920 = vmul.f32 %v2408, %v2664
      %v2921 = vmul.f32 %v2409, %v2665
      %v2922 = vmul.f32 %v2410, %v2666
      %v2923 = vmul.f32 %v2411, %v2667
      %v2924 = vmul.f32 %v2412, %v2668
      %v2925 = vmul.f32 %v2413, %v2669
      %v2926 = vmul.f32 %v2414, %v2670
      %v2927 = vmul.f32 %v2415, %v2671
      %v2928 = vmul.f32 %v2416, %v2672
      %v2929 = vmul.f32 %v2417, %v2673
      %v2930 = vmul.f32 %v2418, %v2674
      %v2931 = vmul.f32 %v2419, %v2675
      %v2932 = vmul.f32 %v2420, %v2676
      %v2933 = vmul.f32 %v2421, %v2677
      %v2934 = vmul.f32 %v2422, %v2678
      %v2935 = vmul.f32 %v2423, %v2679
      %v2936 = vmul.f32 %v2424, %v2680
      %v2937 = vmul.f32 %v2425, %v2681
      %v2938 = vmul.f32 %v2426, %v2682
      %v2939 = vmul.f32 %v2427, %v2683
      %v2940 = vmul.f32 %v2428, %v2684
      %v2941 = vmul.f32 %v2429, %v2685
      %v2942 = vmul.f32 %v2430, %v2686
      %v2943 = vmul.f32 %v2431, %v2687
      %v2944 = vmul.f32 %v2432, %v2688
      %v2945 = vmul.f32 %v2433, %v2689
      %v2946 = vmul.f32 %v2434, %v2690
      %v2947 = vmul.f32 %v2435, %v2691
      %v2948 = vmul.f32 %v2436, %v2692
      %v2949 = vmul.f32 %v2437, %v2693
      %v2950 = vmul.f32 %v2438, %v2694
      %v2951 = vmul.f32 %v2439, %v2695
      %v2952 = vmul.f32 %v2440, %v2696
      %v2953 = vmul.f32 %v2441, %v2697
      %v2954 = vmul.f32 %v2442, %v2698
      %v2955 = vmul.f32 %v2443, %v2699
      %v2956 = vmul.f32 %v2444, %v2700
      %v2957 = vmul.f32 %v2445, %v2701
      %v2958 = vmul.f32 %v2446, %v2702
      %v2959 = vsub.f32 2.0, %v2703
      %v2960 = vsub.f32 2.0, %v2704
      %v2961 = vsub.f32 2.0, %v2705
      %v2962 = vsub.f32 2.0, %v2706
      %v2963 = vsub.f32 2.0, %v2707
      %v2964 = vsub.f32 2.0, %v2708
      %v2965 = vsub.f32 2.0, %v2709
      %v2966 = vsub.f32 2.0, %v2710
      %v2967 = vsub.f32 2.0, %v2711
      %v2968 = vsub.f32 2.0, %v2712
      %v2969 = vsub.f32 2.0, %v2713
      %v2970 = vsub.f32 2.0, %v2714
      %v2971 = vsub.f32 2.0, %v2715
      %v2972 = vsub.f32 2.0, %v2716
      %v2973 = vsub.f32 2.0, %v2717
      %v2974 = vsub.f32 2.0, %v2718
      %v2975 = vsub.f32 2.0, %v2719
      %v2976 = vsub.f32 2.0, %v2720
      %v2977 = vsub.f32 2.0, %v2721
      %v2978 = vsub.f32 2.0, %v2722
      %v2979 = vsub.f32 2.0, %v2723
      %v2980 = vsub.f32 2.0, %v2724
      %v2981 = vsub.f32 2.0, %v2725
      %v2982 = vsub.f32 2.0, %v2726
      %v2983 = vsub.f32 2.0, %v2727
      %v2984 = vsub.f32 2.0, %v2728
      %v2985 = vsub.f32 2.0, %v2729
      %v2986 = vsub.f32 2.0, %v2730
      %v2987 = vsub.f32 2.0, %v2731
      %v2988 = vsub.f32 2.0, %v2732
      %v2989 = vsub.f32 2.0, %v2733
      %v2990 = vsub.f32 2.0, %v2734
      %v2991 = vsub.f32 2.0, %v2735
      %v2992 = vsub.f32 2.0, %v2736
      %v2993 = vsub.f32 2.0, %v2737
      %v2994 = vsub.f32 2.0, %v2738
      %v2995 = vsub.f32 2.0, %v2739
      %v2996 = vsub.f32 2.0, %v2740
      %v2997 = vsub.f32 2.0, %v2741
      %v2998 = vsub.f32 2.0, %v2742
      %v2999 = vsub.f32 2.0, %v2743
      %v3000 = vsub.f32 2.0, %v2744
      %v3001 = vsub.f32 2.0, %v2745
      %v3002 = vsub.f32 2.0, %v2746
      %v3003 = vsub.f32 2.0, %v2747
      %v3004 = vsub.f32 2.0, %v2748
      %v3005 = vsub.f32 2.0, %v2749
      %v3006 = vsub.f32 2.0, %v2750
      %v3007 = vsub.f32 2.0, %v2751
      %v3008 = vsub.f32 2.0, %v2752
      %v3009 = vsub.f32 2.0, %v2753
      %v3010 = vsub.f32 2.0, %v2754
      %v3011 = vsub.f32 2.0, %v2755
      %v3012 = vsub.f32 2.0, %v2756
      %v3013 = vsub.f32 2.0, %v2757
      %v3014 = vsub.f32 2.0, %v2758
      %v3015 = vsub.f32 2.0, %v2759
      %v3016 = vsub.f32 2.0, %v2760
      %v3017 = vsub.f32 2.0, %v2761
      %v3018 = vsub.f32 2.0, %v2762
      %v3019 = vsub.f32 2.0, %v2763
      %v3020 = vsub.f32 2.0, %v2764
      %v3021 = vsub.f32 2.0, %v2765
      %v3022 = vsub.f32 2.0, %v2766
      %v3023 = vsub.f32 2.0, %v2767
      %v3024 = vsub.f32 2.0, %v2768
      %v3025 = vsub.f32 2.0, %v2769
      %v3026 = vsub.f32 2.0, %v2770
      %v3027 = vsub.f32 2.0, %v2771
      %v3028 = vsub.f32 2.0, %v2772
      %v3029 = vsub.f32 2.0, %v2773
      %v3030 = vsub.f32 2.0, %v2774
      %v3031 = vsub.f32 2.0, %v2775
      %v3032 = vsub.f32 2.0, %v2776
      %v3033 = vsub.f32 2.0, %v2777
      %v3034 = vsub.f32 2.0, %v2778
      %v3035 = vsub.f32 2.0, %v2779
      %v3036 = vsub.f32 2.0, %v2780
      %v3037 = vsub.f32 2.0, %v2781
      %v3038 = vsub.f32 2.0, %v2782
      %v3039 = vsub.f32 2.0, %v2783
      %v3040 = vsub.f32 2.0, %v2784
      %v3041 = vsub.f32 2.0, %v2785
      %v3042 = vsub.f32 2.0, %v2786
      %v3043 = vsub.f32 2.0, %v2787
      %v3044 = vsub.f32 2.0, %v2788
      %v3045 = vsub.f32 2.0, %v2789
      %v3046 = vsub.f32 2.0, %v2790
      %v3047 = vsub.f32 2.0, %v2791
      %v3048 = vsub.f32 2.0, %v2792
      %v3049 = vsub.f32 2.0, %v2793
      %v3050 = vsub.f32 2.0, %v2794
      %v3051 = vsub.f32 2.0, %v2795
      %v3052 = vsub.f32 2.0, %v2796
      %v3053 = vsub.f32 2.0, %v2797
      %v3054 = vsub.f32 2.0, %v2798
      %v3055 = vsub.f32 2.0, %v2799
      %v3056 = vsub.f32 2.0, %v2800
      %v3057 = vsub.f32 2.0, %v2801
      %v3058 = vsub.f32 2.0, %v2802
      %v3059 = vsub.f32 2.0, %v2803
      %v3060 = vsub.f32 2.0, %v2804
      %v3061 = vsub.f32 2.0, %v2805
      %v3062 = vsub.f32 2.0, %v2806
      %v3063 = vsub.f32 2.0, %v2807
      %v3064 = vsub.f32 2.0, %v2808
      %v3065 = vsub.f32 2.0, %v2809
      %v3066 = vsub.f32 2.0, %v2810
      %v3067 = vsub.f32 2.0, %v2811
      %v3068 = vsub.f32 2.0, %v2812
      %v3069 = vsub.f32 2.0, %v2813
      %v3070 = vsub.f32 2.0, %v2814
      %v3071 = vsub.f32 2.0, %v2815
      %v3072 = vsub.f32 2.0, %v2816
      %v3073 = vsub.f32 2.0, %v2817
      %v3074 = vsub.f32 2.0, %v2818
      %v3075 = vsub.f32 2.0, %v2819
      %v3076 = vsub.f32 2.0, %v2820
      %v3077 = vsub.f32 2.0, %v2821
      %v3078 = vsub.f32 2.0, %v2822
      %v3079 = vsub.f32 2.0, %v2823
      %v3080 = vsub.f32 2.0, %v2824
      %v3081 = vsub.f32 2.0, %v2825
      %v3082 = vsub.f32 2.0, %v2826
      %v3083 = vsub.f32 2.0, %v2827
      %v3084 = vsub.f32 2.0, %v2828
      %v3085 = vsub.f32 2.0, %v2829
      %v3086 = vsub.f32 2.0, %v2830
      %v3087 = vsub.f32 2.0, %v2831
      %v3088 = vsub.f32 2.0, %v2832
      %v3089 = vsub.f32 2.0, %v2833
      %v3090 = vsub.f32 2.0, %v2834
      %v3091 = vsub.f32 2.0, %v2835
      %v3092 = vsub.f32 2.0, %v2836
      %v3093 = vsub.f32 2.0, %v2837
      %v3094 = vsub.f32 2.0, %v2838
      %v3095 = vsub.f32 2.0, %v2839
      %v3096 = vsub.f32 2.0, %v2840
      %v3097 = vsub.f32 2.0, %v2841
      %v3098 = vsub.f32 2.0, %v2842
      %v3099 = vsub.f32 2.0, %v2843
      %v3100 = vsub.f32 2.0, %v2844
      %v3101 = vsub.f32 2.0, %v2845
      %v3102 = vsub.f32 2.0, %v2846
      %v3103 = vsub.f32 2.0, %v2847
      %v3104 = vsub.f32 2.0, %v2848
      %v3105 = vsub.f32 2.0, %v2849
      %v3106 = vsub.f32 2.0, %v2850
      %v3107 = vsub.f32 2.0, %v2851
      %v3108 = vsub.f32 2.0, %v2852
      %v3109 = vsub.f32 2.0, %v2853
      %v3110 = vsub.f32 2.0, %v2854
      %v3111 = vsub.f32 2.0, %v2855
      %v3112 = vsub.f32 2.0, %v2856
      %v3113 = vsub.f32 2.0, %v2857
      %v3114 = vsub.f32 2.0, %v2858
      %v3115 = vsub.f32 2.0, %v2859
      %v3116 = vsub.f32 2.0, %v2860
      %v3117 = vsub.f32 2.0, %v2861
      %v3118 = vsub.f32 2.0, %v2862
      %v3119 = vsub.f32 2.0, %v2863
      %v3120 = vsub.f32 2.0, %v2864
      %v3121 = vsub.f32 2.0, %v2865
      %v3122 = vsub.f32 2.0, %v2866
      %v3123 = vsub.f32 2.0, %v2867
      %v3124 = vsub.f32 2.0, %v2868
      %v3125 = vsub.f32 2.0, %v2869
      %v3126 = vsub.f32 2.0, %v2870
      %v3127 = vsub.f32 2.0, %v2871
      %v3128 = vsub.f32 2.0, %v2872
      %v3129 = vsub.f32 2.0, %v2873
      %v3130 = vsub.f32 2.0, %v2874
      %v3131 = vsub.f32 2.0, %v2875
      %v3132 = vsub.f32 2.0, %v2876
      %v3133 = vsub.f32 2.0, %v2877
      %v3134 = vsub.f32 2.0, %v2878
      %v3135 = vsub.f32 2.0, %v2879
      %v3136 = vsub.f32 2.0, %v2880
      %v3137 = vsub.f32 2.0, %v2881
      %v3138 = vsub.f32 2.0, %v2882
      %v3139 = vsub.f32 2.0, %v2883
      %v3140 = vsub.f32 2.0, %v2884
      %v3141 = vsub.f32 2.0, %v2885
      %v3142 = vsub.f32 2.0, %v2886
      %v3143 = vsub.f32 2.0, %v2887
      %v3144 = vsub.f32 2.0, %v2888
      %v3145 = vsub.f32 2.0, %v2889
      %v3146 = vsub.f32 2.0, %v2890
      %v3147 = vsub.f32 2.0, %v2891
      %v3148 = vsub.f32 2.0, %v2892
      %v3149 = vsub.f32 2.0, %v2893
      %v3150 = vsub.f32 2.0, %v2894
      %v3151 = vsub.f32 2.0, %v2895
      %v3152 = vsub.f32 2.0, %v2896
      %v3153 = vsub.f32 2.0, %v2897
      %v3154 = vsub.f32 2.0, %v2898
      %v3155 = vsub.f32 2.0, %v2899
      %v3156 = vsub.f32 2.0, %v2900
      %v3157 = vsub.f32 2.0, %v2901
      %v3158 = vsub.f32 2.0, %v2902
      %v3159 = vsub.f32 2.0, %v2903
      %v3160 = vsub.f32 2.0, %v2904
      %v3161 = vsub.f32 2.0, %v2905
      %v3162 = vsub.f32 2.0, %v2906
      %v3163 = vsub.f32 2.0, %v2907
      %v3164 = vsub.f32 2.0, %v2908
      %v3165 = vsub.f32 2.0, %v2909
      %v3166 = vsub.f32 2.0, %v2910
      %v3167 = vsub.f32 2.0, %v2911
      %v3168 = vsub.f32 2.0, %v2912
      %v3169 = vsub.f32 2.0, %v2913
      %v3170 = vsub.f32 2.0, %v2914
      %v3171 = vsub.f32 2.0, %v2915
      %v3172 = vsub.f32 2.0, %v2916
      %v3173 = vsub.f32 2.0, %v2917
      %v3174 = vsub.f32 2.0, %v2918
      %v3175 = vsub.f32 2.0, %v2919
      %v3176 = vsub.f32 2.0, %v2920
      %v3177 = vsub.f32 2.0, %v2921
      %v3178 = vsub.f32 2.0, %v2922
      %v3179 = vsub.f32 2.0, %v2923
      %v3180 = vsub.f32 2.0, %v2924
      %v3181 = vsub.f32 2.0, %v2925
      %v3182 = vsub.f32 2.0, %v2926
      %v3183 = vsub.f32 2.0, %v2927
      %v3184 = vsub.f32 2.0, %v2928
      %v3185 = vsub.f32 2.0, %v2929
      %v3186 = vsub.f32 2.0, %v2930
      %v3187 = vsub.f32 2.0, %v2931
      %v3188 = vsub.f32 2.0, %v2932
      %v3189 = vsub.f32 2.0, %v2933
      %v3190 = vsub.f32 2.0, %v2934
      %v3191 = vsub.f32 2.0, %v2935
      %v3192 = vsub.f32 2.0, %v2936
      %v3193 = vsub.f32 2.0, %v2937
      %v3194 = vsub.f32 2.0, %v2938
      %v3195 = vsub.f32 2.0, %v2939
      %v3196 = vsub.f32 2.0, %v2940
      %v3197 = vsub.f32 2.0, %v2941
      %v3198 = vsub.f32 2.0, %v2942
      %v3199 = vsub.f32 2.0, %v2943
      %v3200 = vsub.f32 2.0, %v2944
      %v3201 = vsub.f32 2.0, %v2945
      %v3202 = vsub.f32 2.0, %v2946
      %v3203 = vsub.f32 2.0, %v2947
      %v3204 = vsub.f32 2.0, %v2948
      %v3205 = vsub.f32 2.0, %v2949
      %v3206 = vsub.f32 2.0, %v2950
      %v3207 = vsub.f32 2.0, %v2951
      %v3208 = vsub.f32 2.0, %v2952
      %v3209 = vsub.f32 2.0, %v2953
      %v3210 = vsub.f32 2.0, %v2954
      %v3211 = vsub.f32 2.0, %v2955
      %v3212 = vsub.f32 2.0, %v2956
      %v3213 = vsub.f32 2.0, %v2957
      %v3214 = vsub.f32 2.0, %v2958
      %v3215 = vmul.f32 %v2447, %v2959
      %v3216 = vmul.f32 %v2448, %v2960
      %v3217 = vmul.f32 %v2449, %v2961
      %v3218 = vmul.f32 %v2450, %v2962
      %v3219 = vmul.f32 %v2451, %v2963
      %v3220 = vmul.f32 %v2452, %v2964
      %v3221 = vmul.f32 %v2453, %v2965
      %v3222 = vmul.f32 %v2454, %v2966
      %v3223 = vmul.f32 %v2455, %v2967
      %v3224 = vmul.f32 %v2456, %v2968
      %v3225 = vmul.f32 %v2457, %v2969
      %v3226 = vmul.f32 %v2458, %v2970
      %v3227 = vmul.f32 %v2459, %v2971
      %v3228 = vmul.f32 %v2460, %v2972
      %v3229 = vmul.f32 %v2461, %v2973
      %v3230 = vmul.f32 %v2462, %v2974
      %v3231 = vmul.f32 %v2463, %v2975
      %v3232 = vmul.f32 %v2464, %v2976
      %v3233 = vmul.f32 %v2465, %v2977
      %v3234 = vmul.f32 %v2466, %v2978
      %v3235 = vmul.f32 %v2467, %v2979
      %v3236 = vmul.f32 %v2468, %v2980
      %v3237 = vmul.f32 %v2469, %v2981
      %v3238 = vmul.f32 %v2470, %v2982
      %v3239 = vmul.f32 %v2471, %v2983
      %v3240 = vmul.f32 %v2472, %v2984
      %v3241 = vmul.f32 %v2473, %v2985
      %v3242 = vmul.f32 %v2474, %v2986
      %v3243 = vmul.f32 %v2475, %v2987
      %v3244 = vmul.f32 %v2476, %v2988
      %v3245 = vmul.f32 %v2477, %v2989
      %v3246 = vmul.f32 %v2478, %v2990
      %v3247 = vmul.f32 %v2479, %v2991
      %v3248 = vmul.f32 %v2480, %v2992
      %v3249 = vmul.f32 %v2481, %v2993
      %v3250 = vmul.f32 %v2482, %v2994
      %v3251 = vmul.f32 %v2483, %v2995
      %v3252 = vmul.f32 %v2484, %v2996
      %v3253 = vmul.f32 %v2485, %v2997
      %v3254 = vmul.f32 %v2486, %v2998
      %v3255 = vmul.f32 %v2487, %v2999
      %v3256 = vmul.f32 %v2488, %v3000
      %v3257 = vmul.f32 %v2489, %v3001
      %v3258 = vmul.f32 %v2490, %v3002
      %v3259 = vmul.f32 %v2491, %v3003
      %v3260 = vmul.f32 %v2492, %v3004
      %v3261 = vmul.f32 %v2493, %v3005
      %v3262 = vmul.f32 %v2494, %v3006
      %v3263 = vmul.f32 %v2495, %v3007
      %v3264 = vmul.f32 %v2496, %v3008
      %v3265 = vmul.f32 %v2497, %v3009
      %v3266 = vmul.f32 %v2498, %v3010
      %v3267 = vmul.f32 %v2499, %v3011
      %v3268 = vmul.f32 %v2500, %v3012
      %v3269 = vmul.f32 %v2501, %v3013
      %v3270 = vmul.f32 %v2502, %v3014
      %v3271 = vmul.f32 %v2503, %v3015
      %v3272 = vmul.f32 %v2504, %v3016
      %v3273 = vmul.f32 %v2505, %v3017
      %v3274 = vmul.f32 %v2506, %v3018
      %v3275 = vmul.f32 %v2507, %v3019
      %v3276 = vmul.f32 %v2508, %v3020
      %v3277 = vmul.f32 %v2509, %v3021
      %v3278 = vmul.f32 %v2510, %v3022
      %v3279 = vmul.f32 %v2511, %v3023
      %v3280 = vmul.f32 %v2512, %v3024
      %v3281 = vmul.f32 %v2513, %v3025
      %v3282 = vmul.f32 %v2514, %v3026
      %v3283 = vmul.f32 %v2515, %v3027
      %v3284 = vmul.f32 %v2516, %v3028
      %v3285 = vmul.f32 %v2517, %v3029
      %v3286 = vmul.f32 %v2518, %v3030
      %v3287 = vmul.f32 %v2519, %v3031
      %v3288 = vmul.f32 %v2520, %v3032
      %v3289 = vmul.f32 %v2521, %v3033
      %v3290 = vmul.f32 %v2522, %v3034
      %v3291 = vmul.f32 %v2523, %v3035
      %v3292 = vmul.f32 %v2524, %v3036
      %v3293 = vmul.f32 %v2525, %v3037
      %v3294 = vmul.f32 %v2526, %v3038
      %v3295 = vmul.f32 %v2527, %v3039
      %v3296 = vmul.f32 %v2528, %v3040
      %v3297 = vmul.f32 %v2529, %v3041
      %v3298 = vmul.f32 %v2530, %v3042
      %v3299 = vmul.f32 %v2531, %v3043
      %v3300 = vmul.f32 %v2532, %v3044
      %v3301 = vmul.f32 %v2533, %v3045
      %v3302 = vmul.f32 %v2534, %v3046
      %v3303 = vmul.f32 %v2535, %v3047
      %v3304 = vmul.f32 %v2536, %v3048
      %v3305 = vmul.f32 %v2537, %v3049
      %v3306 = vmul.f32 %v2538, %v3050
      %v3307 = vmul.f32 %v2539, %v3051
      %v3308 = vmul.f32 %v2540, %v3052
      %v3309 = vmul.f32 %v2541, %v3053
      %v3310 = vmul.f32 %v2542, %v3054
      %v3311 = vmul.f32 %v2543, %v3055
      %v3312 = vmul.f32 %v2544, %v3056
      %v3313 = vmul.f32 %v2545, %v3057
      %v3314 = vmul.f32 %v2546, %v3058
      %v3315 = vmul.f32 %v2547, %v3059
      %v3316 = vmul.f32 %v2548, %v3060
      %v3317 = vmul.f32 %v2549, %v3061
      %v3318 = vmul.f32 %v2550, %v3062
      %v3319 = vmul.f32 %v2551, %v3063
      %v3320 = vmul.f32 %v2552, %v3064
      %v3321 = vmul.f32 %v2553, %v3065
      %v3322 = vmul.f32 %v2554, %v3066
      %v3323 = vmul.f32 %v2555, %v3067
      %v3324 = vmul.f32 %v2556, %v3068
      %v3325 = vmul.f32 %v2557, %v3069
      %v3326 = vmul.f32 %v2558, %v3070
      %v3327 = vmul.f32 %v2559, %v3071
      %v3328 = vmul.f32 %v2560, %v3072
      %v3329 = vmul.f32 %v2561, %v3073
      %v3330 = vmul.f32 %v2562, %v3074
      %v3331 = vmul.f32 %v2563, %v3075
      %v3332 = vmul.f32 %v2564, %v3076
      %v3333 = vmul.f32 %v2565, %v3077
      %v3334 = vmul.f32 %v2566, %v3078
      %v3335 = vmul.f32 %v2567, %v3079
      %v3336 = vmul.f32 %v2568, %v3080
      %v3337 = vmul.f32 %v2569, %v3081
      %v3338 = vmul.f32 %v2570, %v3082
      %v3339 = vmul.f32 %v2571, %v3083
      %v3340 = vmul.f32 %v2572, %v3084
      %v3341 = vmul.f32 %v2573, %v3085
      %v3342 = vmul.f32 %v2574, %v3086
      %v3343 = vmul.f32 %v2575, %v3087
      %v3344 = vmul.f32 %v2576, %v3088
      %v3345 = vmul.f32 %v2577, %v3089
      %v3346 = vmul.f32 %v2578, %v3090
      %v3347 = vmul.f32 %v2579, %v3091
      %v3348 = vmul.f32 %v2580, %v3092
      %v3349 = vmul.f32 %v2581, %v3093
      %v3350 = vmul.f32 %v2582, %v3094
      %v3351 = vmul.f32 %v2583, %v3095
      %v3352 = vmul.f32 %v2584, %v3096
      %v3353 = vmul.f32 %v2585, %v3097
      %v3354 = vmul.f32 %v2586, %v3098
      %v3355 = vmul.f32 %v2587, %v3099
      %v3356 = vmul.f32 %v2588, %v3100
      %v3357 = vmul.f32 %v2589, %v3101
      %v3358 = vmul.f32 %v2590, %v3102
      %v3359 = vmul.f32 %v2591, %v3103
      %v3360 = vmul.f32 %v2592, %v3104
      %v3361 = vmul.f32 %v2593, %v3105
      %v3362 = vmul.f32 %v2594, %v3106
      %v3363 = vmul.f32 %v2595, %v3107
      %v3364 = vmul.f32 %v2596, %v3108
      %v3365 = vmul.f32 %v2597, %v3109
      %v3366 = vmul.f32 %v2598, %v3110
      %v3367 = vmul.f32 %v2599, %v3111
      %v3368 = vmul.f32 %v2600, %v3112
      %v3369 = vmul.f32 %v2601, %v3113
      %v3370 = vmul.f32 %v2602, %v3114
      %v3371 = vmul.f32 %v2603, %v3115
      %v3372 = vmul.f32 %v2604, %v3116
      %v3373 = vmul.f32 %v2605, %v3117
      %v3374 = vmul.f32 %v2606, %v3118
      %v3375 = vmul.f32 %v2607, %v3119
      %v3376 = vmul.f32 %v2608, %v3120
      %v3377 = vmul.f32 %v2609, %v3121
      %v3378 = vmul.f32 %v2610, %v3122
      %v3379 = vmul.f32 %v2611, %v3123
      %v3380 = vmul.f32 %v2612, %v3124
      %v3381 = vmul.f32 %v2613, %v3125
      %v3382 = vmul.f32 %v2614, %v3126
      %v3383 = vmul.f32 %v2615, %v3127
      %v3384 = vmul.f32 %v2616, %v3128
      %v3385 = vmul.f32 %v2617, %v3129
      %v3386 = vmul.f32 %v2618, %v3130
      %v3387 = vmul.f32 %v2619, %v3131
      %v3388 = vmul.f32 %v2620, %v3132
      %v3389 = vmul.f32 %v2621, %v3133
      %v3390 = vmul.f32 %v2622, %v3134
      %v3391 = vmul.f32 %v2623, %v3135
      %v3392 = vmul.f32 %v2624, %v3136
      %v3393 = vmul.f32 %v2625, %v3137
      %v3394 = vmul.f32 %v2626, %v3138
      %v3395 = vmul.f32 %v2627, %v3139
      %v3396 = vmul.f32 %v2628, %v3140
      %v3397 = vmul.f32 %v2629, %v3141
      %v3398 = vmul.f32 %v2630, %v3142
      %v3399 = vmul.f32 %v2631, %v3143
      %v3400 = vmul.f32 %v2632, %v3144
      %v3401 = vmul.f32 %v2633, %v3145
      %v3402 = vmul.f32 %v2634, %v3146
      %v3403 = vmul.f32 %v2635, %v3147
      %v3404 = vmul.f32 %v2636, %v3148
      %v3405 = vmul.f32 %v2637, %v3149
      %v3406 = vmul.f32 %v2638, %v3150
      %v3407 = vmul.f32 %v2639, %v3151
      %v3408 = vmul.f32 %v2640, %v3152
      %v3409 = vmul.f32 %v2641, %v3153
      %v3410 = vmul.f32 %v2642, %v3154
      %v3411 = vmul.f32 %v2643, %v3155
      %v3412 = vmul.f32 %v2644, %v3156
      %v3413 = vmul.f32 %v2645, %v3157
      %v3414 = vmul.f32 %v2646, %v3158
      %v3415 = vmul.f32 %v2647, %v3159
      %v3416 = vmul.f32 %v2648, %v3160
      %v3417 = vmul.f32 %v2649, %v3161
      %v3418 = vmul.f32 %v2650, %v3162
      %v3419 = vmul.f32 %v2651, %v3163
      %v3420 = vmul.f32 %v2652, %v3164
      %v3421 = vmul.f32 %v2653, %v3165
      %v3422 = vmul.f32 %v2654, %v3166
      %v3423 = vmul.f32 %v2655, %v3167
      %v3424 = vmul.f32 %v2656, %v3168
      %v3425 = vmul.f32 %v2657, %v3169
      %v3426 = vmul.f32 %v2658, %v3170
      %v3427 = vmul.f32 %v2659, %v3171
      %v3428 = vmul.f32 %v2660, %v3172
      %v3429 = vmul.f32 %v2661, %v3173
      %v3430 = vmul.f32 %v2662, %v3174
      %v3431 = vmul.f32 %v2663, %v3175
      %v3432 = vmul.f32 %v2664, %v3176
      %v3433 = vmul.f32 %v2665, %v3177
      %v3434 = vmul.f32 %v2666, %v3178
      %v3435 = vmul.f32 %v2667, %v3179
      %v3436 = vmul.f32 %v2668, %v3180
      %v3437 = vmul.f32 %v2669, %v3181
      %v3438 = vmul.f32 %v2670, %v3182
      %v3439 = vmul.f32 %v2671, %v3183
      %v3440 = vmul.f32 %v2672, %v3184
      %v3441 = vmul.f32 %v2673, %v3185
      %v3442 = vmul.f32 %v2674, %v3186
      %v3443 = vmul.f32 %v2675, %v3187
      %v3444 = vmul.f32 %v2676, %v3188
      %v3445 = vmul.f32 %v2677, %v3189
      %v3446 = vmul.f32 %v2678, %v3190
      %v3447 = vmul.f32 %v2679, %v3191
      %v3448 = vmul.f32 %v2680, %v3192
      %v3449 = vmul.f32 %v2681, %v3193
      %v3450 = vmul.f32 %v2682, %v3194
      %v3451 = vmul.f32 %v2683, %v3195
      %v3452 = vmul.f32 %v2684, %v3196
      %v3453 = vmul.f32 %v2685, %v3197
      %v3454 = vmul.f32 %v2686, %v3198
      %v3455 = vmul.f32 %v2687, %v3199
      %v3456 = vmul.f32 %v2688, %v3200
      %v3457 = vmul.f32 %v2689, %v3201
      %v3458 = vmul.f32 %v2690, %v3202
      %v3459 = vmul.f32 %v2691, %v3203
      %v3460 = vmul.f32 %v2692, %v3204
      %v3461 = vmul.f32 %v2693, %v3205
      %v3462 = vmul.f32 %v2694, %v3206
      %v3463 = vmul.f32 %v2695, %v3207
      %v3464 = vmul.f32 %v2696, %v3208
      %v3465 = vmul.f32 %v2697, %v3209
      %v3466 = vmul.f32 %v2698, %v3210
      %v3467 = vmul.f32 %v2699, %v3211
      %v3468 = vmul.f32 %v2700, %v3212
      %v3469 = vmul.f32 %v2701, %v3213
      %v3470 = vmul.f32 %v2702, %v3214
      %v3471 = vld [vmem:[#allocation2] sm:$0xff]
      %v3472 = vld [vmem:[#allocation2 + $0x8] sm:$0xff]
      %v3473 = vld [vmem:[#allocation2 + $0x10] sm:$0xff]
      %v3474 = vld [vmem:[#allocation2 + $0x18] sm:$0xff]
      %v3475 = vld [vmem:[#allocation2 + $0x20] sm:$0xff]
      %v3476 = vld [vmem:[#allocation2 + $0x28] sm:$0xff]
      %v3477 = vld [vmem:[#allocation2 + $0x30] sm:$0xff]
      %v3478 = vld [vmem:[#allocation2 + $0x38] sm:$0xff]
      %v3479 = vld [vmem:[#allocation2 + $0x40] sm:$0xff]
      %v3480 = vld [vmem:[#allocation2 + $0x48] sm:$0xff]
      %v3481 = vld [vmem:[#allocation2 + $0x50] sm:$0xff]
      %v3482 = vld [vmem:[#allocation2 + $0x58] sm:$0xff]
      %v3483 = vld [vmem:[#allocation2 + $0x60] sm:$0xff]
      %v3484 = vld [vmem:[#allocation2 + $0x68] sm:$0xff]
      %v3485 = vld [vmem:[#allocation2 + $0x70] sm:$0xff]
      %v3486 = vld [vmem:[#allocation2 + $0x78] sm:$0xff]
      %v3487 = vld [vmem:[#allocation2 + $0x80] sm:$0xff]
      %v3488 = vld [vmem:[#allocation2 + $0x88] sm:$0xff]
      %v3489 = vld [vmem:[#allocation2 + $0x90] sm:$0xff]
      %v3490 = vld [vmem:[#allocation2 + $0x98] sm:$0xff]
      %v3491 = vld [vmem:[#allocation2 + $0xa0] sm:$0xff]
      %v3492 = vld [vmem:[#allocation2 + $0xa8] sm:$0xff]
      %v3493 = vld [vmem:[#allocation2 + $0xb0] sm:$0xff]
      %v3494 = vld [vmem:[#allocation2 + $0xb8] sm:$0xff]
      %v3495 = vld [vmem:[#allocation2 + $0xc0] sm:$0xff]
      %v3496 = vld [vmem:[#allocation2 + $0xc8] sm:$0xff]
      %v3497 = vld [vmem:[#allocation2 + $0xd0] sm:$0xff]
      %v3498 = vld [vmem:[#allocation2 + $0xd8] sm:$0xff]
      %v3499 = vld [vmem:[#allocation2 + $0xe0] sm:$0xff]
      %v3500 = vld [vmem:[#allocation2 + $0xe8] sm:$0xff]
      %v3501 = vld [vmem:[#allocation2 + $0xf0] sm:$0xff]
      %v3502 = vld [vmem:[#allocation2 + $0xf8] sm:$0xff]
      %v3503 = vld [vmem:[#allocation2 + $0x100] sm:$0xff]
      %v3504 = vld [vmem:[#allocation2 + $0x108] sm:$0xff]
      %v3505 = vld [vmem:[#allocation2 + $0x110] sm:$0xff]
      %v3506 = vld [vmem:[#allocation2 + $0x118] sm:$0xff]
      %v3507 = vld [vmem:[#allocation2 + $0x120] sm:$0xff]
      %v3508 = vld [vmem:[#allocation2 + $0x128] sm:$0xff]
      %v3509 = vld [vmem:[#allocation2 + $0x130] sm:$0xff]
      %v3510 = vld [vmem:[#allocation2 + $0x138] sm:$0xff]
      %v3511 = vld [vmem:[#allocation2 + $0x140] sm:$0xff]
      %v3512 = vld [vmem:[#allocation2 + $0x148] sm:$0xff]
      %v3513 = vld [vmem:[#allocation2 + $0x150] sm:$0xff]
      %v3514 = vld [vmem:[#allocation2 + $0x158] sm:$0xff]
      %v3515 = vld [vmem:[#allocation2 + $0x160] sm:$0xff]
      %v3516 = vld [vmem:[#allocation2 + $0x168] sm:$0xff]
      %v3517 = vld [vmem:[#allocation2 + $0x170] sm:$0xff]
      %v3518 = vld [vmem:[#allocation2 + $0x178] sm:$0xff]
      %v3519 = vld [vmem:[#allocation2 + $0x180] sm:$0xff]
      %v3520 = vld [vmem:[#allocation2 + $0x188] sm:$0xff]
      %v3521 = vld [vmem:[#allocation2 + $0x190] sm:$0xff]
      %v3522 = vld [vmem:[#allocation2 + $0x198] sm:$0xff]
      %v3523 = vld [vmem:[#allocation2 + $0x1a0] sm:$0xff]
      %v3524 = vld [vmem:[#allocation2 + $0x1a8] sm:$0xff]
      %v3525 = vld [vmem:[#allocation2 + $0x1b0] sm:$0xff]
      %v3526 = vld [vmem:[#allocation2 + $0x1b8] sm:$0xff]
      %v3527 = vld [vmem:[#allocation2 + $0x1c0] sm:$0xff]
      %v3528 = vld [vmem:[#allocation2 + $0x1c8] sm:$0xff]
      %v3529 = vld [vmem:[#allocation2 + $0x1d0] sm:$0xff]
      %v3530 = vld [vmem:[#allocation2 + $0x1d8] sm:$0xff]
      %v3531 = vld [vmem:[#allocation2 + $0x1e0] sm:$0xff]
      %v3532 = vld [vmem:[#allocation2 + $0x1e8] sm:$0xff]
      %v3533 = vld [vmem:[#allocation2 + $0x1f0] sm:$0xff]
      %v3534 = vld [vmem:[#allocation2 + $0x1f8] sm:$0xff]
      %v3535 = vld [vmem:[#allocation2 + $0x200] sm:$0xff]
      %v3536 = vld [vmem:[#allocation2 + $0x208] sm:$0xff]
      %v3537 = vld [vmem:[#allocation2 + $0x210] sm:$0xff]
      %v3538 = vld [vmem:[#allocation2 + $0x218] sm:$0xff]
      %v3539 = vld [vmem:[#allocation2 + $0x220] sm:$0xff]
      %v3540 = vld [vmem:[#allocation2 + $0x228] sm:$0xff]
      %v3541 = vld [vmem:[#allocation2 + $0x230] sm:$0xff]
      %v3542 = vld [vmem:[#allocation2 + $0x238] sm:$0xff]
      %v3543 = vld [vmem:[#allocation2 + $0x240] sm:$0xff]
      %v3544 = vld [vmem:[#allocation2 + $0x248] sm:$0xff]
      %v3545 = vld [vmem:[#allocation2 + $0x250] sm:$0xff]
      %v3546 = vld [vmem:[#allocation2 + $0x258] sm:$0xff]
      %v3547 = vld [vmem:[#allocation2 + $0x260] sm:$0xff]
      %v3548 = vld [vmem:[#allocation2 + $0x268] sm:$0xff]
      %v3549 = vld [vmem:[#allocation2 + $0x270] sm:$0xff]
      %v3550 = vld [vmem:[#allocation2 + $0x278] sm:$0xff]
      %v3551 = vld [vmem:[#allocation2 + $0x280] sm:$0xff]
      %v3552 = vld [vmem:[#allocation2 + $0x288] sm:$0xff]
      %v3553 = vld [vmem:[#allocation2 + $0x290] sm:$0xff]
      %v3554 = vld [vmem:[#allocation2 + $0x298] sm:$0xff]
      %v3555 = vld [vmem:[#allocation2 + $0x2a0] sm:$0xff]
      %v3556 = vld [vmem:[#allocation2 + $0x2a8] sm:$0xff]
      %v3557 = vld [vmem:[#allocation2 + $0x2b0] sm:$0xff]
      %v3558 = vld [vmem:[#allocation2 + $0x2b8] sm:$0xff]
      %v3559 = vld [vmem:[#allocation2 + $0x2c0] sm:$0xff]
      %v3560 = vld [vmem:[#allocation2 + $0x2c8] sm:$0xff]
      %v3561 = vld [vmem:[#allocation2 + $0x2d0] sm:$0xff]
      %v3562 = vld [vmem:[#allocation2 + $0x2d8] sm:$0xff]
      %v3563 = vld [vmem:[#allocation2 + $0x2e0] sm:$0xff]
      %v3564 = vld [vmem:[#allocation2 + $0x2e8] sm:$0xff]
      %v3565 = vld [vmem:[#allocation2 + $0x2f0] sm:$0xff]
      %v3566 = vld [vmem:[#allocation2 + $0x2f8] sm:$0xff]
      %v3567 = vld [vmem:[#allocation2 + $0x300] sm:$0xff]
      %v3568 = vld [vmem:[#allocation2 + $0x308] sm:$0xff]
      %v3569 = vld [vmem:[#allocation2 + $0x310] sm:$0xff]
      %v3570 = vld [vmem:[#allocation2 + $0x318] sm:$0xff]
      %v3571 = vld [vmem:[#allocation2 + $0x320] sm:$0xff]
      %v3572 = vld [vmem:[#allocation2 + $0x328] sm:$0xff]
      %v3573 = vld [vmem:[#allocation2 + $0x330] sm:$0xff]
      %v3574 = vld [vmem:[#allocation2 + $0x338] sm:$0xff]
      %v3575 = vld [vmem:[#allocation2 + $0x340] sm:$0xff]
      %v3576 = vld [vmem:[#allocation2 + $0x348] sm:$0xff]
      %v3577 = vld [vmem:[#allocation2 + $0x350] sm:$0xff]
      %v3578 = vld [vmem:[#allocation2 + $0x358] sm:$0xff]
      %v3579 = vld [vmem:[#allocation2 + $0x360] sm:$0xff]
      %v3580 = vld [vmem:[#allocation2 + $0x368] sm:$0xff]
      %v3581 = vld [vmem:[#allocation2 + $0x370] sm:$0xff]
      %v3582 = vld [vmem:[#allocation2 + $0x378] sm:$0xff]
      %v3583 = vld [vmem:[#allocation2 + $0x380] sm:$0xff]
      %v3584 = vld [vmem:[#allocation2 + $0x388] sm:$0xff]
      %v3585 = vld [vmem:[#allocation2 + $0x390] sm:$0xff]
      %v3586 = vld [vmem:[#allocation2 + $0x398] sm:$0xff]
      %v3587 = vld [vmem:[#allocation2 + $0x3a0] sm:$0xff]
      %v3588 = vld [vmem:[#allocation2 + $0x3a8] sm:$0xff]
      %v3589 = vld [vmem:[#allocation2 + $0x3b0] sm:$0xff]
      %v3590 = vld [vmem:[#allocation2 + $0x3b8] sm:$0xff]
      %v3591 = vld [vmem:[#allocation2 + $0x3c0] sm:$0xff]
      %v3592 = vld [vmem:[#allocation2 + $0x3c8] sm:$0xff]
      %v3593 = vld [vmem:[#allocation2 + $0x3d0] sm:$0xff]
      %v3594 = vld [vmem:[#allocation2 + $0x3d8] sm:$0xff]
      %v3595 = vld [vmem:[#allocation2 + $0x3e0] sm:$0xff]
      %v3596 = vld [vmem:[#allocation2 + $0x3e8] sm:$0xff]
      %v3597 = vld [vmem:[#allocation2 + $0x3f0] sm:$0xff]
      %v3598 = vld [vmem:[#allocation2 + $0x3f8] sm:$0xff]
      %v3599 = vld [vmem:[#allocation2 + $0x400] sm:$0xff]
      %v3600 = vld [vmem:[#allocation2 + $0x408] sm:$0xff]
      %v3601 = vld [vmem:[#allocation2 + $0x410] sm:$0xff]
      %v3602 = vld [vmem:[#allocation2 + $0x418] sm:$0xff]
      %v3603 = vld [vmem:[#allocation2 + $0x420] sm:$0xff]
      %v3604 = vld [vmem:[#allocation2 + $0x428] sm:$0xff]
      %v3605 = vld [vmem:[#allocation2 + $0x430] sm:$0xff]
      %v3606 = vld [vmem:[#allocation2 + $0x438] sm:$0xff]
      %v3607 = vld [vmem:[#allocation2 + $0x440] sm:$0xff]
      %v3608 = vld [vmem:[#allocation2 + $0x448] sm:$0xff]
      %v3609 = vld [vmem:[#allocation2 + $0x450] sm:$0xff]
      %v3610 = vld [vmem:[#allocation2 + $0x458] sm:$0xff]
      %v3611 = vld [vmem:[#allocation2 + $0x460] sm:$0xff]
      %v3612 = vld [vmem:[#allocation2 + $0x468] sm:$0xff]
      %v3613 = vld [vmem:[#allocation2 + $0x470] sm:$0xff]
      %v3614 = vld [vmem:[#allocation2 + $0x478] sm:$0xff]
      %v3615 = vld [vmem:[#allocation2 + $0x480] sm:$0xff]
      %v3616 = vld [vmem:[#allocation2 + $0x488] sm:$0xff]
      %v3617 = vld [vmem:[#allocation2 + $0x490] sm:$0xff]
      %v3618 = vld [vmem:[#allocation2 + $0x498] sm:$0xff]
      %v3619 = vld [vmem:[#allocation2 + $0x4a0] sm:$0xff]
      %v3620 = vld [vmem:[#allocation2 + $0x4a8] sm:$0xff]
      %v3621 = vld [vmem:[#allocation2 + $0x4b0] sm:$0xff]
      %v3622 = vld [vmem:[#allocation2 + $0x4b8] sm:$0xff]
      %v3623 = vld [vmem:[#allocation2 + $0x4c0] sm:$0xff]
      %v3624 = vld [vmem:[#allocation2 + $0x4c8] sm:$0xff]
      %v3625 = vld [vmem:[#allocation2 + $0x4d0] sm:$0xff]
      %v3626 = vld [vmem:[#allocation2 + $0x4d8] sm:$0xff]
      %v3627 = vld [vmem:[#allocation2 + $0x4e0] sm:$0xff]
      %v3628 = vld [vmem:[#allocation2 + $0x4e8] sm:$0xff]
      %v3629 = vld [vmem:[#allocation2 + $0x4f0] sm:$0xff]
      %v3630 = vld [vmem:[#allocation2 + $0x4f8] sm:$0xff]
      %v3631 = vld [vmem:[#allocation2 + $0x500] sm:$0xff]
      %v3632 = vld [vmem:[#allocation2 + $0x508] sm:$0xff]
      %v3633 = vld [vmem:[#allocation2 + $0x510] sm:$0xff]
      %v3634 = vld [vmem:[#allocation2 + $0x518] sm:$0xff]
      %v3635 = vld [vmem:[#allocation2 + $0x520] sm:$0xff]
      %v3636 = vld [vmem:[#allocation2 + $0x528] sm:$0xff]
      %v3637 = vld [vmem:[#allocation2 + $0x530] sm:$0xff]
      %v3638 = vld [vmem:[#allocation2 + $0x538] sm:$0xff]
      %v3639 = vld [vmem:[#allocation2 + $0x540] sm:$0xff]
      %v3640 = vld [vmem:[#allocation2 + $0x548] sm:$0xff]
      %v3641 = vld [vmem:[#allocation2 + $0x550] sm:$0xff]
      %v3642 = vld [vmem:[#allocation2 + $0x558] sm:$0xff]
      %v3643 = vld [vmem:[#allocation2 + $0x560] sm:$0xff]
      %v3644 = vld [vmem:[#allocation2 + $0x568] sm:$0xff]
      %v3645 = vld [vmem:[#allocation2 + $0x570] sm:$0xff]
      %v3646 = vld [vmem:[#allocation2 + $0x578] sm:$0xff]
      %v3647 = vld [vmem:[#allocation2 + $0x580] sm:$0xff]
      %v3648 = vld [vmem:[#allocation2 + $0x588] sm:$0xff]
      %v3649 = vld [vmem:[#allocation2 + $0x590] sm:$0xff]
      %v3650 = vld [vmem:[#allocation2 + $0x598] sm:$0xff]
      %v3651 = vld [vmem:[#allocation2 + $0x5a0] sm:$0xff]
      %v3652 = vld [vmem:[#allocation2 + $0x5a8] sm:$0xff]
      %v3653 = vld [vmem:[#allocation2 + $0x5b0] sm:$0xff]
      %v3654 = vld [vmem:[#allocation2 + $0x5b8] sm:$0xff]
      %v3655 = vld [vmem:[#allocation2 + $0x5c0] sm:$0xff]
      %v3656 = vld [vmem:[#allocation2 + $0x5c8] sm:$0xff]
      %v3657 = vld [vmem:[#allocation2 + $0x5d0] sm:$0xff]
      %v3658 = vld [vmem:[#allocation2 + $0x5d8] sm:$0xff]
      %v3659 = vld [vmem:[#allocation2 + $0x5e0] sm:$0xff]
      %v3660 = vld [vmem:[#allocation2 + $0x5e8] sm:$0xff]
      %v3661 = vld [vmem:[#allocation2 + $0x5f0] sm:$0xff]
      %v3662 = vld [vmem:[#allocation2 + $0x5f8] sm:$0xff]
      %v3663 = vld [vmem:[#allocation2 + $0x600] sm:$0xff]
      %v3664 = vld [vmem:[#allocation2 + $0x608] sm:$0xff]
      %v3665 = vld [vmem:[#allocation2 + $0x610] sm:$0xff]
      %v3666 = vld [vmem:[#allocation2 + $0x618] sm:$0xff]
      %v3667 = vld [vmem:[#allocation2 + $0x620] sm:$0xff]
      %v3668 = vld [vmem:[#allocation2 + $0x628] sm:$0xff]
      %v3669 = vld [vmem:[#allocation2 + $0x630] sm:$0xff]
      %v3670 = vld [vmem:[#allocation2 + $0x638] sm:$0xff]
      %v3671 = vld [vmem:[#allocation2 + $0x640] sm:$0xff]
      %v3672 = vld [vmem:[#allocation2 + $0x648] sm:$0xff]
      %v3673 = vld [vmem:[#allocation2 + $0x650] sm:$0xff]
      %v3674 = vld [vmem:[#allocation2 + $0x658] sm:$0xff]
      %v3675 = vld [vmem:[#allocation2 + $0x660] sm:$0xff]
      %v3676 = vld [vmem:[#allocation2 + $0x668] sm:$0xff]
      %v3677 = vld [vmem:[#allocation2 + $0x670] sm:$0xff]
      %v3678 = vld [vmem:[#allocation2 + $0x678] sm:$0xff]
      %v3679 = vld [vmem:[#allocation2 + $0x680] sm:$0xff]
      %v3680 = vld [vmem:[#allocation2 + $0x688] sm:$0xff]
      %v3681 = vld [vmem:[#allocation2 + $0x690] sm:$0xff]
      %v3682 = vld [vmem:[#allocation2 + $0x698] sm:$0xff]
      %v3683 = vld [vmem:[#allocation2 + $0x6a0] sm:$0xff]
      %v3684 = vld [vmem:[#allocation2 + $0x6a8] sm:$0xff]
      %v3685 = vld [vmem:[#allocation2 + $0x6b0] sm:$0xff]
      %v3686 = vld [vmem:[#allocation2 + $0x6b8] sm:$0xff]
      %v3687 = vld [vmem:[#allocation2 + $0x6c0] sm:$0xff]
      %v3688 = vld [vmem:[#allocation2 + $0x6c8] sm:$0xff]
      %v3689 = vld [vmem:[#allocation2 + $0x6d0] sm:$0xff]
      %v3690 = vld [vmem:[#allocation2 + $0x6d8] sm:$0xff]
      %v3691 = vld [vmem:[#allocation2 + $0x6e0] sm:$0xff]
      %v3692 = vld [vmem:[#allocation2 + $0x6e8] sm:$0xff]
      %v3693 = vld [vmem:[#allocation2 + $0x6f0] sm:$0xff]
      %v3694 = vld [vmem:[#allocation2 + $0x6f8] sm:$0xff]
      %v3695 = vld [vmem:[#allocation2 + $0x700] sm:$0xff]
      %v3696 = vld [vmem:[#allocation2 + $0x708] sm:$0xff]
      %v3697 = vld [vmem:[#allocation2 + $0x710] sm:$0xff]
      %v3698 = vld [vmem:[#allocation2 + $0x718] sm:$0xff]
      %v3699 = vld [vmem:[#allocation2 + $0x720] sm:$0xff]
      %v3700 = vld [vmem:[#allocation2 + $0x728] sm:$0xff]
      %v3701 = vld [vmem:[#allocation2 + $0x730] sm:$0xff]
      %v3702 = vld [vmem:[#allocation2 + $0x738] sm:$0xff]
      %v3703 = vld [vmem:[#allocation2 + $0x740] sm:$0xff]
      %v3704 = vld [vmem:[#allocation2 + $0x748] sm:$0xff]
      %v3705 = vld [vmem:[#allocation2 + $0x750] sm:$0xff]
      %v3706 = vld [vmem:[#allocation2 + $0x758] sm:$0xff]
      %v3707 = vld [vmem:[#allocation2 + $0x760] sm:$0xff]
      %v3708 = vld [vmem:[#allocation2 + $0x768] sm:$0xff]
      %v3709 = vld [vmem:[#allocation2 + $0x770] sm:$0xff]
      %v3710 = vld [vmem:[#allocation2 + $0x778] sm:$0xff]
      %v3711 = vld [vmem:[#allocation2 + $0x780] sm:$0xff]
      %v3712 = vld [vmem:[#allocation2 + $0x788] sm:$0xff]
      %v3713 = vld [vmem:[#allocation2 + $0x790] sm:$0xff]
      %v3714 = vld [vmem:[#allocation2 + $0x798] sm:$0xff]
      %v3715 = vld [vmem:[#allocation2 + $0x7a0] sm:$0xff]
      %v3716 = vld [vmem:[#allocation2 + $0x7a8] sm:$0xff]
      %v3717 = vld [vmem:[#allocation2 + $0x7b0] sm:$0xff]
      %v3718 = vld [vmem:[#allocation2 + $0x7b8] sm:$0xff]
      %v3719 = vld [vmem:[#allocation2 + $0x7c0] sm:$0xff]
      %v3720 = vld [vmem:[#allocation2 + $0x7c8] sm:$0xff]
      %v3721 = vld [vmem:[#allocation2 + $0x7d0] sm:$0xff]
      %v3722 = vld [vmem:[#allocation2 + $0x7d8] sm:$0xff]
      %v3723 = vld [vmem:[#allocation2 + $0x7e0] sm:$0xff]
      %v3724 = vld [vmem:[#allocation2 + $0x7e8] sm:$0xff]
      %v3725 = vld [vmem:[#allocation2 + $0x7f0] sm:$0xff]
      %v3726 = vld [vmem:[#allocation2 + $0x7f8] sm:$0xff]
      %v3727 = vmul.f32 %v1168, 0.2940176
      %v3728 = vmul.f32 %v1170, 0.2940176
      %v3729 = vmul.f32 %v1172, 0.2940176
      %v3730 = vmul.f32 %v1174, 0.2940176
      %v3731 = vmul.f32 %v1176, 0.2940176
      %v3732 = vmul.f32 %v1178, 0.2940176
      %v3733 = vmul.f32 %v1180, 0.2940176
      %v3734 = vmul.f32 %v1182, 0.2940176
      %v3735 = vmul.f32 %v1184, 0.2940176
      %v3736 = vmul.f32 %v1186, 0.2940176
      %v3737 = vmul.f32 %v1188, 0.2940176
      %v3738 = vmul.f32 %v1190, 0.2940176
      %v3739 = vmul.f32 %v1192, 0.2940176
      %v3740 = vmul.f32 %v1194, 0.2940176
      %v3741 = vmul.f32 %v1196, 0.2940176
      %v3742 = vmul.f32 %v1198, 0.2940176
      %v3743 = vmul.f32 %v1200, 0.2940176
      %v3744 = vmul.f32 %v1202, 0.2940176
      %v3745 = vmul.f32 %v1204, 0.2940176
      %v3746 = vmul.f32 %v1206, 0.2940176
      %v3747 = vmul.f32 %v1208, 0.2940176
      %v3748 = vmul.f32 %v1210, 0.2940176
      %v3749 = vmul.f32 %v1212, 0.2940176
      %v3750 = vmul.f32 %v1214, 0.2940176
      %v3751 = vmul.f32 %v1216, 0.2940176
      %v3752 = vmul.f32 %v1218, 0.2940176
      %v3753 = vmul.f32 %v1220, 0.2940176
      %v3754 = vmul.f32 %v1222, 0.2940176
      %v3755 = vmul.f32 %v1224, 0.2940176
      %v3756 = vmul.f32 %v1226, 0.2940176
      %v3757 = vmul.f32 %v1228, 0.2940176
      %v3758 = vmul.f32 %v1230, 0.2940176
      %v3759 = vmul.f32 %v1232, 0.2940176
      %v3760 = vmul.f32 %v1234, 0.2940176
      %v3761 = vmul.f32 %v1236, 0.2940176
      %v3762 = vmul.f32 %v1238, 0.2940176
      %v3763 = vmul.f32 %v1240, 0.2940176
      %v3764 = vmul.f32 %v1242, 0.2940176
      %v3765 = vmul.f32 %v1244, 0.2940176
      %v3766 = vmul.f32 %v1246, 0.2940176
      %v3767 = vmul.f32 %v1248, 0.2940176
      %v3768 = vmul.f32 %v1250, 0.2940176
      %v3769 = vmul.f32 %v1252, 0.2940176
      %v3770 = vmul.f32 %v1254, 0.2940176
      %v3771 = vmul.f32 %v1256, 0.2940176
      %v3772 = vmul.f32 %v1258, 0.2940176
      %v3773 = vmul.f32 %v1260, 0.2940176
      %v3774 = vmul.f32 %v1262, 0.2940176
      %v3775 = vmul.f32 %v1264, 0.2940176
      %v3776 = vmul.f32 %v1266, 0.2940176
      %v3777 = vmul.f32 %v1268, 0.2940176
      %v3778 = vmul.f32 %v1270, 0.2940176
      %v3779 = vmul.f32 %v1272, 0.2940176
      %v3780 = vmul.f32 %v1274, 0.2940176
      %v3781 = vmul.f32 %v1276, 0.2940176
      %v3782 = vmul.f32 %v1278, 0.2940176
      %v3783 = vmul.f32 %v1280, 0.2940176
      %v3784 = vmul.f32 %v1282, 0.2940176
      %v3785 = vmul.f32 %v1284, 0.2940176
      %v3786 = vmul.f32 %v1286, 0.2940176
      %v3787 = vmul.f32 %v1288, 0.2940176
      %v3788 = vmul.f32 %v1290, 0.2940176
      %v3789 = vmul.f32 %v1292, 0.2940176
      %v3790 = vmul.f32 %v1294, 0.2940176
      %v3791 = vmul.f32 %v1296, 0.2940176
      %v3792 = vmul.f32 %v1298, 0.2940176
      %v3793 = vmul.f32 %v1300, 0.2940176
      %v3794 = vmul.f32 %v1302, 0.2940176
      %v3795 = vmul.f32 %v1304, 0.2940176
      %v3796 = vmul.f32 %v1306, 0.2940176
      %v3797 = vmul.f32 %v1308, 0.2940176
      %v3798 = vmul.f32 %v1310, 0.2940176
      %v3799 = vmul.f32 %v1312, 0.2940176
      %v3800 = vmul.f32 %v1314, 0.2940176
      %v3801 = vmul.f32 %v1316, 0.2940176
      %v3802 = vmul.f32 %v1318, 0.2940176
      %v3803 = vmul.f32 %v1320, 0.2940176
      %v3804 = vmul.f32 %v1322, 0.2940176
      %v3805 = vmul.f32 %v1324, 0.2940176
      %v3806 = vmul.f32 %v1326, 0.2940176
      %v3807 = vmul.f32 %v1328, 0.2940176
      %v3808 = vmul.f32 %v1330, 0.2940176
      %v3809 = vmul.f32 %v1332, 0.2940176
      %v3810 = vmul.f32 %v1334, 0.2940176
      %v3811 = vmul.f32 %v1336, 0.2940176
      %v3812 = vmul.f32 %v1338, 0.2940176
      %v3813 = vmul.f32 %v1340, 0.2940176
      %v3814 = vmul.f32 %v1342, 0.2940176
      %v3815 = vmul.f32 %v1344, 0.2940176
      %v3816 = vmul.f32 %v1346, 0.2940176
      %v3817 = vmul.f32 %v1348, 0.2940176
      %v3818 = vmul.f32 %v1350, 0.2940176
      %v3819 = vmul.f32 %v1352, 0.2940176
      %v3820 = vmul.f32 %v1354, 0.2940176
      %v3821 = vmul.f32 %v1356, 0.2940176
      %v3822 = vmul.f32 %v1358, 0.2940176
      %v3823 = vmul.f32 %v1360, 0.2940176
      %v3824 = vmul.f32 %v1362, 0.2940176
      %v3825 = vmul.f32 %v1364, 0.2940176
      %v3826 = vmul.f32 %v1366, 0.2940176
      %v3827 = vmul.f32 %v1368, 0.2940176
      %v3828 = vmul.f32 %v1370, 0.2940176
      %v3829 = vmul.f32 %v1372, 0.2940176
      %v3830 = vmul.f32 %v1374, 0.2940176
      %v3831 = vmul.f32 %v1376, 0.2940176
      %v3832 = vmul.f32 %v1378, 0.2940176
      %v3833 = vmul.f32 %v1380, 0.2940176
      %v3834 = vmul.f32 %v1382, 0.2940176
      %v3835 = vmul.f32 %v1384, 0.2940176
      %v3836 = vmul.f32 %v1386, 0.2940176
      %v3837 = vmul.f32 %v1388, 0.2940176
      %v3838 = vmul.f32 %v1390, 0.2940176
      %v3839 = vmul.f32 %v1392, 0.2940176
      %v3840 = vmul.f32 %v1394, 0.2940176
      %v3841 = vmul.f32 %v1396, 0.2940176
      %v3842 = vmul.f32 %v1398, 0.2940176
      %v3843 = vmul.f32 %v1400, 0.2940176
      %v3844 = vmul.f32 %v1402, 0.2940176
      %v3845 = vmul.f32 %v1404, 0.2940176
      %v3846 = vmul.f32 %v1406, 0.2940176
      %v3847 = vmul.f32 %v1408, 0.2940176
      %v3848 = vmul.f32 %v1410, 0.2940176
      %v3849 = vmul.f32 %v1412, 0.2940176
      %v3850 = vmul.f32 %v1414, 0.2940176
      %v3851 = vmul.f32 %v1416, 0.2940176
      %v3852 = vmul.f32 %v1418, 0.2940176
      %v3853 = vmul.f32 %v1420, 0.2940176
      %v3854 = vmul.f32 %v1422, 0.2940176
      %v3855 = vmul.f32 %v1424, 0.2940176
      %v3856 = vmul.f32 %v1426, 0.2940176
      %v3857 = vmul.f32 %v1428, 0.2940176
      %v3858 = vmul.f32 %v1430, 0.2940176
      %v3859 = vmul.f32 %v1432, 0.2940176
      %v3860 = vmul.f32 %v1434, 0.2940176
      %v3861 = vmul.f32 %v1436, 0.2940176
      %v3862 = vmul.f32 %v1438, 0.2940176
      %v3863 = vmul.f32 %v1440, 0.2940176
      %v3864 = vmul.f32 %v1442, 0.2940176
      %v3865 = vmul.f32 %v1444, 0.2940176
      %v3866 = vmul.f32 %v1446, 0.2940176
      %v3867 = vmul.f32 %v1448, 0.2940176
      %v3868 = vmul.f32 %v1450, 0.2940176
      %v3869 = vmul.f32 %v1452, 0.2940176
      %v3870 = vmul.f32 %v1454, 0.2940176
      %v3871 = vmul.f32 %v1456, 0.2940176
      %v3872 = vmul.f32 %v1458, 0.2940176
      %v3873 = vmul.f32 %v1460, 0.2940176
      %v3874 = vmul.f32 %v1462, 0.2940176
      %v3875 = vmul.f32 %v1464, 0.2940176
      %v3876 = vmul.f32 %v1466, 0.2940176
      %v3877 = vmul.f32 %v1468, 0.2940176
      %v3878 = vmul.f32 %v1470, 0.2940176
      %v3879 = vmul.f32 %v1472, 0.2940176
      %v3880 = vmul.f32 %v1474, 0.2940176
      %v3881 = vmul.f32 %v1476, 0.2940176
      %v3882 = vmul.f32 %v1478, 0.2940176
      %v3883 = vmul.f32 %v1480, 0.2940176
      %v3884 = vmul.f32 %v1482, 0.2940176
      %v3885 = vmul.f32 %v1484, 0.2940176
      %v3886 = vmul.f32 %v1486, 0.2940176
      %v3887 = vmul.f32 %v1488, 0.2940176
      %v3888 = vmul.f32 %v1490, 0.2940176
      %v3889 = vmul.f32 %v1492, 0.2940176
      %v3890 = vmul.f32 %v1494, 0.2940176
      %v3891 = vmul.f32 %v1496, 0.2940176
      %v3892 = vmul.f32 %v1498, 0.2940176
      %v3893 = vmul.f32 %v1500, 0.2940176
      %v3894 = vmul.f32 %v1502, 0.2940176
      %v3895 = vmul.f32 %v1504, 0.2940176
      %v3896 = vmul.f32 %v1506, 0.2940176
      %v3897 = vmul.f32 %v1508, 0.2940176
      %v3898 = vmul.f32 %v1510, 0.2940176
      %v3899 = vmul.f32 %v1512, 0.2940176
      %v3900 = vmul.f32 %v1514, 0.2940176
      %v3901 = vmul.f32 %v1516, 0.2940176
      %v3902 = vmul.f32 %v1518, 0.2940176
      %v3903 = vmul.f32 %v1520, 0.2940176
      %v3904 = vmul.f32 %v1522, 0.2940176
      %v3905 = vmul.f32 %v1524, 0.2940176
      %v3906 = vmul.f32 %v1526, 0.2940176
      %v3907 = vmul.f32 %v1528, 0.2940176
      %v3908 = vmul.f32 %v1530, 0.2940176
      %v3909 = vmul.f32 %v1532, 0.2940176
      %v3910 = vmul.f32 %v1534, 0.2940176
      %v3911 = vmul.f32 %v1536, 0.2940176
      %v3912 = vmul.f32 %v1538, 0.2940176
      %v3913 = vmul.f32 %v1540, 0.2940176
      %v3914 = vmul.f32 %v1542, 0.2940176
      %v3915 = vmul.f32 %v1544, 0.2940176
      %v3916 = vmul.f32 %v1546, 0.2940176
      %v3917 = vmul.f32 %v1548, 0.2940176
      %v3918 = vmul.f32 %v1550, 0.2940176
      %v3919 = vmul.f32 %v1552, 0.2940176
      %v3920 = vmul.f32 %v1554, 0.2940176
      %v3921 = vmul.f32 %v1556, 0.2940176
      %v3922 = vmul.f32 %v1558, 0.2940176
      %v3923 = vmul.f32 %v1560, 0.2940176
      %v3924 = vmul.f32 %v1562, 0.2940176
      %v3925 = vmul.f32 %v1564, 0.2940176
      %v3926 = vmul.f32 %v1566, 0.2940176
      %v3927 = vmul.f32 %v1568, 0.2940176
      %v3928 = vmul.f32 %v1570, 0.2940176
      %v3929 = vmul.f32 %v1572, 0.2940176
      %v3930 = vmul.f32 %v1574, 0.2940176
      %v3931 = vmul.f32 %v1576, 0.2940176
      %v3932 = vmul.f32 %v1578, 0.2940176
      %v3933 = vmul.f32 %v1580, 0.2940176
      %v3934 = vmul.f32 %v1582, 0.2940176
      %v3935 = vmul.f32 %v1584, 0.2940176
      %v3936 = vmul.f32 %v1586, 0.2940176
      %v3937 = vmul.f32 %v1588, 0.2940176
      %v3938 = vmul.f32 %v1590, 0.2940176
      %v3939 = vmul.f32 %v1592, 0.2940176
      %v3940 = vmul.f32 %v1594, 0.2940176
      %v3941 = vmul.f32 %v1596, 0.2940176
      %v3942 = vmul.f32 %v1598, 0.2940176
      %v3943 = vmul.f32 %v1600, 0.2940176
      %v3944 = vmul.f32 %v1602, 0.2940176
      %v3945 = vmul.f32 %v1604, 0.2940176
      %v3946 = vmul.f32 %v1606, 0.2940176
      %v3947 = vmul.f32 %v1608, 0.2940176
      %v3948 = vmul.f32 %v1610, 0.2940176
      %v3949 = vmul.f32 %v1612, 0.2940176
      %v3950 = vmul.f32 %v1614, 0.2940176
      %v3951 = vmul.f32 %v1616, 0.2940176
      %v3952 = vmul.f32 %v1618, 0.2940176
      %v3953 = vmul.f32 %v1620, 0.2940176
      %v3954 = vmul.f32 %v1622, 0.2940176
      %v3955 = vmul.f32 %v1624, 0.2940176
      %v3956 = vmul.f32 %v1626, 0.2940176
      %v3957 = vmul.f32 %v1628, 0.2940176
      %v3958 = vmul.f32 %v1630, 0.2940176
      %v3959 = vmul.f32 %v1632, 0.2940176
      %v3960 = vmul.f32 %v1634, 0.2940176
      %v3961 = vmul.f32 %v1636, 0.2940176
      %v3962 = vmul.f32 %v1638, 0.2940176
      %v3963 = vmul.f32 %v1640, 0.2940176
      %v3964 = vmul.f32 %v1642, 0.2940176
      %v3965 = vmul.f32 %v1644, 0.2940176
      %v3966 = vmul.f32 %v1646, 0.2940176
      %v3967 = vmul.f32 %v1648, 0.2940176
      %v3968 = vmul.f32 %v1650, 0.2940176
      %v3969 = vmul.f32 %v1652, 0.2940176
      %v3970 = vmul.f32 %v1654, 0.2940176
      %v3971 = vmul.f32 %v1656, 0.2940176
      %v3972 = vmul.f32 %v1658, 0.2940176
      %v3973 = vmul.f32 %v1660, 0.2940176
      %v3974 = vmul.f32 %v1662, 0.2940176
      %v3975 = vmul.f32 %v1664, 0.2940176
      %v3976 = vmul.f32 %v1666, 0.2940176
      %v3977 = vmul.f32 %v1668, 0.2940176
      %v3978 = vmul.f32 %v1670, 0.2940176
      %v3979 = vmul.f32 %v1672, 0.2940176
      %v3980 = vmul.f32 %v1674, 0.2940176
      %v3981 = vmul.f32 %v1676, 0.2940176
      %v3982 = vmul.f32 %v1678, 0.2940176
      %v3983 = vmul.f32 %v3727, %v3215
      %v3984 = vmul.f32 %v3728, %v3216
      %v3985 = vmul.f32 %v3729, %v3217
      %v3986 = vmul.f32 %v3730, %v3218
      %v3987 = vmul.f32 %v3731, %v3219
      %v3988 = vmul.f32 %v3732, %v3220
      %v3989 = vmul.f32 %v3733, %v3221
      %v3990 = vmul.f32 %v3734, %v3222
      %v3991 = vmul.f32 %v3735, %v3223
      %v3992 = vmul.f32 %v3736, %v3224
      %v3993 = vmul.f32 %v3737, %v3225
      %v3994 = vmul.f32 %v3738, %v3226
      %v3995 = vmul.f32 %v3739, %v3227
      %v3996 = vmul.f32 %v3740, %v3228
      %v3997 = vmul.f32 %v3741, %v3229
      %v3998 = vmul.f32 %v3742, %v3230
      %v3999 = vmul.f32 %v3743, %v3231
      %v4000 = vmul.f32 %v3744, %v3232
      %v4001 = vmul.f32 %v3745, %v3233
      %v4002 = vmul.f32 %v3746, %v3234
      %v4003 = vmul.f32 %v3747, %v3235
      %v4004 = vmul.f32 %v3748, %v3236
      %v4005 = vmul.f32 %v3749, %v3237
      %v4006 = vmul.f32 %v3750, %v3238
      %v4007 = vmul.f32 %v3751, %v3239
      %v4008 = vmul.f32 %v3752, %v3240
      %v4009 = vmul.f32 %v3753, %v3241
      %v4010 = vmul.f32 %v3754, %v3242
      %v4011 = vmul.f32 %v3755, %v3243
      %v4012 = vmul.f32 %v3756, %v3244
      %v4013 = vmul.f32 %v3757, %v3245
      %v4014 = vmul.f32 %v3758, %v3246
      %v4015 = vmul.f32 %v3759, %v3247
      %v4016 = vmul.f32 %v3760, %v3248
      %v4017 = vmul.f32 %v3761, %v3249
      %v4018 = vmul.f32 %v3762, %v3250
      %v4019 = vmul.f32 %v3763, %v3251
      %v4020 = vmul.f32 %v3764, %v3252
      %v4021 = vmul.f32 %v3765, %v3253
      %v4022 = vmul.f32 %v3766, %v3254
      %v4023 = vmul.f32 %v3767, %v3255
      %v4024 = vmul.f32 %v3768, %v3256
      %v4025 = vmul.f32 %v3769, %v3257
      %v4026 = vmul.f32 %v3770, %v3258
      %v4027 = vmul.f32 %v3771, %v3259
      %v4028 = vmul.f32 %v3772, %v3260
      %v4029 = vmul.f32 %v3773, %v3261
      %v4030 = vmul.f32 %v3774, %v3262
      %v4031 = vmul.f32 %v3775, %v3263
      %v4032 = vmul.f32 %v3776, %v3264
      %v4033 = vmul.f32 %v3777, %v3265
      %v4034 = vmul.f32 %v3778, %v3266
      %v4035 = vmul.f32 %v3779, %v3267
      %v4036 = vmul.f32 %v3780, %v3268
      %v4037 = vmul.f32 %v3781, %v3269
      %v4038 = vmul.f32 %v3782, %v3270
      %v4039 = vmul.f32 %v3783, %v3271
      %v4040 = vmul.f32 %v3784, %v3272
      %v4041 = vmul.f32 %v3785, %v3273
      %v4042 = vmul.f32 %v3786, %v3274
      %v4043 = vmul.f32 %v3787, %v3275
      %v4044 = vmul.f32 %v3788, %v3276
      %v4045 = vmul.f32 %v3789, %v3277
      %v4046 = vmul.f32 %v3790, %v3278
      %v4047 = vmul.f32 %v3791, %v3279
      %v4048 = vmul.f32 %v3792, %v3280
      %v4049 = vmul.f32 %v3793, %v3281
      %v4050 = vmul.f32 %v3794, %v3282
      %v4051 = vmul.f32 %v3795, %v3283
      %v4052 = vmul.f32 %v3796, %v3284
      %v4053 = vmul.f32 %v3797, %v3285
      %v4054 = vmul.f32 %v3798, %v3286
      %v4055 = vmul.f32 %v3799, %v3287
      %v4056 = vmul.f32 %v3800, %v3288
      %v4057 = vmul.f32 %v3801, %v3289
      %v4058 = vmul.f32 %v3802, %v3290
      %v4059 = vmul.f32 %v3803, %v3291
      %v4060 = vmul.f32 %v3804, %v3292
      %v4061 = vmul.f32 %v3805, %v3293
      %v4062 = vmul.f32 %v3806, %v3294
      %v4063 = vmul.f32 %v3807, %v3295
      %v4064 = vmul.f32 %v3808, %v3296
      %v4065 = vmul.f32 %v3809, %v3297
      %v4066 = vmul.f32 %v3810, %v3298
      %v4067 = vmul.f32 %v3811, %v3299
      %v4068 = vmul.f32 %v3812, %v3300
      %v4069 = vmul.f32 %v3813, %v3301
      %v4070 = vmul.f32 %v3814, %v3302
      %v4071 = vmul.f32 %v3815, %v3303
      %v4072 = vmul.f32 %v3816, %v3304
      %v4073 = vmul.f32 %v3817, %v3305
      %v4074 = vmul.f32 %v3818, %v3306
      %v4075 = vmul.f32 %v3819, %v3307
      %v4076 = vmul.f32 %v3820, %v3308
      %v4077 = vmul.f32 %v3821, %v3309
      %v4078 = vmul.f32 %v3822, %v3310
      %v4079 = vmul.f32 %v3823, %v3311
      %v4080 = vmul.f32 %v3824, %v3312
      %v4081 = vmul.f32 %v3825, %v3313
      %v4082 = vmul.f32 %v3826, %v3314
      %v4083 = vmul.f32 %v3827, %v3315
      %v4084 = vmul.f32 %v3828, %v3316
      %v4085 = vmul.f32 %v3829, %v3317
      %v4086 = vmul.f32 %v3830, %v3318
      %v4087 = vmul.f32 %v3831, %v3319
      %v4088 = vmul.f32 %v3832, %v3320
      %v4089 = vmul.f32 %v3833, %v3321
      %v4090 = vmul.f32 %v3834, %v3322
      %v4091 = vmul.f32 %v3835, %v3323
      %v4092 = vmul.f32 %v3836, %v3324
      %v4093 = vmul.f32 %v3837, %v3325
      %v4094 = vmul.f32 %v3838, %v3326
      %v4095 = vmul.f32 %v3839, %v3327
      %v4096 = vmul.f32 %v3840, %v3328
      %v4097 = vmul.f32 %v3841, %v3329
      %v4098 = vmul.f32 %v3842, %v3330
      %v4099 = vmul.f32 %v3843, %v3331
      %v4100 = vmul.f32 %v3844, %v3332
      %v4101 = vmul.f32 %v3845, %v3333
      %v4102 = vmul.f32 %v3846, %v3334
      %v4103 = vmul.f32 %v3847, %v3335
      %v4104 = vmul.f32 %v3848, %v3336
      %v4105 = vmul.f32 %v3849, %v3337
      %v4106 = vmul.f32 %v3850, %v3338
      %v4107 = vmul.f32 %v3851, %v3339
      %v4108 = vmul.f32 %v3852, %v3340
      %v4109 = vmul.f32 %v3853, %v3341
      %v4110 = vmul.f32 %v3854, %v3342
      %v4111 = vmul.f32 %v3855, %v3343
      %v4112 = vmul.f32 %v3856, %v3344
      %v4113 = vmul.f32 %v3857, %v3345
      %v4114 = vmul.f32 %v3858, %v3346
      %v4115 = vmul.f32 %v3859, %v3347
      %v4116 = vmul.f32 %v3860, %v3348
      %v4117 = vmul.f32 %v3861, %v3349
      %v4118 = vmul.f32 %v3862, %v3350
      %v4119 = vmul.f32 %v3863, %v3351
      %v4120 = vmul.f32 %v3864, %v3352
      %v4121 = vmul.f32 %v3865, %v3353
      %v4122 = vmul.f32 %v3866, %v3354
      %v4123 = vmul.f32 %v3867, %v3355
      %v4124 = vmul.f32 %v3868, %v3356
      %v4125 = vmul.f32 %v3869, %v3357
      %v4126 = vmul.f32 %v3870, %v3358
      %v4127 = vmul.f32 %v3871, %v3359
      %v4128 = vmul.f32 %v3872, %v3360
      %v4129 = vmul.f32 %v3873, %v3361
      %v4130 = vmul.f32 %v3874, %v3362
      %v4131 = vmul.f32 %v3875, %v3363
      %v4132 = vmul.f32 %v3876, %v3364
      %v4133 = vmul.f32 %v3877, %v3365
      %v4134 = vmul.f32 %v3878, %v3366
      %v4135 = vmul.f32 %v3879, %v3367
      %v4136 = vmul.f32 %v3880, %v3368
      %v4137 = vmul.f32 %v3881, %v3369
      %v4138 = vmul.f32 %v3882, %v3370
      %v4139 = vmul.f32 %v3883, %v3371
      %v4140 = vmul.f32 %v3884, %v3372
      %v4141 = vmul.f32 %v3885, %v3373
      %v4142 = vmul.f32 %v3886, %v3374
      %v4143 = vmul.f32 %v3887, %v3375
      %v4144 = vmul.f32 %v3888, %v3376
      %v4145 = vmul.f32 %v3889, %v3377
      %v4146 = vmul.f32 %v3890, %v3378
      %v4147 = vmul.f32 %v3891, %v3379
      %v4148 = vmul.f32 %v3892, %v3380
      %v4149 = vmul.f32 %v3893, %v3381
      %v4150 = vmul.f32 %v3894, %v3382
      %v4151 = vmul.f32 %v3895, %v3383
      %v4152 = vmul.f32 %v3896, %v3384
      %v4153 = vmul.f32 %v3897, %v3385
      %v4154 = vmul.f32 %v3898, %v3386
      %v4155 = vmul.f32 %v3899, %v3387
      %v4156 = vmul.f32 %v3900, %v3388
      %v4157 = vmul.f32 %v3901, %v3389
      %v4158 = vmul.f32 %v3902, %v3390
      %v4159 = vmul.f32 %v3903, %v3391
      %v4160 = vmul.f32 %v3904, %v3392
      %v4161 = vmul.f32 %v3905, %v3393
      %v4162 = vmul.f32 %v3906, %v3394
      %v4163 = vmul.f32 %v3907, %v3395
      %v4164 = vmul.f32 %v3908, %v3396
      %v4165 = vmul.f32 %v3909, %v3397
      %v4166 = vmul.f32 %v3910, %v3398
      %v4167 = vmul.f32 %v3911, %v3399
      %v4168 = vmul.f32 %v3912, %v3400
      %v4169 = vmul.f32 %v3913, %v3401
      %v4170 = vmul.f32 %v3914, %v3402
      %v4171 = vmul.f32 %v3915, %v3403
      %v4172 = vmul.f32 %v3916, %v3404
      %v4173 = vmul.f32 %v3917, %v3405
      %v4174 = vmul.f32 %v3918, %v3406
      %v4175 = vmul.f32 %v3919, %v3407
      %v4176 = vmul.f32 %v3920, %v3408
      %v4177 = vmul.f32 %v3921, %v3409
      %v4178 = vmul.f32 %v3922, %v3410
      %v4179 = vmul.f32 %v3923, %v3411
      %v4180 = vmul.f32 %v3924, %v3412
      %v4181 = vmul.f32 %v3925, %v3413
      %v4182 = vmul.f32 %v3926, %v3414
      %v4183 = vmul.f32 %v3927, %v3415
      %v4184 = vmul.f32 %v3928, %v3416
      %v4185 = vmul.f32 %v3929, %v3417
      %v4186 = vmul.f32 %v3930, %v3418
      %v4187 = vmul.f32 %v3931, %v3419
      %v4188 = vmul.f32 %v3932, %v3420
      %v4189 = vmul.f32 %v3933, %v3421
      %v4190 = vmul.f32 %v3934, %v3422
      %v4191 = vmul.f32 %v3935, %v3423
      %v4192 = vmul.f32 %v3936, %v3424
      %v4193 = vmul.f32 %v3937, %v3425
      %v4194 = vmul.f32 %v3938, %v3426
      %v4195 = vmul.f32 %v3939, %v3427
      %v4196 = vmul.f32 %v3940, %v3428
      %v4197 = vmul.f32 %v3941, %v3429
      %v4198 = vmul.f32 %v3942, %v3430
      %v4199 = vmul.f32 %v3943, %v3431
      %v4200 = vmul.f32 %v3944, %v3432
      %v4201 = vmul.f32 %v3945, %v3433
      %v4202 = vmul.f32 %v3946, %v3434
      %v4203 = vmul.f32 %v3947, %v3435
      %v4204 = vmul.f32 %v3948, %v3436
      %v4205 = vmul.f32 %v3949, %v3437
      %v4206 = vmul.f32 %v3950, %v3438
      %v4207 = vmul.f32 %v3951, %v3439
      %v4208 = vmul.f32 %v3952, %v3440
      %v4209 = vmul.f32 %v3953, %v3441
      %v4210 = vmul.f32 %v3954, %v3442
      %v4211 = vmul.f32 %v3955, %v3443
      %v4212 = vmul.f32 %v3956, %v3444
      %v4213 = vmul.f32 %v3957, %v3445
      %v4214 = vmul.f32 %v3958, %v3446
      %v4215 = vmul.f32 %v3959, %v3447
      %v4216 = vmul.f32 %v3960, %v3448
      %v4217 = vmul.f32 %v3961, %v3449
      %v4218 = vmul.f32 %v3962, %v3450
      %v4219 = vmul.f32 %v3963, %v3451
      %v4220 = vmul.f32 %v3964, %v3452
      %v4221 = vmul.f32 %v3965, %v3453
      %v4222 = vmul.f32 %v3966, %v3454
      %v4223 = vmul.f32 %v3967, %v3455
      %v4224 = vmul.f32 %v3968, %v3456
      %v4225 = vmul.f32 %v3969, %v3457
      %v4226 = vmul.f32 %v3970, %v3458
      %v4227 = vmul.f32 %v3971, %v3459
      %v4228 = vmul.f32 %v3972, %v3460
      %v4229 = vmul.f32 %v3973, %v3461
      %v4230 = vmul.f32 %v3974, %v3462
      %v4231 = vmul.f32 %v3975, %v3463
      %v4232 = vmul.f32 %v3976, %v3464
      %v4233 = vmul.f32 %v3977, %v3465
      %v4234 = vmul.f32 %v3978, %v3466
      %v4235 = vmul.f32 %v3979, %v3467
      %v4236 = vmul.f32 %v3980, %v3468
      %v4237 = vmul.f32 %v3981, %v3469
      %v4238 = vmul.f32 %v3982, %v3470
      %v4239 = vadd.f32 %v3471, %v3983
      %v4240 = vadd.f32 %v3472, %v3984
      %v4241 = vadd.f32 %v3473, %v3985
      %v4242 = vadd.f32 %v3474, %v3986
      %v4243 = vadd.f32 %v3475, %v3987
      %v4244 = vadd.f32 %v3476, %v3988
      %v4245 = vadd.f32 %v3477, %v3989
      %v4246 = vadd.f32 %v3478, %v3990
      %v4247 = vadd.f32 %v3479, %v3991
      %v4248 = vadd.f32 %v3480, %v3992
      %v4249 = vadd.f32 %v3481, %v3993
      %v4250 = vadd.f32 %v3482, %v3994
      %v4251 = vadd.f32 %v3483, %v3995
      %v4252 = vadd.f32 %v3484, %v3996
      %v4253 = vadd.f32 %v3485, %v3997
      %v4254 = vadd.f32 %v3486, %v3998
      %v4255 = vadd.f32 %v3487, %v3999
      %v4256 = vadd.f32 %v3488, %v4000
      %v4257 = vadd.f32 %v3489, %v4001
      %v4258 = vadd.f32 %v3490, %v4002
      %v4259 = vadd.f32 %v3491, %v4003
      %v4260 = vadd.f32 %v3492, %v4004
      %v4261 = vadd.f32 %v3493, %v4005
      %v4262 = vadd.f32 %v3494, %v4006
      %v4263 = vadd.f32 %v3495, %v4007
      %v4264 = vadd.f32 %v3496, %v4008
      %v4265 = vadd.f32 %v3497, %v4009
      %v4266 = vadd.f32 %v3498, %v4010
      %v4267 = vadd.f32 %v3499, %v4011
      %v4268 = vadd.f32 %v3500, %v4012
      %v4269 = vadd.f32 %v3501, %v4013
      %v4270 = vadd.f32 %v3502, %v4014
      %v4271 = vadd.f32 %v3503, %v4015
      %v4272 = vadd.f32 %v3504, %v4016
      %v4273 = vadd.f32 %v3505, %v4017
      %v4274 = vadd.f32 %v3506, %v4018
      %v4275 = vadd.f32 %v3507, %v4019
      %v4276 = vadd.f32 %v3508, %v4020
      %v4277 = vadd.f32 %v3509, %v4021
      %v4278 = vadd.f32 %v3510, %v4022
      %v4279 = vadd.f32 %v3511, %v4023
      %v4280 = vadd.f32 %v3512, %v4024
      %v4281 = vadd.f32 %v3513, %v4025
      %v4282 = vadd.f32 %v3514, %v4026
      %v4283 = vadd.f32 %v3515, %v4027
      %v4284 = vadd.f32 %v3516, %v4028
      %v4285 = vadd.f32 %v3517, %v4029
      %v4286 = vadd.f32 %v3518, %v4030
      %v4287 = vadd.f32 %v3519, %v4031
      %v4288 = vadd.f32 %v3520, %v4032
      %v4289 = vadd.f32 %v3521, %v4033
      %v4290 = vadd.f32 %v3522, %v4034
      %v4291 = vadd.f32 %v3523, %v4035
      %v4292 = vadd.f32 %v3524, %v4036
      %v4293 = vadd.f32 %v3525, %v4037
      %v4294 = vadd.f32 %v3526, %v4038
      %v4295 = vadd.f32 %v3527, %v4039
      %v4296 = vadd.f32 %v3528, %v4040
      %v4297 = vadd.f32 %v3529, %v4041
      %v4298 = vadd.f32 %v3530, %v4042
      %v4299 = vadd.f32 %v3531, %v4043
      %v4300 = vadd.f32 %v3532, %v4044
      %v4301 = vadd.f32 %v3533, %v4045
      %v4302 = vadd.f32 %v3534, %v4046
      %v4303 = vadd.f32 %v3535, %v4047
      %v4304 = vadd.f32 %v3536, %v4048
      %v4305 = vadd.f32 %v3537, %v4049
      %v4306 = vadd.f32 %v3538, %v4050
      %v4307 = vadd.f32 %v3539, %v4051
      %v4308 = vadd.f32 %v3540, %v4052
      %v4309 = vadd.f32 %v3541, %v4053
      %v4310 = vadd.f32 %v3542, %v4054
      %v4311 = vadd.f32 %v3543, %v4055
      %v4312 = vadd.f32 %v3544, %v4056
      %v4313 = vadd.f32 %v3545, %v4057
      %v4314 = vadd.f32 %v3546, %v4058
      %v4315 = vadd.f32 %v3547, %v4059
      %v4316 = vadd.f32 %v3548, %v4060
      %v4317 = vadd.f32 %v3549, %v4061
      %v4318 = vadd.f32 %v3550, %v4062
      %v4319 = vadd.f32 %v3551, %v4063
      %v4320 = vadd.f32 %v3552, %v4064
      %v4321 = vadd.f32 %v3553, %v4065
      %v4322 = vadd.f32 %v3554, %v4066
      %v4323 = vadd.f32 %v3555, %v4067
      %v4324 = vadd.f32 %v3556, %v4068
      %v4325 = vadd.f32 %v3557, %v4069
      %v4326 = vadd.f32 %v3558, %v4070
      %v4327 = vadd.f32 %v3559, %v4071
      %v4328 = vadd.f32 %v3560, %v4072
      %v4329 = vadd.f32 %v3561, %v4073
      %v4330 = vadd.f32 %v3562, %v4074
      %v4331 = vadd.f32 %v3563, %v4075
      %v4332 = vadd.f32 %v3564, %v4076
      %v4333 = vadd.f32 %v3565, %v4077
      %v4334 = vadd.f32 %v3566, %v4078
      %v4335 = vadd.f32 %v3567, %v4079
      %v4336 = vadd.f32 %v3568, %v4080
      %v4337 = vadd.f32 %v3569, %v4081
      %v4338 = vadd.f32 %v3570, %v4082
      %v4339 = vadd.f32 %v3571, %v4083
      %v4340 = vadd.f32 %v3572, %v4084
      %v4341 = vadd.f32 %v3573, %v4085
      %v4342 = vadd.f32 %v3574, %v4086
      %v4343 = vadd.f32 %v3575, %v4087
      %v4344 = vadd.f32 %v3576, %v4088
      %v4345 = vadd.f32 %v3577, %v4089
      %v4346 = vadd.f32 %v3578, %v4090
      %v4347 = vadd.f32 %v3579, %v4091
      %v4348 = vadd.f32 %v3580, %v4092
      %v4349 = vadd.f32 %v3581, %v4093
      %v4350 = vadd.f32 %v3582, %v4094
      %v4351 = vadd.f32 %v3583, %v4095
      %v4352 = vadd.f32 %v3584, %v4096
      %v4353 = vadd.f32 %v3585, %v4097
      %v4354 = vadd.f32 %v3586, %v4098
      %v4355 = vadd.f32 %v3587, %v4099
      %v4356 = vadd.f32 %v3588, %v4100
      %v4357 = vadd.f32 %v3589, %v4101
      %v4358 = vadd.f32 %v3590, %v4102
      %v4359 = vadd.f32 %v3591, %v4103
      %v4360 = vadd.f32 %v3592, %v4104
      %v4361 = vadd.f32 %v3593, %v4105
      %v4362 = vadd.f32 %v3594, %v4106
      %v4363 = vadd.f32 %v3595, %v4107
      %v4364 = vadd.f32 %v3596, %v4108
      %v4365 = vadd.f32 %v3597, %v4109
      %v4366 = vadd.f32 %v3598, %v4110
      %v4367 = vadd.f32 %v3599, %v4111
      %v4368 = vadd.f32 %v3600, %v4112
      %v4369 = vadd.f32 %v3601, %v4113
      %v4370 = vadd.f32 %v3602, %v4114
      %v4371 = vadd.f32 %v3603, %v4115
      %v4372 = vadd.f32 %v3604, %v4116
      %v4373 = vadd.f32 %v3605, %v4117
      %v4374 = vadd.f32 %v3606, %v4118
      %v4375 = vadd.f32 %v3607, %v4119
      %v4376 = vadd.f32 %v3608, %v4120
      %v4377 = vadd.f32 %v3609, %v4121
      %v4378 = vadd.f32 %v3610, %v4122
      %v4379 = vadd.f32 %v3611, %v4123
      %v4380 = vadd.f32 %v3612, %v4124
      %v4381 = vadd.f32 %v3613, %v4125
      %v4382 = vadd.f32 %v3614, %v4126
      %v4383 = vadd.f32 %v3615, %v4127
      %v4384 = vadd.f32 %v3616, %v4128
      %v4385 = vadd.f32 %v3617, %v4129
      %v4386 = vadd.f32 %v3618, %v4130
      %v4387 = vadd.f32 %v3619, %v4131
      %v4388 = vadd.f32 %v3620, %v4132
      %v4389 = vadd.f32 %v3621, %v4133
      %v4390 = vadd.f32 %v3622, %v4134
      %v4391 = vadd.f32 %v3623, %v4135
      %v4392 = vadd.f32 %v3624, %v4136
      %v4393 = vadd.f32 %v3625, %v4137
      %v4394 = vadd.f32 %v3626, %v4138
      %v4395 = vadd.f32 %v3627, %v4139
      %v4396 = vadd.f32 %v3628, %v4140
      %v4397 = vadd.f32 %v3629, %v4141
      %v4398 = vadd.f32 %v3630, %v4142
      %v4399 = vadd.f32 %v3631, %v4143
      %v4400 = vadd.f32 %v3632, %v4144
      %v4401 = vadd.f32 %v3633, %v4145
      %v4402 = vadd.f32 %v3634, %v4146
      %v4403 = vadd.f32 %v3635, %v4147
      %v4404 = vadd.f32 %v3636, %v4148
      %v4405 = vadd.f32 %v3637, %v4149
      %v4406 = vadd.f32 %v3638, %v4150
      %v4407 = vadd.f32 %v3639, %v4151
      %v4408 = vadd.f32 %v3640, %v4152
      %v4409 = vadd.f32 %v3641, %v4153
      %v4410 = vadd.f32 %v3642, %v4154
      %v4411 = vadd.f32 %v3643, %v4155
      %v4412 = vadd.f32 %v3644, %v4156
      %v4413 = vadd.f32 %v3645, %v4157
      %v4414 = vadd.f32 %v3646, %v4158
      %v4415 = vadd.f32 %v3647, %v4159
      %v4416 = vadd.f32 %v3648, %v4160
      %v4417 = vadd.f32 %v3649, %v4161
      %v4418 = vadd.f32 %v3650, %v4162
      %v4419 = vadd.f32 %v3651, %v4163
      %v4420 = vadd.f32 %v3652, %v4164
      %v4421 = vadd.f32 %v3653, %v4165
      %v4422 = vadd.f32 %v3654, %v4166
      %v4423 = vadd.f32 %v3655, %v4167
      %v4424 = vadd.f32 %v3656, %v4168
      %v4425 = vadd.f32 %v3657, %v4169
      %v4426 = vadd.f32 %v3658, %v4170
      %v4427 = vadd.f32 %v3659, %v4171
      %v4428 = vadd.f32 %v3660, %v4172
      %v4429 = vadd.f32 %v3661, %v4173
      %v4430 = vadd.f32 %v3662, %v4174
      %v4431 = vadd.f32 %v3663, %v4175
      %v4432 = vadd.f32 %v3664, %v4176
      %v4433 = vadd.f32 %v3665, %v4177
      %v4434 = vadd.f32 %v3666, %v4178
      %v4435 = vadd.f32 %v3667, %v4179
      %v4436 = vadd.f32 %v3668, %v4180
      %v4437 = vadd.f32 %v3669, %v4181
      %v4438 = vadd.f32 %v3670, %v4182
      %v4439 = vadd.f32 %v3671, %v4183
      %v4440 = vadd.f32 %v3672, %v4184
      %v4441 = vadd.f32 %v3673, %v4185
      %v4442 = vadd.f32 %v3674, %v4186
      %v4443 = vadd.f32 %v3675, %v4187
      %v4444 = vadd.f32 %v3676, %v4188
      %v4445 = vadd.f32 %v3677, %v4189
      %v4446 = vadd.f32 %v3678, %v4190
      %v4447 = vadd.f32 %v3679, %v4191
      %v4448 = vadd.f32 %v3680, %v4192
      %v4449 = vadd.f32 %v3681, %v4193
      %v4450 = vadd.f32 %v3682, %v4194
      %v4451 = vadd.f32 %v3683, %v4195
      %v4452 = vadd.f32 %v3684, %v4196
      %v4453 = vadd.f32 %v3685, %v4197
      %v4454 = vadd.f32 %v3686, %v4198
      %v4455 = vadd.f32 %v3687, %v4199
      %v4456 = vadd.f32 %v3688, %v4200
      %v4457 = vadd.f32 %v3689, %v4201
      %v4458 = vadd.f32 %v3690, %v4202
      %v4459 = vadd.f32 %v3691, %v4203
      %v4460 = vadd.f32 %v3692, %v4204
      %v4461 = vadd.f32 %v3693, %v4205
      %v4462 = vadd.f32 %v3694, %v4206
      %v4463 = vadd.f32 %v3695, %v4207
      %v4464 = vadd.f32 %v3696, %v4208
      %v4465 = vadd.f32 %v3697, %v4209
      %v4466 = vadd.f32 %v3698, %v4210
      %v4467 = vadd.f32 %v3699, %v4211
      %v4468 = vadd.f32 %v3700, %v4212
      %v4469 = vadd.f32 %v3701, %v4213
      %v4470 = vadd.f32 %v3702, %v4214
      %v4471 = vadd.f32 %v3703, %v4215
      %v4472 = vadd.f32 %v3704, %v4216
      %v4473 = vadd.f32 %v3705, %v4217
      %v4474 = vadd.f32 %v3706, %v4218
      %v4475 = vadd.f32 %v3707, %v4219
      %v4476 = vadd.f32 %v3708, %v4220
      %v4477 = vadd.f32 %v3709, %v4221
      %v4478 = vadd.f32 %v3710, %v4222
      %v4479 = vadd.f32 %v3711, %v4223
      %v4480 = vadd.f32 %v3712, %v4224
      %v4481 = vadd.f32 %v3713, %v4225
      %v4482 = vadd.f32 %v3714, %v4226
      %v4483 = vadd.f32 %v3715, %v4227
      %v4484 = vadd.f32 %v3716, %v4228
      %v4485 = vadd.f32 %v3717, %v4229
      %v4486 = vadd.f32 %v3718, %v4230
      %v4487 = vadd.f32 %v3719, %v4231
      %v4488 = vadd.f32 %v3720, %v4232
      %v4489 = vadd.f32 %v3721, %v4233
      %v4490 = vadd.f32 %v3722, %v4234
      %v4491 = vadd.f32 %v3723, %v4235
      %v4492 = vadd.f32 %v3724, %v4236
      %v4493 = vadd.f32 %v3725, %v4237
      %v4494 = vadd.f32 %v3726, %v4238
      %4495 = vst [vmem:[#allocation2] sm:$0xff] %v4239
      %4496 = vst [vmem:[#allocation2 + $0x8] sm:$0xff] %v4240
      %4497 = vst [vmem:[#allocation2 + $0x10] sm:$0xff] %v4241
      %4498 = vst [vmem:[#allocation2 + $0x18] sm:$0xff] %v4242
      %4499 = vst [vmem:[#allocation2 + $0x20] sm:$0xff] %v4243
      %4500 = vst [vmem:[#allocation2 + $0x28] sm:$0xff] %v4244
      %4501 = vst [vmem:[#allocation2 + $0x30] sm:$0xff] %v4245
      %4502 = vst [vmem:[#allocation2 + $0x38] sm:$0xff] %v4246
      %4503 = vst [vmem:[#allocation2 + $0x40] sm:$0xff] %v4247
      %4504 = vst [vmem:[#allocation2 + $0x48] sm:$0xff] %v4248
      %4505 = vst [vmem:[#allocation2 + $0x50] sm:$0xff] %v4249
      %4506 = vst [vmem:[#allocation2 + $0x58] sm:$0xff] %v4250
      %4507 = vst [vmem:[#allocation2 + $0x60] sm:$0xff] %v4251
      %4508 = vst [vmem:[#allocation2 + $0x68] sm:$0xff] %v4252
      %4509 = vst [vmem:[#allocation2 + $0x70] sm:$0xff] %v4253
      %4510 = vst [vmem:[#allocation2 + $0x78] sm:$0xff] %v4254
      %4511 = vst [vmem:[#allocation2 + $0x80] sm:$0xff] %v4255
      %4512 = vst [vmem:[#allocation2 + $0x88] sm:$0xff] %v4256
      %4513 = vst [vmem:[#allocation2 + $0x90] sm:$0xff] %v4257
      %4514 = vst [vmem:[#allocation2 + $0x98] sm:$0xff] %v4258
      %4515 = vst [vmem:[#allocation2 + $0xa0] sm:$0xff] %v4259
      %4516 = vst [vmem:[#allocation2 + $0xa8] sm:$0xff] %v4260
      %4517 = vst [vmem:[#allocation2 + $0xb0] sm:$0xff] %v4261
      %4518 = vst [vmem:[#allocation2 + $0xb8] sm:$0xff] %v4262
      %4519 = vst [vmem:[#allocation2 + $0xc0] sm:$0xff] %v4263
      %4520 = vst [vmem:[#allocation2 + $0xc8] sm:$0xff] %v4264
      %4521 = vst [vmem:[#allocation2 + $0xd0] sm:$0xff] %v4265
      %4522 = vst [vmem:[#allocation2 + $0xd8] sm:$0xff] %v4266
      %4523 = vst [vmem:[#allocation2 + $0xe0] sm:$0xff] %v4267
      %4524 = vst [vmem:[#allocation2 + $0xe8] sm:$0xff] %v4268
      %4525 = vst [vmem:[#allocation2 + $0xf0] sm:$0xff] %v4269
      %4526 = vst [vmem:[#allocation2 + $0xf8] sm:$0xff] %v4270
      %4527 = vst [vmem:[#allocation2 + $0x100] sm:$0xff] %v4271
      %4528 = vst [vmem:[#allocation2 + $0x108] sm:$0xff] %v4272
      %4529 = vst [vmem:[#allocation2 + $0x110] sm:$0xff] %v4273
      %4530 = vst [vmem:[#allocation2 + $0x118] sm:$0xff] %v4274
      %4531 = vst [vmem:[#allocation2 + $0x120] sm:$0xff] %v4275
      %4532 = vst [vmem:[#allocation2 + $0x128] sm:$0xff] %v4276
      %4533 = vst [vmem:[#allocation2 + $0x130] sm:$0xff] %v4277
      %4534 = vst [vmem:[#allocation2 + $0x138] sm:$0xff] %v4278
      %4535 = vst [vmem:[#allocation2 + $0x140] sm:$0xff] %v4279
      %4536 = vst [vmem:[#allocation2 + $0x148] sm:$0xff] %v4280
      %4537 = vst [vmem:[#allocation2 + $0x150] sm:$0xff] %v4281
      %4538 = vst [vmem:[#allocation2 + $0x158] sm:$0xff] %v4282
      %4539 = vst [vmem:[#allocation2 + $0x160] sm:$0xff] %v4283
      %4540 = vst [vmem:[#allocation2 + $0x168] sm:$0xff] %v4284
      %4541 = vst [vmem:[#allocation2 + $0x170] sm:$0xff] %v4285
      %4542 = vst [vmem:[#allocation2 + $0x178] sm:$0xff] %v4286
      %4543 = vst [vmem:[#allocation2 + $0x180] sm:$0xff] %v4287
      %4544 = vst [vmem:[#allocation2 + $0x188] sm:$0xff] %v4288
      %4545 = vst [vmem:[#allocation2 + $0x190] sm:$0xff] %v4289
      %4546 = vst [vmem:[#allocation2 + $0x198] sm:$0xff] %v4290
      %4547 = vst [vmem:[#allocation2 + $0x1a0] sm:$0xff] %v4291
      %4548 = vst [vmem:[#allocation2 + $0x1a8] sm:$0xff] %v4292
      %4549 = vst [vmem:[#allocation2 + $0x1b0] sm:$0xff] %v4293
      %4550 = vst [vmem:[#allocation2 + $0x1b8] sm:$0xff] %v4294
      %4551 = vst [vmem:[#allocation2 + $0x1c0] sm:$0xff] %v4295
      %4552 = vst [vmem:[#allocation2 + $0x1c8] sm:$0xff] %v4296
      %4553 = vst [vmem:[#allocation2 + $0x1d0] sm:$0xff] %v4297
      %4554 = vst [vmem:[#allocation2 + $0x1d8] sm:$0xff] %v4298
      %4555 = vst [vmem:[#allocation2 + $0x1e0] sm:$0xff] %v4299
      %4556 = vst [vmem:[#allocation2 + $0x1e8] sm:$0xff] %v4300
      %4557 = vst [vmem:[#allocation2 + $0x1f0] sm:$0xff] %v4301
      %4558 = vst [vmem:[#allocation2 + $0x1f8] sm:$0xff] %v4302
      %4559 = vst [vmem:[#allocation2 + $0x200] sm:$0xff] %v4303
      %4560 = vst [vmem:[#allocation2 + $0x208] sm:$0xff] %v4304
      %4561 = vst [vmem:[#allocation2 + $0x210] sm:$0xff] %v4305
      %4562 = vst [vmem:[#allocation2 + $0x218] sm:$0xff] %v4306
      %4563 = vst [vmem:[#allocation2 + $0x220] sm:$0xff] %v4307
      %4564 = vst [vmem:[#allocation2 + $0x228] sm:$0xff] %v4308
      %4565 = vst [vmem:[#allocation2 + $0x230] sm:$0xff] %v4309
      %4566 = vst [vmem:[#allocation2 + $0x238] sm:$0xff] %v4310
      %4567 = vst [vmem:[#allocation2 + $0x240] sm:$0xff] %v4311
      %4568 = vst [vmem:[#allocation2 + $0x248] sm:$0xff] %v4312
      %4569 = vst [vmem:[#allocation2 + $0x250] sm:$0xff] %v4313
      %4570 = vst [vmem:[#allocation2 + $0x258] sm:$0xff] %v4314
      %4571 = vst [vmem:[#allocation2 + $0x260] sm:$0xff] %v4315
      %4572 = vst [vmem:[#allocation2 + $0x268] sm:$0xff] %v4316
      %4573 = vst [vmem:[#allocation2 + $0x270] sm:$0xff] %v4317
      %4574 = vst [vmem:[#allocation2 + $0x278] sm:$0xff] %v4318
      %4575 = vst [vmem:[#allocation2 + $0x280] sm:$0xff] %v4319
      %4576 = vst [vmem:[#allocation2 + $0x288] sm:$0xff] %v4320
      %4577 = vst [vmem:[#allocation2 + $0x290] sm:$0xff] %v4321
      %4578 = vst [vmem:[#allocation2 + $0x298] sm:$0xff] %v4322
      %4579 = vst [vmem:[#allocation2 + $0x2a0] sm:$0xff] %v4323
      %4580 = vst [vmem:[#allocation2 + $0x2a8] sm:$0xff] %v4324
      %4581 = vst [vmem:[#allocation2 + $0x2b0] sm:$0xff] %v4325
      %4582 = vst [vmem:[#allocation2 + $0x2b8] sm:$0xff] %v4326
      %4583 = vst [vmem:[#allocation2 + $0x2c0] sm:$0xff] %v4327
      %4584 = vst [vmem:[#allocation2 + $0x2c8] sm:$0xff] %v4328
      %4585 = vst [vmem:[#allocation2 + $0x2d0] sm:$0xff] %v4329
      %4586 = vst [vmem:[#allocation2 + $0x2d8] sm:$0xff] %v4330
      %4587 = vst [vmem:[#allocation2 + $0x2e0] sm:$0xff] %v4331
      %4588 = vst [vmem:[#allocation2 + $0x2e8] sm:$0xff] %v4332
      %4589 = vst [vmem:[#allocation2 + $0x2f0] sm:$0xff] %v4333
      %4590 = vst [vmem:[#allocation2 + $0x2f8] sm:$0xff] %v4334
      %4591 = vst [vmem:[#allocation2 + $0x300] sm:$0xff] %v4335
      %4592 = vst [vmem:[#allocation2 + $0x308] sm:$0xff] %v4336
      %4593 = vst [vmem:[#allocation2 + $0x310] sm:$0xff] %v4337
      %4594 = vst [vmem:[#allocation2 + $0x318] sm:$0xff] %v4338
      %4595 = vst [vmem:[#allocation2 + $0x320] sm:$0xff] %v4339
      %4596 = vst [vmem:[#allocation2 + $0x328] sm:$0xff] %v4340
      %4597 = vst [vmem:[#allocation2 + $0x330] sm:$0xff] %v4341
      %4598 = vst [vmem:[#allocation2 + $0x338] sm:$0xff] %v4342
      %4599 = vst [vmem:[#allocation2 + $0x340] sm:$0xff] %v4343
      %4600 = vst [vmem:[#allocation2 + $0x348] sm:$0xff] %v4344
      %4601 = vst [vmem:[#allocation2 + $0x350] sm:$0xff] %v4345
      %4602 = vst [vmem:[#allocation2 + $0x358] sm:$0xff] %v4346
      %4603 = vst [vmem:[#allocation2 + $0x360] sm:$0xff] %v4347
      %4604 = vst [vmem:[#allocation2 + $0x368] sm:$0xff] %v4348
      %4605 = vst [vmem:[#allocation2 + $0x370] sm:$0xff] %v4349
      %4606 = vst [vmem:[#allocation2 + $0x378] sm:$0xff] %v4350
      %4607 = vst [vmem:[#allocation2 + $0x380] sm:$0xff] %v4351
      %4608 = vst [vmem:[#allocation2 + $0x388] sm:$0xff] %v4352
      %4609 = vst [vmem:[#allocation2 + $0x390] sm:$0xff] %v4353
      %4610 = vst [vmem:[#allocation2 + $0x398] sm:$0xff] %v4354
      %4611 = vst [vmem:[#allocation2 + $0x3a0] sm:$0xff] %v4355
      %4612 = vst [vmem:[#allocation2 + $0x3a8] sm:$0xff] %v4356
      %4613 = vst [vmem:[#allocation2 + $0x3b0] sm:$0xff] %v4357
      %4614 = vst [vmem:[#allocation2 + $0x3b8] sm:$0xff] %v4358
      %4615 = vst [vmem:[#allocation2 + $0x3c0] sm:$0xff] %v4359
      %4616 = vst [vmem:[#allocation2 + $0x3c8] sm:$0xff] %v4360
      %4617 = vst [vmem:[#allocation2 + $0x3d0] sm:$0xff] %v4361
      %4618 = vst [vmem:[#allocation2 + $0x3d8] sm:$0xff] %v4362
      %4619 = vst [vmem:[#allocation2 + $0x3e0] sm:$0xff] %v4363
      %4620 = vst [vmem:[#allocation2 + $0x3e8] sm:$0xff] %v4364
      %4621 = vst [vmem:[#allocation2 + $0x3f0] sm:$0xff] %v4365
      %4622 = vst [vmem:[#allocation2 + $0x3f8] sm:$0xff] %v4366
      %4623 = vst [vmem:[#allocation2 + $0x400] sm:$0xff] %v4367
      %4624 = vst [vmem:[#allocation2 + $0x408] sm:$0xff] %v4368
      %4625 = vst [vmem:[#allocation2 + $0x410] sm:$0xff] %v4369
      %4626 = vst [vmem:[#allocation2 + $0x418] sm:$0xff] %v4370
      %4627 = vst [vmem:[#allocation2 + $0x420] sm:$0xff] %v4371
      %4628 = vst [vmem:[#allocation2 + $0x428] sm:$0xff] %v4372
      %4629 = vst [vmem:[#allocation2 + $0x430] sm:$0xff] %v4373
      %4630 = vst [vmem:[#allocation2 + $0x438] sm:$0xff] %v4374
      %4631 = vst [vmem:[#allocation2 + $0x440] sm:$0xff] %v4375
      %4632 = vst [vmem:[#allocation2 + $0x448] sm:$0xff] %v4376
      %4633 = vst [vmem:[#allocation2 + $0x450] sm:$0xff] %v4377
      %4634 = vst [vmem:[#allocation2 + $0x458] sm:$0xff] %v4378
      %4635 = vst [vmem:[#allocation2 + $0x460] sm:$0xff] %v4379
      %4636 = vst [vmem:[#allocation2 + $0x468] sm:$0xff] %v4380
      %4637 = vst [vmem:[#allocation2 + $0x470] sm:$0xff] %v4381
      %4638 = vst [vmem:[#allocation2 + $0x478] sm:$0xff] %v4382
      %4639 = vst [vmem:[#allocation2 + $0x480] sm:$0xff] %v4383
      %4640 = vst [vmem:[#allocation2 + $0x488] sm:$0xff] %v4384
      %4641 = vst [vmem:[#allocation2 + $0x490] sm:$0xff] %v4385
      %4642 = vst [vmem:[#allocation2 + $0x498] sm:$0xff] %v4386
      %4643 = vst [vmem:[#allocation2 + $0x4a0] sm:$0xff] %v4387
      %4644 = vst [vmem:[#allocation2 + $0x4a8] sm:$0xff] %v4388
      %4645 = vst [vmem:[#allocation2 + $0x4b0] sm:$0xff] %v4389
      %4646 = vst [vmem:[#allocation2 + $0x4b8] sm:$0xff] %v4390
      %4647 = vst [vmem:[#allocation2 + $0x4c0] sm:$0xff] %v4391
      %4648 = vst [vmem:[#allocation2 + $0x4c8] sm:$0xff] %v4392
      %4649 = vst [vmem:[#allocation2 + $0x4d0] sm:$0xff] %v4393
      %4650 = vst [vmem:[#allocation2 + $0x4d8] sm:$0xff] %v4394
      %4651 = vst [vmem:[#allocation2 + $0x4e0] sm:$0xff] %v4395
      %4652 = vst [vmem:[#allocation2 + $0x4e8] sm:$0xff] %v4396
      %4653 = vst [vmem:[#allocation2 + $0x4f0] sm:$0xff] %v4397
      %4654 = vst [vmem:[#allocation2 + $0x4f8] sm:$0xff] %v4398
      %4655 = vst [vmem:[#allocation2 + $0x500] sm:$0xff] %v4399
      %4656 = vst [vmem:[#allocation2 + $0x508] sm:$0xff] %v4400
      %4657 = vst [vmem:[#allocation2 + $0x510] sm:$0xff] %v4401
      %4658 = vst [vmem:[#allocation2 + $0x518] sm:$0xff] %v4402
      %4659 = vst [vmem:[#allocation2 + $0x520] sm:$0xff] %v4403
      %4660 = vst [vmem:[#allocation2 + $0x528] sm:$0xff] %v4404
      %4661 = vst [vmem:[#allocation2 + $0x530] sm:$0xff] %v4405
      %4662 = vst [vmem:[#allocation2 + $0x538] sm:$0xff] %v4406
      %4663 = vst [vmem:[#allocation2 + $0x540] sm:$0xff] %v4407
      %4664 = vst [vmem:[#allocation2 + $0x548] sm:$0xff] %v4408
      %4665 = vst [vmem:[#allocation2 + $0x550] sm:$0xff] %v4409
      %4666 = vst [vmem:[#allocation2 + $0x558] sm:$0xff] %v4410
      %4667 = vst [vmem:[#allocation2 + $0x560] sm:$0xff] %v4411
      %4668 = vst [vmem:[#allocation2 + $0x568] sm:$0xff] %v4412
      %4669 = vst [vmem:[#allocation2 + $0x570] sm:$0xff] %v4413
      %4670 = vst [vmem:[#allocation2 + $0x578] sm:$0xff] %v4414
      %4671 = vst [vmem:[#allocation2 + $0x580] sm:$0xff] %v4415
      %4672 = vst [vmem:[#allocation2 + $0x588] sm:$0xff] %v4416
      %4673 = vst [vmem:[#allocation2 + $0x590] sm:$0xff] %v4417
      %4674 = vst [vmem:[#allocation2 + $0x598] sm:$0xff] %v4418
      %4675 = vst [vmem:[#allocation2 + $0x5a0] sm:$0xff] %v4419
      %4676 = vst [vmem:[#allocation2 + $0x5a8] sm:$0xff] %v4420
      %4677 = vst [vmem:[#allocation2 + $0x5b0] sm:$0xff] %v4421
      %4678 = vst [vmem:[#allocation2 + $0x5b8] sm:$0xff] %v4422
      %4679 = vst [vmem:[#allocation2 + $0x5c0] sm:$0xff] %v4423
      %4680 = vst [vmem:[#allocation2 + $0x5c8] sm:$0xff] %v4424
      %4681 = vst [vmem:[#allocation2 + $0x5d0] sm:$0xff] %v4425
      %4682 = vst [vmem:[#allocation2 + $0x5d8] sm:$0xff] %v4426
      %4683 = vst [vmem:[#allocation2 + $0x5e0] sm:$0xff] %v4427
      %4684 = vst [vmem:[#allocation2 + $0x5e8] sm:$0xff] %v4428
      %4685 = vst [vmem:[#allocation2 + $0x5f0] sm:$0xff] %v4429
      %4686 = vst [vmem:[#allocation2 + $0x5f8] sm:$0xff] %v4430
      %4687 = vst [vmem:[#allocation2 + $0x600] sm:$0xff] %v4431
      %4688 = vst [vmem:[#allocation2 + $0x608] sm:$0xff] %v4432
      %4689 = vst [vmem:[#allocation2 + $0x610] sm:$0xff] %v4433
      %4690 = vst [vmem:[#allocation2 + $0x618] sm:$0xff] %v4434
      %4691 = vst [vmem:[#allocation2 + $0x620] sm:$0xff] %v4435
      %4692 = vst [vmem:[#allocation2 + $0x628] sm:$0xff] %v4436
      %4693 = vst [vmem:[#allocation2 + $0x630] sm:$0xff] %v4437
      %4694 = vst [vmem:[#allocation2 + $0x638] sm:$0xff] %v4438
      %4695 = vst [vmem:[#allocation2 + $0x640] sm:$0xff] %v4439
      %4696 = vst [vmem:[#allocation2 + $0x648] sm:$0xff] %v4440
      %4697 = vst [vmem:[#allocation2 + $0x650] sm:$0xff] %v4441
      %4698 = vst [vmem:[#allocation2 + $0x658] sm:$0xff] %v4442
      %4699 = vst [vmem:[#allocation2 + $0x660] sm:$0xff] %v4443
      %4700 = vst [vmem:[#allocation2 + $0x668] sm:$0xff] %v4444
      %4701 = vst [vmem:[#allocation2 + $0x670] sm:$0xff] %v4445
      %4702 = vst [vmem:[#allocation2 + $0x678] sm:$0xff] %v4446
      %4703 = vst [vmem:[#allocation2 + $0x680] sm:$0xff] %v4447
      %4704 = vst [vmem:[#allocation2 + $0x688] sm:$0xff] %v4448
      %4705 = vst [vmem:[#allocation2 + $0x690] sm:$0xff] %v4449
      %4706 = vst [vmem:[#allocation2 + $0x698] sm:$0xff] %v4450
      %4707 = vst [vmem:[#allocation2 + $0x6a0] sm:$0xff] %v4451
      %4708 = vst [vmem:[#allocation2 + $0x6a8] sm:$0xff] %v4452
      %4709 = vst [vmem:[#allocation2 + $0x6b0] sm:$0xff] %v4453
      %4710 = vst [vmem:[#allocation2 + $0x6b8] sm:$0xff] %v4454
      %4711 = vst [vmem:[#allocation2 + $0x6c0] sm:$0xff] %v4455
      %4712 = vst [vmem:[#allocation2 + $0x6c8] sm:$0xff] %v4456
      %4713 = vst [vmem:[#allocation2 + $0x6d0] sm:$0xff] %v4457
      %4714 = vst [vmem:[#allocation2 + $0x6d8] sm:$0xff] %v4458
      %4715 = vst [vmem:[#allocation2 + $0x6e0] sm:$0xff] %v4459
      %4716 = vst [vmem:[#allocation2 + $0x6e8] sm:$0xff] %v4460
      %4717 = vst [vmem:[#allocation2 + $0x6f0] sm:$0xff] %v4461
      %4718 = vst [vmem:[#allocation2 + $0x6f8] sm:$0xff] %v4462
      %4719 = vst [vmem:[#allocation2 + $0x700] sm:$0xff] %v4463
      %4720 = vst [vmem:[#allocation2 + $0x708] sm:$0xff] %v4464
      %4721 = vst [vmem:[#allocation2 + $0x710] sm:$0xff] %v4465
      %4722 = vst [vmem:[#allocation2 + $0x718] sm:$0xff] %v4466
      %4723 = vst [vmem:[#allocation2 + $0x720] sm:$0xff] %v4467
      %4724 = vst [vmem:[#allocation2 + $0x728] sm:$0xff] %v4468
      %4725 = vst [vmem:[#allocation2 + $0x730] sm:$0xff] %v4469
      %4726 = vst [vmem:[#allocation2 + $0x738] sm:$0xff] %v4470
      %4727 = vst [vmem:[#allocation2 + $0x740] sm:$0xff] %v4471
      %4728 = vst [vmem:[#allocation2 + $0x748] sm:$0xff] %v4472
      %4729 = vst [vmem:[#allocation2 + $0x750] sm:$0xff] %v4473
      %4730 = vst [vmem:[#allocation2 + $0x758] sm:$0xff] %v4474
      %4731 = vst [vmem:[#allocation2 + $0x760] sm:$0xff] %v4475
      %4732 = vst [vmem:[#allocation2 + $0x768] sm:$0xff] %v4476
      %4733 = vst [vmem:[#allocation2 + $0x770] sm:$0xff] %v4477
      %4734 = vst [vmem:[#allocation2 + $0x778] sm:$0xff] %v4478
      %4735 = vst [vmem:[#allocation2 + $0x780] sm:$0xff] %v4479
      %4736 = vst [vmem:[#allocation2 + $0x788] sm:$0xff] %v4480
      %4737 = vst [vmem:[#allocation2 + $0x790] sm:$0xff] %v4481
      %4738 = vst [vmem:[#allocation2 + $0x798] sm:$0xff] %v4482
      %4739 = vst [vmem:[#allocation2 + $0x7a0] sm:$0xff] %v4483
      %4740 = vst [vmem:[#allocation2 + $0x7a8] sm:$0xff] %v4484
      %4741 = vst [vmem:[#allocation2 + $0x7b0] sm:$0xff] %v4485
      %4742 = vst [vmem:[#allocation2 + $0x7b8] sm:$0xff] %v4486
      %4743 = vst [vmem:[#allocation2 + $0x7c0] sm:$0xff] %v4487
      %4744 = vst [vmem:[#allocation2 + $0x7c8] sm:$0xff] %v4488
      %4745 = vst [vmem:[#allocation2 + $0x7d0] sm:$0xff] %v4489
      %4746 = vst [vmem:[#allocation2 + $0x7d8] sm:$0xff] %v4490
      %4747 = vst [vmem:[#allocation2 + $0x7e0] sm:$0xff] %v4491
      %4748 = vst [vmem:[#allocation2 + $0x7e8] sm:$0xff] %v4492
      %4749 = vst [vmem:[#allocation2 + $0x7f0] sm:$0xff] %v4493
      %4750 = vst [vmem:[#allocation2 + $0x7f8] sm:$0xff] %v4494
      // Predicated region
      $region33: #{tpu_custom_call.1} parent=27 // pred_check
        %p4751 = pneg %p160
      $region34: #{tpu_custom_call.1} parent=27 // pred_check_branch
        %4753 = sbr.rel (%p4751) target = $region36
      $region35: #{tpu_custom_call.1} parent=27 // pred_region
        %v4754 = vld [vmem:[#allocation2] sm:$0xff]
        %v4755 = vld [vmem:[#allocation2 + $0x8] sm:$0xff]
        %v4756 = vld [vmem:[#allocation2 + $0x10] sm:$0xff]
        %v4757 = vld [vmem:[#allocation2 + $0x18] sm:$0xff]
        %v4758 = vld [vmem:[#allocation2 + $0x20] sm:$0xff]
        %v4759 = vld [vmem:[#allocation2 + $0x28] sm:$0xff]
        %v4760 = vld [vmem:[#allocation2 + $0x30] sm:$0xff]
        %v4761 = vld [vmem:[#allocation2 + $0x38] sm:$0xff]
        %v4762 = vld [vmem:[#allocation2 + $0x40] sm:$0xff]
        %v4763 = vld [vmem:[#allocation2 + $0x48] sm:$0xff]
        %v4764 = vld [vmem:[#allocation2 + $0x50] sm:$0xff]
        %v4765 = vld [vmem:[#allocation2 + $0x58] sm:$0xff]
        %v4766 = vld [vmem:[#allocation2 + $0x60] sm:$0xff]
        %v4767 = vld [vmem:[#allocation2 + $0x68] sm:$0xff]
        %v4768 = vld [vmem:[#allocation2 + $0x70] sm:$0xff]
        %v4769 = vld [vmem:[#allocation2 + $0x78] sm:$0xff]
        %v4770 = vld [vmem:[#allocation2 + $0x80] sm:$0xff]
        %v4771 = vld [vmem:[#allocation2 + $0x88] sm:$0xff]
        %v4772 = vld [vmem:[#allocation2 + $0x90] sm:$0xff]
        %v4773 = vld [vmem:[#allocation2 + $0x98] sm:$0xff]
        %v4774 = vld [vmem:[#allocation2 + $0xa0] sm:$0xff]
        %v4775 = vld [vmem:[#allocation2 + $0xa8] sm:$0xff]
        %v4776 = vld [vmem:[#allocation2 + $0xb0] sm:$0xff]
        %v4777 = vld [vmem:[#allocation2 + $0xb8] sm:$0xff]
        %v4778 = vld [vmem:[#allocation2 + $0xc0] sm:$0xff]
        %v4779 = vld [vmem:[#allocation2 + $0xc8] sm:$0xff]
        %v4780 = vld [vmem:[#allocation2 + $0xd0] sm:$0xff]
        %v4781 = vld [vmem:[#allocation2 + $0xd8] sm:$0xff]
        %v4782 = vld [vmem:[#allocation2 + $0xe0] sm:$0xff]
        %v4783 = vld [vmem:[#allocation2 + $0xe8] sm:$0xff]
        %v4784 = vld [vmem:[#allocation2 + $0xf0] sm:$0xff]
        %v4785 = vld [vmem:[#allocation2 + $0xf8] sm:$0xff]
        %v4786 = vld [vmem:[#allocation2 + $0x100] sm:$0xff]
        %v4787 = vld [vmem:[#allocation2 + $0x108] sm:$0xff]
        %v4788 = vld [vmem:[#allocation2 + $0x110] sm:$0xff]
        %v4789 = vld [vmem:[#allocation2 + $0x118] sm:$0xff]
        %v4790 = vld [vmem:[#allocation2 + $0x120] sm:$0xff]
        %v4791 = vld [vmem:[#allocation2 + $0x128] sm:$0xff]
        %v4792 = vld [vmem:[#allocation2 + $0x130] sm:$0xff]
        %v4793 = vld [vmem:[#allocation2 + $0x138] sm:$0xff]
        %v4794 = vld [vmem:[#allocation2 + $0x140] sm:$0xff]
        %v4795 = vld [vmem:[#allocation2 + $0x148] sm:$0xff]
        %v4796 = vld [vmem:[#allocation2 + $0x150] sm:$0xff]
        %v4797 = vld [vmem:[#allocation2 + $0x158] sm:$0xff]
        %v4798 = vld [vmem:[#allocation2 + $0x160] sm:$0xff]
        %v4799 = vld [vmem:[#allocation2 + $0x168] sm:$0xff]
        %v4800 = vld [vmem:[#allocation2 + $0x170] sm:$0xff]
        %v4801 = vld [vmem:[#allocation2 + $0x178] sm:$0xff]
        %v4802 = vld [vmem:[#allocation2 + $0x180] sm:$0xff]
        %v4803 = vld [vmem:[#allocation2 + $0x188] sm:$0xff]
        %v4804 = vld [vmem:[#allocation2 + $0x190] sm:$0xff]
        %v4805 = vld [vmem:[#allocation2 + $0x198] sm:$0xff]
        %v4806 = vld [vmem:[#allocation2 + $0x1a0] sm:$0xff]
        %v4807 = vld [vmem:[#allocation2 + $0x1a8] sm:$0xff]
        %v4808 = vld [vmem:[#allocation2 + $0x1b0] sm:$0xff]
        %v4809 = vld [vmem:[#allocation2 + $0x1b8] sm:$0xff]
        %v4810 = vld [vmem:[#allocation2 + $0x1c0] sm:$0xff]
        %v4811 = vld [vmem:[#allocation2 + $0x1c8] sm:$0xff]
        %v4812 = vld [vmem:[#allocation2 + $0x1d0] sm:$0xff]
        %v4813 = vld [vmem:[#allocation2 + $0x1d8] sm:$0xff]
        %v4814 = vld [vmem:[#allocation2 + $0x1e0] sm:$0xff]
        %v4815 = vld [vmem:[#allocation2 + $0x1e8] sm:$0xff]
        %v4816 = vld [vmem:[#allocation2 + $0x1f0] sm:$0xff]
        %v4817 = vld [vmem:[#allocation2 + $0x1f8] sm:$0xff]
        %v4818 = vld [vmem:[#allocation2 + $0x200] sm:$0xff]
        %v4819 = vld [vmem:[#allocation2 + $0x208] sm:$0xff]
        %v4820 = vld [vmem:[#allocation2 + $0x210] sm:$0xff]
        %v4821 = vld [vmem:[#allocation2 + $0x218] sm:$0xff]
        %v4822 = vld [vmem:[#allocation2 + $0x220] sm:$0xff]
        %v4823 = vld [vmem:[#allocation2 + $0x228] sm:$0xff]
        %v4824 = vld [vmem:[#allocation2 + $0x230] sm:$0xff]
        %v4825 = vld [vmem:[#allocation2 + $0x238] sm:$0xff]
        %v4826 = vld [vmem:[#allocation2 + $0x240] sm:$0xff]
        %v4827 = vld [vmem:[#allocation2 + $0x248] sm:$0xff]
        %v4828 = vld [vmem:[#allocation2 + $0x250] sm:$0xff]
        %v4829 = vld [vmem:[#allocation2 + $0x258] sm:$0xff]
        %v4830 = vld [vmem:[#allocation2 + $0x260] sm:$0xff]
        %v4831 = vld [vmem:[#allocation2 + $0x268] sm:$0xff]
        %v4832 = vld [vmem:[#allocation2 + $0x270] sm:$0xff]
        %v4833 = vld [vmem:[#allocation2 + $0x278] sm:$0xff]
        %v4834 = vld [vmem:[#allocation2 + $0x280] sm:$0xff]
        %v4835 = vld [vmem:[#allocation2 + $0x288] sm:$0xff]
        %v4836 = vld [vmem:[#allocation2 + $0x290] sm:$0xff]
        %v4837 = vld [vmem:[#allocation2 + $0x298] sm:$0xff]
        %v4838 = vld [vmem:[#allocation2 + $0x2a0] sm:$0xff]
        %v4839 = vld [vmem:[#allocation2 + $0x2a8] sm:$0xff]
        %v4840 = vld [vmem:[#allocation2 + $0x2b0] sm:$0xff]
        %v4841 = vld [vmem:[#allocation2 + $0x2b8] sm:$0xff]
        %v4842 = vld [vmem:[#allocation2 + $0x2c0] sm:$0xff]
        %v4843 = vld [vmem:[#allocation2 + $0x2c8] sm:$0xff]
        %v4844 = vld [vmem:[#allocation2 + $0x2d0] sm:$0xff]
        %v4845 = vld [vmem:[#allocation2 + $0x2d8] sm:$0xff]
        %v4846 = vld [vmem:[#allocation2 + $0x2e0] sm:$0xff]
        %v4847 = vld [vmem:[#allocation2 + $0x2e8] sm:$0xff]
        %v4848 = vld [vmem:[#allocation2 + $0x2f0] sm:$0xff]
        %v4849 = vld [vmem:[#allocation2 + $0x2f8] sm:$0xff]
        %v4850 = vld [vmem:[#allocation2 + $0x300] sm:$0xff]
        %v4851 = vld [vmem:[#allocation2 + $0x308] sm:$0xff]
        %v4852 = vld [vmem:[#allocation2 + $0x310] sm:$0xff]
        %v4853 = vld [vmem:[#allocation2 + $0x318] sm:$0xff]
        %v4854 = vld [vmem:[#allocation2 + $0x320] sm:$0xff]
        %v4855 = vld [vmem:[#allocation2 + $0x328] sm:$0xff]
        %v4856 = vld [vmem:[#allocation2 + $0x330] sm:$0xff]
        %v4857 = vld [vmem:[#allocation2 + $0x338] sm:$0xff]
        %v4858 = vld [vmem:[#allocation2 + $0x340] sm:$0xff]
        %v4859 = vld [vmem:[#allocation2 + $0x348] sm:$0xff]
        %v4860 = vld [vmem:[#allocation2 + $0x350] sm:$0xff]
        %v4861 = vld [vmem:[#allocation2 + $0x358] sm:$0xff]
        %v4862 = vld [vmem:[#allocation2 + $0x360] sm:$0xff]
        %v4863 = vld [vmem:[#allocation2 + $0x368] sm:$0xff]
        %v4864 = vld [vmem:[#allocation2 + $0x370] sm:$0xff]
        %v4865 = vld [vmem:[#allocation2 + $0x378] sm:$0xff]
        %v4866 = vld [vmem:[#allocation2 + $0x380] sm:$0xff]
        %v4867 = vld [vmem:[#allocation2 + $0x388] sm:$0xff]
        %v4868 = vld [vmem:[#allocation2 + $0x390] sm:$0xff]
        %v4869 = vld [vmem:[#allocation2 + $0x398] sm:$0xff]
        %v4870 = vld [vmem:[#allocation2 + $0x3a0] sm:$0xff]
        %v4871 = vld [vmem:[#allocation2 + $0x3a8] sm:$0xff]
        %v4872 = vld [vmem:[#allocation2 + $0x3b0] sm:$0xff]
        %v4873 = vld [vmem:[#allocation2 + $0x3b8] sm:$0xff]
        %v4874 = vld [vmem:[#allocation2 + $0x3c0] sm:$0xff]
        %v4875 = vld [vmem:[#allocation2 + $0x3c8] sm:$0xff]
        %v4876 = vld [vmem:[#allocation2 + $0x3d0] sm:$0xff]
        %v4877 = vld [vmem:[#allocation2 + $0x3d8] sm:$0xff]
        %v4878 = vld [vmem:[#allocation2 + $0x3e0] sm:$0xff]
        %v4879 = vld [vmem:[#allocation2 + $0x3e8] sm:$0xff]
        %v4880 = vld [vmem:[#allocation2 + $0x3f0] sm:$0xff]
        %v4881 = vld [vmem:[#allocation2 + $0x3f8] sm:$0xff]
        %v4882 = vld [vmem:[#allocation2 + $0x400] sm:$0xff]
        %v4883 = vld [vmem:[#allocation2 + $0x408] sm:$0xff]
        %v4884 = vld [vmem:[#allocation2 + $0x410] sm:$0xff]
        %v4885 = vld [vmem:[#allocation2 + $0x418] sm:$0xff]
        %v4886 = vld [vmem:[#allocation2 + $0x420] sm:$0xff]
        %v4887 = vld [vmem:[#allocation2 + $0x428] sm:$0xff]
        %v4888 = vld [vmem:[#allocation2 + $0x430] sm:$0xff]
        %v4889 = vld [vmem:[#allocation2 + $0x438] sm:$0xff]
        %v4890 = vld [vmem:[#allocation2 + $0x440] sm:$0xff]
        %v4891 = vld [vmem:[#allocation2 + $0x448] sm:$0xff]
        %v4892 = vld [vmem:[#allocation2 + $0x450] sm:$0xff]
        %v4893 = vld [vmem:[#allocation2 + $0x458] sm:$0xff]
        %v4894 = vld [vmem:[#allocation2 + $0x460] sm:$0xff]
        %v4895 = vld [vmem:[#allocation2 + $0x468] sm:$0xff]
        %v4896 = vld [vmem:[#allocation2 + $0x470] sm:$0xff]
        %v4897 = vld [vmem:[#allocation2 + $0x478] sm:$0xff]
        %v4898 = vld [vmem:[#allocation2 + $0x480] sm:$0xff]
        %v4899 = vld [vmem:[#allocation2 + $0x488] sm:$0xff]
        %v4900 = vld [vmem:[#allocation2 + $0x490] sm:$0xff]
        %v4901 = vld [vmem:[#allocation2 + $0x498] sm:$0xff]
        %v4902 = vld [vmem:[#allocation2 + $0x4a0] sm:$0xff]
        %v4903 = vld [vmem:[#allocation2 + $0x4a8] sm:$0xff]
        %v4904 = vld [vmem:[#allocation2 + $0x4b0] sm:$0xff]
        %v4905 = vld [vmem:[#allocation2 + $0x4b8] sm:$0xff]
        %v4906 = vld [vmem:[#allocation2 + $0x4c0] sm:$0xff]
        %v4907 = vld [vmem:[#allocation2 + $0x4c8] sm:$0xff]
        %v4908 = vld [vmem:[#allocation2 + $0x4d0] sm:$0xff]
        %v4909 = vld [vmem:[#allocation2 + $0x4d8] sm:$0xff]
        %v4910 = vld [vmem:[#allocation2 + $0x4e0] sm:$0xff]
        %v4911 = vld [vmem:[#allocation2 + $0x4e8] sm:$0xff]
        %v4912 = vld [vmem:[#allocation2 + $0x4f0] sm:$0xff]
        %v4913 = vld [vmem:[#allocation2 + $0x4f8] sm:$0xff]
        %v4914 = vld [vmem:[#allocation2 + $0x500] sm:$0xff]
        %v4915 = vld [vmem:[#allocation2 + $0x508] sm:$0xff]
        %v4916 = vld [vmem:[#allocation2 + $0x510] sm:$0xff]
        %v4917 = vld [vmem:[#allocation2 + $0x518] sm:$0xff]
        %v4918 = vld [vmem:[#allocation2 + $0x520] sm:$0xff]
        %v4919 = vld [vmem:[#allocation2 + $0x528] sm:$0xff]
        %v4920 = vld [vmem:[#allocation2 + $0x530] sm:$0xff]
        %v4921 = vld [vmem:[#allocation2 + $0x538] sm:$0xff]
        %v4922 = vld [vmem:[#allocation2 + $0x540] sm:$0xff]
        %v4923 = vld [vmem:[#allocation2 + $0x548] sm:$0xff]
        %v4924 = vld [vmem:[#allocation2 + $0x550] sm:$0xff]
        %v4925 = vld [vmem:[#allocation2 + $0x558] sm:$0xff]
        %v4926 = vld [vmem:[#allocation2 + $0x560] sm:$0xff]
        %v4927 = vld [vmem:[#allocation2 + $0x568] sm:$0xff]
        %v4928 = vld [vmem:[#allocation2 + $0x570] sm:$0xff]
        %v4929 = vld [vmem:[#allocation2 + $0x578] sm:$0xff]
        %v4930 = vld [vmem:[#allocation2 + $0x580] sm:$0xff]
        %v4931 = vld [vmem:[#allocation2 + $0x588] sm:$0xff]
        %v4932 = vld [vmem:[#allocation2 + $0x590] sm:$0xff]
        %v4933 = vld [vmem:[#allocation2 + $0x598] sm:$0xff]
        %v4934 = vld [vmem:[#allocation2 + $0x5a0] sm:$0xff]
        %v4935 = vld [vmem:[#allocation2 + $0x5a8] sm:$0xff]
        %v4936 = vld [vmem:[#allocation2 + $0x5b0] sm:$0xff]
        %v4937 = vld [vmem:[#allocation2 + $0x5b8] sm:$0xff]
        %v4938 = vld [vmem:[#allocation2 + $0x5c0] sm:$0xff]
        %v4939 = vld [vmem:[#allocation2 + $0x5c8] sm:$0xff]
        %v4940 = vld [vmem:[#allocation2 + $0x5d0] sm:$0xff]
        %v4941 = vld [vmem:[#allocation2 + $0x5d8] sm:$0xff]
        %v4942 = vld [vmem:[#allocation2 + $0x5e0] sm:$0xff]
        %v4943 = vld [vmem:[#allocation2 + $0x5e8] sm:$0xff]
        %v4944 = vld [vmem:[#allocation2 + $0x5f0] sm:$0xff]
        %v4945 = vld [vmem:[#allocation2 + $0x5f8] sm:$0xff]
        %v4946 = vld [vmem:[#allocation2 + $0x600] sm:$0xff]
        %v4947 = vld [vmem:[#allocation2 + $0x608] sm:$0xff]
        %v4948 = vld [vmem:[#allocation2 + $0x610] sm:$0xff]
        %v4949 = vld [vmem:[#allocation2 + $0x618] sm:$0xff]
        %v4950 = vld [vmem:[#allocation2 + $0x620] sm:$0xff]
        %v4951 = vld [vmem:[#allocation2 + $0x628] sm:$0xff]
        %v4952 = vld [vmem:[#allocation2 + $0x630] sm:$0xff]
        %v4953 = vld [vmem:[#allocation2 + $0x638] sm:$0xff]
        %v4954 = vld [vmem:[#allocation2 + $0x640] sm:$0xff]
        %v4955 = vld [vmem:[#allocation2 + $0x648] sm:$0xff]
        %v4956 = vld [vmem:[#allocation2 + $0x650] sm:$0xff]
        %v4957 = vld [vmem:[#allocation2 + $0x658] sm:$0xff]
        %v4958 = vld [vmem:[#allocation2 + $0x660] sm:$0xff]
        %v4959 = vld [vmem:[#allocation2 + $0x668] sm:$0xff]
        %v4960 = vld [vmem:[#allocation2 + $0x670] sm:$0xff]
        %v4961 = vld [vmem:[#allocation2 + $0x678] sm:$0xff]
        %v4962 = vld [vmem:[#allocation2 + $0x680] sm:$0xff]
        %v4963 = vld [vmem:[#allocation2 + $0x688] sm:$0xff]
        %v4964 = vld [vmem:[#allocation2 + $0x690] sm:$0xff]
        %v4965 = vld [vmem:[#allocation2 + $0x698] sm:$0xff]
        %v4966 = vld [vmem:[#allocation2 + $0x6a0] sm:$0xff]
        %v4967 = vld [vmem:[#allocation2 + $0x6a8] sm:$0xff]
        %v4968 = vld [vmem:[#allocation2 + $0x6b0] sm:$0xff]
        %v4969 = vld [vmem:[#allocation2 + $0x6b8] sm:$0xff]
        %v4970 = vld [vmem:[#allocation2 + $0x6c0] sm:$0xff]
        %v4971 = vld [vmem:[#allocation2 + $0x6c8] sm:$0xff]
        %v4972 = vld [vmem:[#allocation2 + $0x6d0] sm:$0xff]
        %v4973 = vld [vmem:[#allocation2 + $0x6d8] sm:$0xff]
        %v4974 = vld [vmem:[#allocation2 + $0x6e0] sm:$0xff]
        %v4975 = vld [vmem:[#allocation2 + $0x6e8] sm:$0xff]
        %v4976 = vld [vmem:[#allocation2 + $0x6f0] sm:$0xff]
        %v4977 = vld [vmem:[#allocation2 + $0x6f8] sm:$0xff]
        %v4978 = vld [vmem:[#allocation2 + $0x700] sm:$0xff]
        %v4979 = vld [vmem:[#allocation2 + $0x708] sm:$0xff]
        %v4980 = vld [vmem:[#allocation2 + $0x710] sm:$0xff]
        %v4981 = vld [vmem:[#allocation2 + $0x718] sm:$0xff]
        %v4982 = vld [vmem:[#allocation2 + $0x720] sm:$0xff]
        %v4983 = vld [vmem:[#allocation2 + $0x728] sm:$0xff]
        %v4984 = vld [vmem:[#allocation2 + $0x730] sm:$0xff]
        %v4985 = vld [vmem:[#allocation2 + $0x738] sm:$0xff]
        %v4986 = vld [vmem:[#allocation2 + $0x740] sm:$0xff]
        %v4987 = vld [vmem:[#allocation2 + $0x748] sm:$0xff]
        %v4988 = vld [vmem:[#allocation2 + $0x750] sm:$0xff]
        %v4989 = vld [vmem:[#allocation2 + $0x758] sm:$0xff]
        %v4990 = vld [vmem:[#allocation2 + $0x760] sm:$0xff]
        %v4991 = vld [vmem:[#allocation2 + $0x768] sm:$0xff]
        %v4992 = vld [vmem:[#allocation2 + $0x770] sm:$0xff]
        %v4993 = vld [vmem:[#allocation2 + $0x778] sm:$0xff]
        %v4994 = vld [vmem:[#allocation2 + $0x780] sm:$0xff]
        %v4995 = vld [vmem:[#allocation2 + $0x788] sm:$0xff]
        %v4996 = vld [vmem:[#allocation2 + $0x790] sm:$0xff]
        %v4997 = vld [vmem:[#allocation2 + $0x798] sm:$0xff]
        %v4998 = vld [vmem:[#allocation2 + $0x7a0] sm:$0xff]
        %v4999 = vld [vmem:[#allocation2 + $0x7a8] sm:$0xff]
        %v5000 = vld [vmem:[#allocation2 + $0x7b0] sm:$0xff]
        %v5001 = vld [vmem:[#allocation2 + $0x7b8] sm:$0xff]
        %v5002 = vld [vmem:[#allocation2 + $0x7c0] sm:$0xff]
        %v5003 = vld [vmem:[#allocation2 + $0x7c8] sm:$0xff]
        %v5004 = vld [vmem:[#allocation2 + $0x7d0] sm:$0xff]
        %v5005 = vld [vmem:[#allocation2 + $0x7d8] sm:$0xff]
        %v5006 = vld [vmem:[#allocation2 + $0x7e0] sm:$0xff]
        %v5007 = vld [vmem:[#allocation2 + $0x7e8] sm:$0xff]
        %v5008 = vld [vmem:[#allocation2 + $0x7f0] sm:$0xff]
        %v5009 = vld [vmem:[#allocation2 + $0x7f8] sm:$0xff]
        %v5010 = vadd.f32 %v4754, %v4755
        %v5011 = vadd.f32 %v5010, %v4756
        %v5012 = vadd.f32 %v5011, %v4757
        %v5013 = vadd.f32 %v5012, %v4758
        %v5014 = vadd.f32 %v5013, %v4759
        %v5015 = vadd.f32 %v5014, %v4760
        %v5016 = vadd.f32 %v5015, %v4761
        %5017 = vadd.xlane.f32.xlu0 %v5016
        %v5018 = vpop.xlane.xlu0 %5017
        %v5019 = vadd.f32 %v4762, %v4763
        %v5020 = vadd.f32 %v5019, %v4764
        %v5021 = vadd.f32 %v5020, %v4765
        %v5022 = vadd.f32 %v5021, %v4766
        %v5023 = vadd.f32 %v5022, %v4767
        %v5024 = vadd.f32 %v5023, %v4768
        %v5025 = vadd.f32 %v5024, %v4769
        %5026 = vadd.xlane.f32.xlu0 %v5025
        %v5027 = vpop.xlane.xlu0 %5026
        %v5028 = vadd.f32 %v4770, %v4771
        %v5029 = vadd.f32 %v5028, %v4772
        %v5030 = vadd.f32 %v5029, %v4773
        %v5031 = vadd.f32 %v5030, %v4774
        %v5032 = vadd.f32 %v5031, %v4775
        %v5033 = vadd.f32 %v5032, %v4776
        %v5034 = vadd.f32 %v5033, %v4777
        %5035 = vadd.xlane.f32.xlu0 %v5034
        %v5036 = vpop.xlane.xlu0 %5035
        %v5037 = vadd.f32 %v4778, %v4779
        %v5038 = vadd.f32 %v5037, %v4780
        %v5039 = vadd.f32 %v5038, %v4781
        %v5040 = vadd.f32 %v5039, %v4782
        %v5041 = vadd.f32 %v5040, %v4783
        %v5042 = vadd.f32 %v5041, %v4784
        %v5043 = vadd.f32 %v5042, %v4785
        %5044 = vadd.xlane.f32.xlu0 %v5043
        %v5045 = vpop.xlane.xlu0 %5044
        %v5046 = vadd.f32 %v4786, %v4787
        %v5047 = vadd.f32 %v5046, %v4788
        %v5048 = vadd.f32 %v5047, %v4789
        %v5049 = vadd.f32 %v5048, %v4790
        %v5050 = vadd.f32 %v5049, %v4791
        %v5051 = vadd.f32 %v5050, %v4792
        %v5052 = vadd.f32 %v5051, %v4793
        %5053 = vadd.xlane.f32.xlu0 %v5052
        %v5054 = vpop.xlane.xlu0 %5053
        %v5055 = vadd.f32 %v4794, %v4795
        %v5056 = vadd.f32 %v5055, %v4796
        %v5057 = vadd.f32 %v5056, %v4797
        %v5058 = vadd.f32 %v5057, %v4798
        %v5059 = vadd.f32 %v5058, %v4799
        %v5060 = vadd.f32 %v5059, %v4800
        %v5061 = vadd.f32 %v5060, %v4801
        %5062 = vadd.xlane.f32.xlu0 %v5061
        %v5063 = vpop.xlane.xlu0 %5062
        %v5064 = vadd.f32 %v4802, %v4803
        %v5065 = vadd.f32 %v5064, %v4804
        %v5066 = vadd.f32 %v5065, %v4805
        %v5067 = vadd.f32 %v5066, %v4806
        %v5068 = vadd.f32 %v5067, %v4807
        %v5069 = vadd.f32 %v5068, %v4808
        %v5070 = vadd.f32 %v5069, %v4809
        %5071 = vadd.xlane.f32.xlu0 %v5070
        %v5072 = vpop.xlane.xlu0 %5071
        %v5073 = vadd.f32 %v4810, %v4811
        %v5074 = vadd.f32 %v5073, %v4812
        %v5075 = vadd.f32 %v5074, %v4813
        %v5076 = vadd.f32 %v5075, %v4814
        %v5077 = vadd.f32 %v5076, %v4815
        %v5078 = vadd.f32 %v5077, %v4816
        %v5079 = vadd.f32 %v5078, %v4817
        %5080 = vadd.xlane.f32.xlu0 %v5079
        %v5081 = vpop.xlane.xlu0 %5080
        %v5082 = vadd.f32 %v4818, %v4819
        %v5083 = vadd.f32 %v5082, %v4820
        %v5084 = vadd.f32 %v5083, %v4821
        %v5085 = vadd.f32 %v5084, %v4822
        %v5086 = vadd.f32 %v5085, %v4823
        %v5087 = vadd.f32 %v5086, %v4824
        %v5088 = vadd.f32 %v5087, %v4825
        %5089 = vadd.xlane.f32.xlu0 %v5088
        %v5090 = vpop.xlane.xlu0 %5089
        %v5091 = vadd.f32 %v4826, %v4827
        %v5092 = vadd.f32 %v5091, %v4828
        %v5093 = vadd.f32 %v5092, %v4829
        %v5094 = vadd.f32 %v5093, %v4830
        %v5095 = vadd.f32 %v5094, %v4831
        %v5096 = vadd.f32 %v5095, %v4832
        %v5097 = vadd.f32 %v5096, %v4833
        %5098 = vadd.xlane.f32.xlu0 %v5097
        %v5099 = vpop.xlane.xlu0 %5098
        %v5100 = vadd.f32 %v4834, %v4835
        %v5101 = vadd.f32 %v5100, %v4836
        %v5102 = vadd.f32 %v5101, %v4837
        %v5103 = vadd.f32 %v5102, %v4838
        %v5104 = vadd.f32 %v5103, %v4839
        %v5105 = vadd.f32 %v5104, %v4840
        %v5106 = vadd.f32 %v5105, %v4841
        %5107 = vadd.xlane.f32.xlu0 %v5106
        %v5108 = vpop.xlane.xlu0 %5107
        %v5109 = vadd.f32 %v4842, %v4843
        %v5110 = vadd.f32 %v5109, %v4844
        %v5111 = vadd.f32 %v5110, %v4845
        %v5112 = vadd.f32 %v5111, %v4846
        %v5113 = vadd.f32 %v5112, %v4847
        %v5114 = vadd.f32 %v5113, %v4848
        %v5115 = vadd.f32 %v5114, %v4849
        %5116 = vadd.xlane.f32.xlu0 %v5115
        %v5117 = vpop.xlane.xlu0 %5116
        %v5118 = vadd.f32 %v4850, %v4851
        %v5119 = vadd.f32 %v5118, %v4852
        %v5120 = vadd.f32 %v5119, %v4853
        %v5121 = vadd.f32 %v5120, %v4854
        %v5122 = vadd.f32 %v5121, %v4855
        %v5123 = vadd.f32 %v5122, %v4856
        %v5124 = vadd.f32 %v5123, %v4857
        %5125 = vadd.xlane.f32.xlu0 %v5124
        %v5126 = vpop.xlane.xlu0 %5125
        %v5127 = vadd.f32 %v4858, %v4859
        %v5128 = vadd.f32 %v5127, %v4860
        %v5129 = vadd.f32 %v5128, %v4861
        %v5130 = vadd.f32 %v5129, %v4862
        %v5131 = vadd.f32 %v5130, %v4863
        %v5132 = vadd.f32 %v5131, %v4864
        %v5133 = vadd.f32 %v5132, %v4865
        %5134 = vadd.xlane.f32.xlu0 %v5133
        %v5135 = vpop.xlane.xlu0 %5134
        %v5136 = vadd.f32 %v4866, %v4867
        %v5137 = vadd.f32 %v5136, %v4868
        %v5138 = vadd.f32 %v5137, %v4869
        %v5139 = vadd.f32 %v5138, %v4870
        %v5140 = vadd.f32 %v5139, %v4871
        %v5141 = vadd.f32 %v5140, %v4872
        %v5142 = vadd.f32 %v5141, %v4873
        %5143 = vadd.xlane.f32.xlu0 %v5142
        %v5144 = vpop.xlane.xlu0 %5143
        %v5145 = vadd.f32 %v4874, %v4875
        %v5146 = vadd.f32 %v5145, %v4876
        %v5147 = vadd.f32 %v5146, %v4877
        %v5148 = vadd.f32 %v5147, %v4878
        %v5149 = vadd.f32 %v5148, %v4879
        %v5150 = vadd.f32 %v5149, %v4880
        %v5151 = vadd.f32 %v5150, %v4881
        %5152 = vadd.xlane.f32.xlu0 %v5151
        %v5153 = vpop.xlane.xlu0 %5152
        %v5154 = vadd.f32 %v4882, %v4883
        %v5155 = vadd.f32 %v5154, %v4884
        %v5156 = vadd.f32 %v5155, %v4885
        %v5157 = vadd.f32 %v5156, %v4886
        %v5158 = vadd.f32 %v5157, %v4887
        %v5159 = vadd.f32 %v5158, %v4888
        %v5160 = vadd.f32 %v5159, %v4889
        %5161 = vadd.xlane.f32.xlu0 %v5160
        %v5162 = vpop.xlane.xlu0 %5161
        %v5163 = vadd.f32 %v4890, %v4891
        %v5164 = vadd.f32 %v5163, %v4892
        %v5165 = vadd.f32 %v5164, %v4893
        %v5166 = vadd.f32 %v5165, %v4894
        %v5167 = vadd.f32 %v5166, %v4895
        %v5168 = vadd.f32 %v5167, %v4896
        %v5169 = vadd.f32 %v5168, %v4897
        %5170 = vadd.xlane.f32.xlu0 %v5169
        %v5171 = vpop.xlane.xlu0 %5170
        %v5172 = vadd.f32 %v4898, %v4899
        %v5173 = vadd.f32 %v5172, %v4900
        %v5174 = vadd.f32 %v5173, %v4901
        %v5175 = vadd.f32 %v5174, %v4902
        %v5176 = vadd.f32 %v5175, %v4903
        %v5177 = vadd.f32 %v5176, %v4904
        %v5178 = vadd.f32 %v5177, %v4905
        %5179 = vadd.xlane.f32.xlu0 %v5178
        %v5180 = vpop.xlane.xlu0 %5179
        %v5181 = vadd.f32 %v4906, %v4907
        %v5182 = vadd.f32 %v5181, %v4908
        %v5183 = vadd.f32 %v5182, %v4909
        %v5184 = vadd.f32 %v5183, %v4910
        %v5185 = vadd.f32 %v5184, %v4911
        %v5186 = vadd.f32 %v5185, %v4912
        %v5187 = vadd.f32 %v5186, %v4913
        %5188 = vadd.xlane.f32.xlu0 %v5187
        %v5189 = vpop.xlane.xlu0 %5188
        %v5190 = vadd.f32 %v4914, %v4915
        %v5191 = vadd.f32 %v5190, %v4916
        %v5192 = vadd.f32 %v5191, %v4917
        %v5193 = vadd.f32 %v5192, %v4918
        %v5194 = vadd.f32 %v5193, %v4919
        %v5195 = vadd.f32 %v5194, %v4920
        %v5196 = vadd.f32 %v5195, %v4921
        %5197 = vadd.xlane.f32.xlu0 %v5196
        %v5198 = vpop.xlane.xlu0 %5197
        %v5199 = vadd.f32 %v4922, %v4923
        %v5200 = vadd.f32 %v5199, %v4924
        %v5201 = vadd.f32 %v5200, %v4925
        %v5202 = vadd.f32 %v5201, %v4926
        %v5203 = vadd.f32 %v5202, %v4927
        %v5204 = vadd.f32 %v5203, %v4928
        %v5205 = vadd.f32 %v5204, %v4929
        %5206 = vadd.xlane.f32.xlu0 %v5205
        %v5207 = vpop.xlane.xlu0 %5206
        %v5208 = vadd.f32 %v4930, %v4931
        %v5209 = vadd.f32 %v5208, %v4932
        %v5210 = vadd.f32 %v5209, %v4933
        %v5211 = vadd.f32 %v5210, %v4934
        %v5212 = vadd.f32 %v5211, %v4935
        %v5213 = vadd.f32 %v5212, %v4936
        %v5214 = vadd.f32 %v5213, %v4937
        %5215 = vadd.xlane.f32.xlu0 %v5214
        %v5216 = vpop.xlane.xlu0 %5215
        %v5217 = vadd.f32 %v4938, %v4939
        %v5218 = vadd.f32 %v5217, %v4940
        %v5219 = vadd.f32 %v5218, %v4941
        %v5220 = vadd.f32 %v5219, %v4942
        %v5221 = vadd.f32 %v5220, %v4943
        %v5222 = vadd.f32 %v5221, %v4944
        %v5223 = vadd.f32 %v5222, %v4945
        %5224 = vadd.xlane.f32.xlu0 %v5223
        %v5225 = vpop.xlane.xlu0 %5224
        %v5226 = vadd.f32 %v4946, %v4947
        %v5227 = vadd.f32 %v5226, %v4948
        %v5228 = vadd.f32 %v5227, %v4949
        %v5229 = vadd.f32 %v5228, %v4950
        %v5230 = vadd.f32 %v5229, %v4951
        %v5231 = vadd.f32 %v5230, %v4952
        %v5232 = vadd.f32 %v5231, %v4953
        %5233 = vadd.xlane.f32.xlu0 %v5232
        %v5234 = vpop.xlane.xlu0 %5233
        %v5235 = vadd.f32 %v4954, %v4955
        %v5236 = vadd.f32 %v5235, %v4956
        %v5237 = vadd.f32 %v5236, %v4957
        %v5238 = vadd.f32 %v5237, %v4958
        %v5239 = vadd.f32 %v5238, %v4959
        %v5240 = vadd.f32 %v5239, %v4960
        %v5241 = vadd.f32 %v5240, %v4961
        %5242 = vadd.xlane.f32.xlu0 %v5241
        %v5243 = vpop.xlane.xlu0 %5242
        %v5244 = vadd.f32 %v4962, %v4963
        %v5245 = vadd.f32 %v5244, %v4964
        %v5246 = vadd.f32 %v5245, %v4965
        %v5247 = vadd.f32 %v5246, %v4966
        %v5248 = vadd.f32 %v5247, %v4967
        %v5249 = vadd.f32 %v5248, %v4968
        %v5250 = vadd.f32 %v5249, %v4969
        %5251 = vadd.xlane.f32.xlu0 %v5250
        %v5252 = vpop.xlane.xlu0 %5251
        %v5253 = vadd.f32 %v4970, %v4971
        %v5254 = vadd.f32 %v5253, %v4972
        %v5255 = vadd.f32 %v5254, %v4973
        %v5256 = vadd.f32 %v5255, %v4974
        %v5257 = vadd.f32 %v5256, %v4975
        %v5258 = vadd.f32 %v5257, %v4976
        %v5259 = vadd.f32 %v5258, %v4977
        %5260 = vadd.xlane.f32.xlu0 %v5259
        %v5261 = vpop.xlane.xlu0 %5260
        %v5262 = vadd.f32 %v4978, %v4979
        %v5263 = vadd.f32 %v5262, %v4980
        %v5264 = vadd.f32 %v5263, %v4981
        %v5265 = vadd.f32 %v5264, %v4982
        %v5266 = vadd.f32 %v5265, %v4983
        %v5267 = vadd.f32 %v5266, %v4984
        %v5268 = vadd.f32 %v5267, %v4985
        %5269 = vadd.xlane.f32.xlu0 %v5268
        %v5270 = vpop.xlane.xlu0 %5269
        %v5271 = vadd.f32 %v4986, %v4987
        %v5272 = vadd.f32 %v5271, %v4988
        %v5273 = vadd.f32 %v5272, %v4989
        %v5274 = vadd.f32 %v5273, %v4990
        %v5275 = vadd.f32 %v5274, %v4991
        %v5276 = vadd.f32 %v5275, %v4992
        %v5277 = vadd.f32 %v5276, %v4993
        %5278 = vadd.xlane.f32.xlu0 %v5277
        %v5279 = vpop.xlane.xlu0 %5278
        %v5280 = vadd.f32 %v4994, %v4995
        %v5281 = vadd.f32 %v5280, %v4996
        %v5282 = vadd.f32 %v5281, %v4997
        %v5283 = vadd.f32 %v5282, %v4998
        %v5284 = vadd.f32 %v5283, %v4999
        %v5285 = vadd.f32 %v5284, %v5000
        %v5286 = vadd.f32 %v5285, %v5001
        %5287 = vadd.xlane.f32.xlu0 %v5286
        %v5288 = vpop.xlane.xlu0 %5287
        %v5289 = vadd.f32 %v5002, %v5003
        %v5290 = vadd.f32 %v5289, %v5004
        %v5291 = vadd.f32 %v5290, %v5005
        %v5292 = vadd.f32 %v5291, %v5006
        %v5293 = vadd.f32 %v5292, %v5007
        %v5294 = vadd.f32 %v5293, %v5008
        %v5295 = vadd.f32 %v5294, %v5009
        %5296 = vadd.xlane.f32.xlu0 %v5295
        %v5297 = vpop.xlane.xlu0 %5296
        %vm5298 = vcmask 7168
        %5299 = vst.msk [vmem:[%s159] sm:$0xff] %vm5298, %v5018
        %5300 = vst.msk [vmem:[%s159 + $0x8] sm:$0xff] %vm5298, %v5027
        %5301 = vst.msk [vmem:[%s159 + $0x10] sm:$0xff] %vm5298, %v5036
        %5302 = vst.msk [vmem:[%s159 + $0x18] sm:$0xff] %vm5298, %v5045
        %5303 = vst.msk [vmem:[%s159 + $0x20] sm:$0xff] %vm5298, %v5054
        %5304 = vst.msk [vmem:[%s159 + $0x28] sm:$0xff] %vm5298, %v5063
        %5305 = vst.msk [vmem:[%s159 + $0x30] sm:$0xff] %vm5298, %v5072
        %5306 = vst.msk [vmem:[%s159 + $0x38] sm:$0xff] %vm5298, %v5081
        %5307 = vst.msk [vmem:[%s159 + $0x40] sm:$0xff] %vm5298, %v5090
        %5308 = vst.msk [vmem:[%s159 + $0x48] sm:$0xff] %vm5298, %v5099
        %5309 = vst.msk [vmem:[%s159 + $0x50] sm:$0xff] %vm5298, %v5108
        %5310 = vst.msk [vmem:[%s159 + $0x58] sm:$0xff] %vm5298, %v5117
        %5311 = vst.msk [vmem:[%s159 + $0x60] sm:$0xff] %vm5298, %v5126
        %5312 = vst.msk [vmem:[%s159 + $0x68] sm:$0xff] %vm5298, %v5135
        %5313 = vst.msk [vmem:[%s159 + $0x70] sm:$0xff] %vm5298, %v5144
        %5314 = vst.msk [vmem:[%s159 + $0x78] sm:$0xff] %vm5298, %v5153
        %5315 = vst.msk [vmem:[%s159 + $0x80] sm:$0xff] %vm5298, %v5162
        %5316 = vst.msk [vmem:[%s159 + $0x88] sm:$0xff] %vm5298, %v5171
        %5317 = vst.msk [vmem:[%s159 + $0x90] sm:$0xff] %vm5298, %v5180
        %5318 = vst.msk [vmem:[%s159 + $0x98] sm:$0xff] %vm5298, %v5189
        %5319 = vst.msk [vmem:[%s159 + $0xa0] sm:$0xff] %vm5298, %v5198
        %5320 = vst.msk [vmem:[%s159 + $0xa8] sm:$0xff] %vm5298, %v5207
        %5321 = vst.msk [vmem:[%s159 + $0xb0] sm:$0xff] %vm5298, %v5216
        %5322 = vst.msk [vmem:[%s159 + $0xb8] sm:$0xff] %vm5298, %v5225
        %5323 = vst.msk [vmem:[%s159 + $0xc0] sm:$0xff] %vm5298, %v5234
        %5324 = vst.msk [vmem:[%s159 + $0xc8] sm:$0xff] %vm5298, %v5243
        %5325 = vst.msk [vmem:[%s159 + $0xd0] sm:$0xff] %vm5298, %v5252
        %5326 = vst.msk [vmem:[%s159 + $0xd8] sm:$0xff] %vm5298, %v5261
        %5327 = vst.msk [vmem:[%s159 + $0xe0] sm:$0xff] %vm5298, %v5270
        %5328 = vst.msk [vmem:[%s159 + $0xe8] sm:$0xff] %vm5298, %v5279
        %5329 = vst.msk [vmem:[%s159 + $0xf0] sm:$0xff] %vm5298, %v5288
        %5330 = vst.msk [vmem:[%s159 + $0xf8] sm:$0xff] %vm5298, %v5297
      $region36: #{tpu_custom_call.1} parent=27 // pred_fallthru
        _
      %p5331 = scmp.lt.s32.totalorder %s17, 1
      %s5332 = scalar_select %p5331, %s17, 1
      %s5333 = smul.addr %s5332, 32
      %s5334 = smul.addr %s5333, 8
      %s5335 = scalar_lea.vmem %s2, %s5334
      // Predicated region
      $region37: #{tpu_custom_call.1} parent=27 // pred_check
        %p5336 = pneg %p92
      $region38: #{tpu_custom_call.1} parent=27 // pred_check_branch
        %5338 = sbr.rel (%p5336) target = $region40
      $region39: #{tpu_custom_call.1} parent=27 // pred_region
        _
      $region40: #{tpu_custom_call.1} parent=27 // pred_fallthru
        _
    $region28: #{tpu_custom_call.1} parent=5 // pred_fallthru
      _
    %p5339 = scmp.le.s32.totalorder 2, %s8
    // Predicated region
    $region41: #{tpu_custom_call.1} parent=5 // pred_check
      %p5340 = pneg %p5339
    $region42: #{tpu_custom_call.1} parent=5 // pred_check_branch
      %5342 = sbr.rel (%p5340) target = $region44
    $region43: #{tpu_custom_call.1} parent=5 // pred_region
      %s5343 = ssub.s32 %s8, 2
      // Predicated region
      $region45: #{tpu_custom_call.1} parent=43 // pred_check
        %p5344 = pneg %p98
      $region46: #{tpu_custom_call.1} parent=43 // pred_check_branch
        %5346 = sbr.rel (%p5344) target = $region48
      $region47: #{tpu_custom_call.1} parent=43 // pred_region
        %p5347 = scmp.lt.s32.totalorder %s19, 1
        %s5348 = scalar_select %p5347, %s19, 1
        %s5349 = smul.addr %s5348, 32
        %s5350 = smul.addr %s5349, 8
        %s5351 = scalar_lea.vmem %s2, %s5350
      $region48: #{tpu_custom_call.1} parent=43 // pred_fallthru
        _
    $region44: #{tpu_custom_call.1} parent=5 // pred_fallthru
      _
  $region6: #{tpu_custom_call.1} parent=0 // loop_footer
    %s12 = sadd.s32 1, %s8
  $region7: #{tpu_custom_call.1} parent=0 // loop_footer_branch
    %7 = sbr.rel target = $region3
  $region8: #{tpu_custom_call.1} parent=0 // loop_exit
    _

</llo_original>
